<compile_context>
chip_gen: v7x
topology: tpu7x:2x2x1
jax: 0.10.0
libtpu: 0.0.40
codegen_flags: <defaults>
</compile_context>

<pallas_src>
import numpy as np
import jax
import jax.numpy as jnp
from jax.experimental import pallas as pl
from jax.experimental.pallas import tpu as pltpu

# ---- SpfConfig (small, synthetic) ------------------------------------------
NUM_NODES = 16
DIM_EMB = 8            # E  (embedding is (E, 2) -> 2E features after gumbel)
MAX_DEGREE = 8         # T
NUM_HEADS = 2          # H
DIM_ATTN_HIDDEN = 16   # dh
DIM_ATTN_OUT = 16      # do
DIM_FCN = (32, 16)     # C1, C2
TAU = 0.6

_2E = 2 * DIM_EMB          # 16
_T = MAX_DEGREE            # 8
_H = NUM_HEADS             # 2
_DH = DIM_ATTN_HIDDEN      # 16
_DO = DIM_ATTN_OUT         # 16
_C1, _C2 = DIM_FCN         # 32, 16

# per-request input slab lane layout
_KV_W = _T * _2E                 # 128
_Q_OFF = _KV_W                   # 128
_MB_OFF = _Q_OFF + _2E           # 144
_ONE_OFF = _MB_OFF + _T          # 152 (constant 1.0 -> folds biases into matmul)
_X_W = 160

# fused projection output layout: [ kh | vh | q_tiled | mb_tiled ]
_KH_W = _T * _H * _DH            # 256   lane = t*32 + h*16 + d
_VH_W = _T * _H * _DO            # 256
_QT_W = _KH_W                    # 256   query replicated over t
_MB_W = _H * _T                  # 16    lane = h*8 + t
_PROJ_W = _KH_W + _VH_W + _QT_W + _MB_W   # 784

# post-projection constants slab (rows x cols), 128-aligned column starts
_POST_ROWS = _KH_W               # 256
_E_COL = 0                       # E   : rows 0:16,  cols   0:256
_GS_COL = 256                    # G_s : rows 0:256, cols 256:272
_GV_COL = 384                    # G_v : rows 0:256, cols 384:416
_W1_COL = 512                    # W1  : rows 0:32,  cols 512:544 ; b1 at row 32
_W2_COL = 640                    # W2  : rows 0:32,  cols 640:656 ; b2 at row 32
_WO_COL = 768                    # out : rows 0:32,  cols 768:896 ; b_out row 32
_POST_W = 896
_BIAS_ROW = 32

_OUT_W = 128
_LOGIT_OFF = 0
_SCORE_OFF = MAX_DEGREE          # scores for head h at lanes 8+h*8 : 16+h*8

R_TILE = 128                     # request rows per grid step (sweepable)


# ---- Pallas kernel: batched attention + FCN + logits ------------------------
def _spf_batched_kernel(x_ref, wproj_ref, wpost_ref, out_ref):
    f32 = jnp.float32
    x = x_ref[...]                                                    # (R, 160)

    # Fused projections (biases + 1/sqrt(dh) folded into the weight slab).
    kh = jnp.dot(x, wproj_ref[:, 0:_KH_W],
                 preferred_element_type=f32)                          # (R, 256)
    qt = jnp.dot(x, wproj_ref[:, _KH_W + _VH_W:_KH_W + _VH_W + _QT_W],
                 preferred_element_type=f32)                          # (R, 256)
    mb = jnp.dot(x, wproj_ref[:, _PROJ_W - _MB_W:_PROJ_W],
                 preferred_element_type=f32)                          # (R, 16)

    # Scores: per-(neighbor, head) dot over d via one MXU gather matmul.
    g_s = wpost_ref[:, _GS_COL:_GS_COL + _H * _T]                     # (256, 16)
    s = jnp.dot(qt * kh, g_s, preferred_element_type=f32) + mb        # (R, 16) [h,t]

    # Masked softmax per head over the T neighbor slots.
    ps = []
    for h in range(_H):
        s_h = s[:, h * _T:(h + 1) * _T]
        s_h = s_h - jnp.max(s_h, axis=-1, keepdims=True)
        e_h = jnp.exp(s_h)
        inv_l = pl.reciprocal(jnp.sum(e_h, axis=-1, keepdims=True), approx=True)
        ps.append(e_h * inv_l)
    p = jnp.concatenate(ps, axis=-1)                                  # (R, 16) [h,t]

    # Weighted value sum: expand p over d (MXU), multiply, gather per head (MXU).
    vh = jnp.dot(x, wproj_ref[:, _KH_W:_KH_W + _VH_W],
                 preferred_element_type=f32)                          # (R, 256)
    e_mat = wpost_ref[0:_H * _T, _E_COL:_E_COL + _KH_W]               # (16, 256)
    g_v = wpost_ref[:, _GV_COL:_GV_COL + _H * _DO]                    # (256, 32)
    p_exp = jnp.dot(p, e_mat, preferred_element_type=f32)             # (R, 256)
    ho = jnp.dot(p_exp * vh, g_v, preferred_element_type=f32)         # (R, 32) [h,d]

    # FCN head.
    w1 = wpost_ref[0:_H * _DO, _W1_COL:_W1_COL + _C1]
    b1 = wpost_ref[_BIAS_ROW:_BIAS_ROW + 1, _W1_COL:_W1_COL + _C1]
    w2 = wpost_ref[0:_C1, _W2_COL:_W2_COL + _C2]
    b2 = wpost_ref[_BIAS_ROW:_BIAS_ROW + 1, _W2_COL:_W2_COL + _C2]
    x1 = jnp.maximum(jnp.dot(ho, w1, preferred_element_type=f32) + b1, 0.0)
    x2 = jnp.maximum(jnp.dot(x1, w2, preferred_element_type=f32) + b2, 0.0)

    # Single lane-dense output row per request: [logits | scores h0 | h1 | 0].
    w_out = wpost_ref[0:_C2, _WO_COL:_WO_COL + _OUT_W]                # (16, 128)
    s_place = wpost_ref[_C2:_C2 + _H * _T, _WO_COL:_WO_COL + _OUT_W]  # (16, 128)
    b_out = wpost_ref[_BIAS_ROW:_BIAS_ROW + 1, _WO_COL:_WO_COL + _OUT_W]
    out_ref[...] = (jnp.dot(x2, w_out, preferred_element_type=f32) +
                    jnp.dot(p, s_place, preferred_element_type=f32) + b_out)


# ---- weight packing ----------------------------------------------------------
def pack_params(weights):
    """Pack all projection / FCN params into two constant slabs."""
    inv = 1.0 / np.sqrt(float(DIM_ATTN_HIDDEN))
    wq = np.asarray(weights['wq'], np.float32); bq = np.asarray(weights['bq'], np.float32)
    wk = np.asarray(weights['wk'], np.float32); bk = np.asarray(weights['bk'], np.float32)
    wv = np.asarray(weights['wv'], np.float32); bv = np.asarray(weights['bv'], np.float32)
    w1 = np.asarray(weights['w1'], np.float32); b1 = np.asarray(weights['b1'], np.float32)
    w2 = np.asarray(weights['w2'], np.float32); b2 = np.asarray(weights['b2'], np.float32)
    wl = np.asarray(weights['wl'], np.float32); bl = np.asarray(weights['bl'], np.float32)

    eye_t = np.eye(_T, dtype=np.float32)

    # fused projection slab
    w_proj = np.zeros((_X_W, _PROJ_W), np.float32)
    # K projection: block-diagonal over neighbor slots, bias via the ones lane.
    w_proj[0:_KV_W, 0:_KH_W] = np.kron(eye_t, wk)
    w_proj[_ONE_OFF, 0:_KH_W] = np.tile(bk[0], _T)
    # V projection.
    w_proj[0:_KV_W, _KH_W:_KH_W + _VH_W] = np.kron(eye_t, wv)
    w_proj[_ONE_OFF, _KH_W:_KH_W + _VH_W] = np.tile(bv[0], _T)
    # Q projection replicated over the T slots, 1/sqrt(dh) folded in.
    q0 = _KH_W + _VH_W
    w_proj[_Q_OFF:_Q_OFF + _2E, q0:q0 + _QT_W] = np.tile(wq * inv, (1, _T))
    w_proj[_ONE_OFF, q0:q0 + _QT_W] = np.tile(bq[0] * inv, _T)
    # mask-bias expansion: mb_tiled[h*8 + t] = mask_bias[t]
    m0 = q0 + _QT_W
    w_proj[_MB_OFF:_MB_OFF + _T, m0:m0 + _MB_W] = np.tile(eye_t, (1, _H))

    # post-projection constants slab
    w_post = np.zeros((_POST_ROWS, _POST_W), np.float32)
    g_s = np.zeros((_KH_W, _H * _T), np.float32)
    g_v = np.zeros((_VH_W, _H * _DO), np.float32)
    for t in range(_T):
        for h in range(_H):
            rs = t * _H * _DH + h * _DH
            rv = t * _H * _DO + h * _DO
            g_s[rs:rs + _DH, h * _T + t] = 1.0
            g_v[rv:rv + _DO, h * _DO:(h + 1) * _DO] = np.eye(_DO, dtype=np.float32)
    w_post[0:_H * _T, _E_COL:_E_COL + _KH_W] = g_s.T          # E = G_s^T
    w_post[:, _GS_COL:_GS_COL + _H * _T] = g_s
    w_post[:, _GV_COL:_GV_COL + _H * _DO] = g_v
    w_post[0:_H * _DO, _W1_COL:_W1_COL + _C1] = w1
    w_post[_BIAS_ROW, _W1_COL:_W1_COL + _C1] = b1[0]
    w_post[0:_C1, _W2_COL:_W2_COL + _C2] = w2
    w_post[_BIAS_ROW, _W2_COL:_W2_COL + _C2] = b2[0]
    w_post[0:_C2, _WO_COL + _LOGIT_OFF:_WO_COL + _LOGIT_OFF + MAX_DEGREE] = wl
    w_post[_C2:_C2 + _H * _T,
           _WO_COL + _SCORE_OFF:_WO_COL + _SCORE_OFF + _H * _T] = np.eye(_H * _T,
                                                                         dtype=np.float32)
    w_post[_BIAS_ROW, _WO_COL:_WO_COL + MAX_DEGREE] = bl[0]
    return jnp.asarray(w_proj), jnp.asarray(w_post)


# ---- pallas_call wrapper -----------------------------------------------------
def spf_attention_mlp(x_slab, w_proj, w_post):
    r_total = x_slab.shape[0]
    assert r_total % R_TILE == 0
    fn = pl.pallas_call(
        _spf_batched_kernel,
        out_shape=jax.ShapeDtypeStruct((r_total, _OUT_W), jnp.float32),
        grid=(r_total // R_TILE,),
        in_specs=[
            pl.BlockSpec((R_TILE, _X_W), lambda i: (i, 0)),       # requests (tiled)
            pl.BlockSpec((_X_W, _PROJ_W), lambda i: (0, 0)),      # pinned weights
            pl.BlockSpec((_POST_ROWS, _POST_W), lambda i: (0, 0)),
        ],
        out_specs=pl.BlockSpec((R_TILE, _OUT_W), lambda i: (i, 0)),
        compiler_params=pltpu.CompilerParams(
            dimension_semantics=("parallel",)),                   # megacore on v7x
    )
    return fn(x_slab, w_proj, w_post)


# ---- plain-JAX glue ----------------------------------------------------------
def gumbel_softmax(key, logits, tau, hard):
    """torch.nn.functional.gumbel_softmax equivalent (forward value)."""
    u = jax.random.uniform(key, logits.shape, minval=1e-6, maxval=1.0 - 1e-6)
    g = -jnp.log(-jnp.log(u))
    y = jax.nn.softmax((logits + g) / tau, axis=-1)
    if hard:  # straight-through: forward value is the hard one-hot
        idx = jnp.argmax(y, axis=-1)
        y = jax.nn.one_hot(idx, logits.shape[-1], dtype=y.dtype)
    return y


def embedding_spf_forward(weights, packed, queries, others, mask, key, training=False):
    """queries (BS,1,1) int, others (BS,T,1) int, mask (BS,T,1) float."""
    q_idx = queries.reshape(-1).astype(jnp.int32)            # (BS,)
    o_idx = others.reshape(-1).astype(jnp.int32)              # (BS*T,)
    pe = weights['params_embeddings']                         # (N, E, 2)
    bs = q_idx.shape[0]

    k1, k2 = jax.random.split(key)
    emb_dsts = gumbel_softmax(k1, pe[q_idx], TAU, hard=not training)
    emb_dsts = emb_dsts.reshape(bs, _2E)                      # (BS, 2E)
    params_nb = pe[o_idx].reshape(bs, _T, DIM_EMB, 2)
    emb_nb = gumbel_softmax(k2, params_nb, TAU, hard=not training)
    emb_nb = emb_nb.reshape(bs, _T, _2E)                      # (BS, T, 2E)

    attn_mask = mask[..., 0].astype(jnp.float32)              # (BS, T)
    mask_bias = jnp.where(attn_mask > 0, 0.0, -1e30).astype(jnp.float32)

    # One lane-dense row per request: [kv | q | mask_bias | 1 | pad].
    x = jnp.concatenate([
        emb_nb.reshape(bs, _KV_W),
        emb_dsts,
        mask_bias,
        jnp.ones((bs, 1), jnp.float32),
        jnp.zeros((bs, _X_W - _ONE_OFF - 1), jnp.float32),
    ], axis=1)                                                # (BS, 160)
    r_pad = ((bs + R_TILE - 1) // R_TILE) * R_TILE
    if r_pad != bs:
        x = jnp.pad(x, ((0, r_pad - bs), (0, 0)))

    w_proj, w_post = packed
    out = spf_attention_mlp(x, w_proj, w_post)                # (r_pad, 128)

    logits = out[:bs, _LOGIT_OFF:_LOGIT_OFF + MAX_DEGREE]     # (BS, T)
    scores = [out[:bs, _SCORE_OFF + h * _T:_SCORE_OFF + (h + 1) * _T][:, None, :]
              for h in range(_H)]
    return logits, scores, (emb_dsts, emb_nb, attn_mask)


# ---- pure-JAX reference (for correctness check) ------------------------------
def reference_attention_mlp(weights, q_emb, kv_emb, attn_mask):
    outs, sc = [], []
    for h in range(NUM_HEADS):
        sl_h = slice(h * DIM_ATTN_HIDDEN, (h + 1) * DIM_ATTN_HIDDEN)
        sl_o = slice(h * DIM_ATTN_OUT, (h + 1) * DIM_ATTN_OUT)
        qh = q_emb @ weights['wq'][:, sl_h] + weights['bq'][0, sl_h]
        kh = jnp.einsum('btd,de->bte', kv_emb, weights['wk'][:, sl_h]) + weights['bk'][0, sl_h]
        vh = jnp.einsum('btd,de->bte', kv_emb, weights['wv'][:, sl_o]) + weights['bv'][0, sl_o]
        s = jnp.einsum('bd,btd->bt', qh, kh) / jnp.sqrt(jnp.float32(DIM_ATTN_HIDDEN))
        s = jnp.where(attn_mask > 0, s, -1e30)
        p = jax.nn.softmax(s, axis=-1)
        sc.append(p)
        outs.append(jnp.einsum('bt,btd->bd', p, vh))
    x = jnp.concatenate(outs, axis=-1)
    x = jnp.maximum(x @ weights['w1'] + weights['b1'][0], 0.0)
    x = jnp.maximum(x @ weights['w2'] + weights['b2'][0], 0.0)
    return x @ weights['wl'] + weights['bl'][0], sc


# ---- deterministic parameter init & demo -------------------------------------
def init_weights(key):
    ks = jax.random.split(key, 12)

    def w(k, shape):
        return (jax.random.normal(k, shape, jnp.float32) /
                jnp.sqrt(jnp.float32(shape[0]))).astype(jnp.float32)

    def b(k, n):
        return (0.1 * jax.random.normal(k, (1, n), jnp.float32)).astype(jnp.float32)

    two_e = 2 * DIM_EMB
    return {
        # matches torch.nn.Parameter(torch.ones(num_nodes, dim_embedding, 2))
        'params_embeddings': jnp.ones((NUM_NODES, DIM_EMB, 2), jnp.float32),
        'wq': w(ks[0], (two_e, NUM_HEADS * DIM_ATTN_HIDDEN)),
        'bq': b(ks[1], NUM_HEADS * DIM_ATTN_HIDDEN),
        'wk': w(ks[2], (two_e, NUM_HEADS * DIM_ATTN_HIDDEN)),
        'bk': b(ks[3], NUM_HEADS * DIM_ATTN_HIDDEN),
        'wv': w(ks[4], (two_e, NUM_HEADS * DIM_ATTN_OUT)),
        'bv': b(ks[5], NUM_HEADS * DIM_ATTN_OUT),
        'w1': w(ks[6], (NUM_HEADS * DIM_ATTN_OUT, DIM_FCN[0])),
        'b1': b(ks[7], DIM_FCN[0]),
        'w2': w(ks[8], (DIM_FCN[0], DIM_FCN[1])),
        'b2': b(ks[9], DIM_FCN[1]),
        'wl': w(ks[10], (DIM_FCN[1], MAX_DEGREE)),
        'bl': b(ks[11], MAX_DEGREE),
    }


if __name__ == "__main__":
    root = jax.random.PRNGKey(0)
    k_param, k_q, k_o, k_deg, k_gumbel = jax.random.split(root, 5)

    weights = init_weights(k_param)
    packed = pack_params(weights)   # pack once, reuse across calls

    # Batch many requests per pallas_call (perf review): 500 requests, padded
    # to 512 rows -> 4 grid steps of 128 rows each (exercises the padding path).
    BS = 500
    queries = jax.random.randint(k_q, (BS, 1, 1), 0, NUM_NODES)            # (BS,1,1)
    others = jax.random.randint(k_o, (BS, MAX_DEGREE, 1), 0, NUM_NODES)    # (BS,T,1)
    degrees = jax.random.randint(k_deg, (BS,), 1, MAX_DEGREE + 1)
    mask = (jnp.arange(MAX_DEGREE)[None, :] < degrees[:, None]
            ).astype(jnp.float32)[..., None]                               # (BS,T,1)

    output, scores, (emb_dsts, emb_nb, attn_mask) = embedding_spf_forward(
        weights, packed, queries, others, mask, k_gumbel, training=False)
    jax.block_until_ready(output)

    assert output.shape == (BS, MAX_DEGREE)
    assert len(scores) == NUM_HEADS and scores[0].shape == (BS, 1, MAX_DEGREE)

    ref_logits, ref_scores = reference_attention_mlp(weights, emb_dsts, emb_nb, attn_mask)
    # Tolerance covers default (bf16-pass) MXU precision on both sides plus the
    # approximate-reciprocal softmax normalization in the kernel.
    assert jnp.allclose(output, ref_logits, atol=2e-2, rtol=2e-2)
    for h in range(NUM_HEADS):
        assert jnp.allclose(scores[h][:, 0, :], ref_scores[h], atol=2e-2, rtol=2e-2)

    print("KERNEL_OK")
</pallas_src>

<mosaic_0001>
module attributes {stable_mosaic.version = 11 : i64} {
  func.func @_spf_batched_kernel(%arg0: i32, %arg1: memref<128x160xf32, #tpu.memory_space<vmem>>, %arg2: memref<160x784xf32, #tpu.memory_space<vmem>>, %arg3: memref<256x896xf32, #tpu.memory_space<vmem>>, %arg4: memref<128x128xf32, #tpu.memory_space<vmem>>) attributes {dimension_semantics = [#tpu.dimension_semantics<parallel>], iteration_bounds = array<i64: 4>, scalar_prefetch = 0 : i64, scratch_operands = 0 : i64, tpu.core_type = #tpu.core_type<tc>, window_params = [{transform_indices = @transform_0, window_bounds = array<i64: 128, 160>}, {pipeline_mode = #tpu.pipeline_mode<synchronous>, transform_indices = @transform_1, window_bounds = array<i64: 160, 784>}, {pipeline_mode = #tpu.pipeline_mode<synchronous>, transform_indices = @transform_2, window_bounds = array<i64: 256, 896>}, {transform_indices = @transform_3, window_bounds = array<i64: 128, 128>}]} {
    %c0 = arith.constant 0 : index
    %c0_0 = arith.constant 0 : index
    %0 = vector.load %arg1[%c0, %c0_0] : memref<128x160xf32, #tpu.memory_space<vmem>>, vector<128x160xf32>
    %c0_1 = arith.constant 0 : index
    %c0_2 = arith.constant 0 : index
    %1 = vector.load %arg2[%c0_1, %c0_2] : memref<160x784xf32, #tpu.memory_space<vmem>>, vector<160x256xf32>
    %cst = arith.constant dense<0.000000e+00> : vector<128x256xf32>
    %2 = tpu.matmul %0, %1, %cst {dimension_numbers = #tpu.dot_dimension_numbers<[1], [0], [0], [1], [0, 0, 1, 1], [], []>} : vector<128x160xf32>, vector<160x256xf32>, vector<128x256xf32> -> vector<128x256xf32>
    %c0_3 = arith.constant 0 : index
    %c512 = arith.constant 512 : index
    %3 = vector.load %arg2[%c0_3, %c512] : memref<160x784xf32, #tpu.memory_space<vmem>>, vector<160x256xf32>
    %cst_4 = arith.constant dense<0.000000e+00> : vector<128x256xf32>
    %4 = tpu.matmul %0, %3, %cst_4 {dimension_numbers = #tpu.dot_dimension_numbers<[1], [0], [0], [1], [0, 0, 1, 1], [], []>} : vector<128x160xf32>, vector<160x256xf32>, vector<128x256xf32> -> vector<128x256xf32>
    %c0_5 = arith.constant 0 : index
    %c768 = arith.constant 768 : index
    %5 = vector.load %arg2[%c0_5, %c768] : memref<160x784xf32, #tpu.memory_space<vmem>>, vector<160x16xf32>
    %cst_6 = arith.constant dense<0.000000e+00> : vector<128x16xf32>
    %6 = tpu.matmul %0, %5, %cst_6 {dimension_numbers = #tpu.dot_dimension_numbers<[1], [0], [0], [1], [0, 0, 1, 1], [], []>} : vector<128x160xf32>, vector<160x16xf32>, vector<128x16xf32> -> vector<128x16xf32>
    %c0_7 = arith.constant 0 : index
    %c256 = arith.constant 256 : index
    %7 = vector.load %arg3[%c0_7, %c256] : memref<256x896xf32, #tpu.memory_space<vmem>>, vector<256x16xf32>
    %8 = arith.mulf %4, %2 : vector<128x256xf32>
    %cst_8 = arith.constant dense<0.000000e+00> : vector<128x16xf32>
    %9 = tpu.matmul %8, %7, %cst_8 {dimension_numbers = #tpu.dot_dimension_numbers<[1], [0], [0], [1], [0, 0, 1, 1], [], []>} : vector<128x256xf32>, vector<256x16xf32>, vector<128x16xf32> -> vector<128x16xf32>
    %10 = arith.addf %9, %6 : vector<128x16xf32>
    %11 = vector.extract_strided_slice %10 {offsets = [0, 0], sizes = [128, 8], strides = [1, 1]} : vector<128x16xf32> to vector<128x8xf32>
    %cst_9 = arith.constant dense<0xFF800000> : vector<128xf32>
    %12 = vector.multi_reduction <maximumf>, %11, %cst_9 [1] : vector<128x8xf32> to vector<128xf32>
    %13 = vector.shape_cast %12 : vector<128xf32> to vector<128x1xf32>
    %14 = vector.broadcast %13 : vector<128x1xf32> to vector<128x8xf32>
    %15 = arith.subf %11, %14 : vector<128x8xf32>
    %16 = math.exp %15 : vector<128x8xf32>
    %cst_10 = arith.constant dense<0.000000e+00> : vector<128xf32>
    %17 = vector.multi_reduction <add>, %16, %cst_10 [1] : vector<128x8xf32> to vector<128xf32>
    %18 = vector.shape_cast %17 : vector<128xf32> to vector<128x1xf32>
    %19 = tpu.reciprocal %18 {approx = true} : vector<128x1xf32> -> vector<128x1xf32>
    %20 = vector.broadcast %19 : vector<128x1xf32> to vector<128x8xf32>
    %21 = arith.mulf %16, %20 : vector<128x8xf32>
    %22 = vector.extract_strided_slice %10 {offsets = [0, 8], sizes = [128, 8], strides = [1, 1]} : vector<128x16xf32> to vector<128x8xf32>
    %cst_11 = arith.constant dense<0xFF800000> : vector<128xf32>
    %23 = vector.multi_reduction <maximumf>, %22, %cst_11 [1] : vector<128x8xf32> to vector<128xf32>
    %24 = vector.shape_cast %23 : vector<128xf32> to vector<128x1xf32>
    %25 = vector.broadcast %24 : vector<128x1xf32> to vector<128x8xf32>
    %26 = arith.subf %22, %25 : vector<128x8xf32>
    %27 = math.exp %26 : vector<128x8xf32>
    %cst_12 = arith.constant dense<0.000000e+00> : vector<128xf32>
    %28 = vector.multi_reduction <add>, %27, %cst_12 [1] : vector<128x8xf32> to vector<128xf32>
    %29 = vector.shape_cast %28 : vector<128xf32> to vector<128x1xf32>
    %30 = tpu.reciprocal %29 {approx = true} : vector<128x1xf32> -> vector<128x1xf32>
    %31 = vector.broadcast %30 : vector<128x1xf32> to vector<128x8xf32>
    %32 = arith.mulf %27, %31 : vector<128x8xf32>
    %33 = tpu.concatenate %21, %32 in 1 : vector<128x8xf32>, vector<128x8xf32> -> vector<128x16xf32>
    %c0_13 = arith.constant 0 : index
    %c256_14 = arith.constant 256 : index
    %34 = vector.load %arg2[%c0_13, %c256_14] : memref<160x784xf32, #tpu.memory_space<vmem>>, vector<160x256xf32>
    %cst_15 = arith.constant dense<0.000000e+00> : vector<128x256xf32>
    %35 = tpu.matmul %0, %34, %cst_15 {dimension_numbers = #tpu.dot_dimension_numbers<[1], [0], [0], [1], [0, 0, 1, 1], [], []>} : vector<128x160xf32>, vector<160x256xf32>, vector<128x256xf32> -> vector<128x256xf32>
    %c0_16 = arith.constant 0 : index
    %c0_17 = arith.constant 0 : index
    %36 = vector.load %arg3[%c0_16, %c0_17] : memref<256x896xf32, #tpu.memory_space<vmem>>, vector<16x256xf32>
    %c0_18 = arith.constant 0 : index
    %c384 = arith.constant 384 : index
    %37 = vector.load %arg3[%c0_18, %c384] : memref<256x896xf32, #tpu.memory_space<vmem>>, vector<256x32xf32>
    %cst_19 = arith.constant dense<0.000000e+00> : vector<128x256xf32>
    %38 = tpu.matmul %33, %36, %cst_19 {dimension_numbers = #tpu.dot_dimension_numbers<[1], [0], [0], [1], [0, 0, 1, 1], [], []>} : vector<128x16xf32>, vector<16x256xf32>, vector<128x256xf32> -> vector<128x256xf32>
    %39 = arith.mulf %38, %35 : vector<128x256xf32>
    %cst_20 = arith.constant dense<0.000000e+00> : vector<128x32xf32>
    %40 = tpu.matmul %39, %37, %cst_20 {dimension_numbers = #tpu.dot_dimension_numbers<[1], [0], [0], [1], [0, 0, 1, 1], [], []>} : vector<128x256xf32>, vector<256x32xf32>, vector<128x32xf32> -> vector<128x32xf32>
    %c0_21 = arith.constant 0 : index
    %c512_22 = arith.constant 512 : index
    %41 = vector.load %arg3[%c0_21, %c512_22] : memref<256x896xf32, #tpu.memory_space<vmem>>, vector<32x32xf32>
    %c32 = arith.constant 32 : index
    %c512_23 = arith.constant 512 : index
    %42 = vector.load %arg3[%c32, %c512_23] : memref<256x896xf32, #tpu.memory_space<vmem>>, vector<1x32xf32>
    %c0_24 = arith.constant 0 : index
    %c640 = arith.constant 640 : index
    %43 = vector.load %arg3[%c0_24, %c640] : memref<256x896xf32, #tpu.memory_space<vmem>>, vector<32x16xf32>
    %c32_25 = arith.constant 32 : index
    %c640_26 = arith.constant 640 : index
    %44 = vector.load %arg3[%c32_25, %c640_26] : memref<256x896xf32, #tpu.memory_space<vmem>>, vector<1x16xf32>
    %cst_27 = arith.constant dense<0.000000e+00> : vector<128x32xf32>
    %45 = tpu.matmul %40, %41, %cst_27 {dimension_numbers = #tpu.dot_dimension_numbers<[1], [0], [0], [1], [0, 0, 1, 1], [], []>} : vector<128x32xf32>, vector<32x32xf32>, vector<128x32xf32> -> vector<128x32xf32>
    %46 = vector.broadcast %42 : vector<1x32xf32> to vector<128x32xf32>
    %47 = arith.addf %45, %46 : vector<128x32xf32>
    %cst_28 = arith.constant 0.000000e+00 : f32
    %48 = vector.broadcast %cst_28 : f32 to vector<128x32xf32>
    %49 = arith.maximumf %47, %48 : vector<128x32xf32>
    %cst_29 = arith.constant dense<0.000000e+00> : vector<128x16xf32>
    %50 = tpu.matmul %49, %43, %cst_29 {dimension_numbers = #tpu.dot_dimension_numbers<[1], [0], [0], [1], [0, 0, 1, 1], [], []>} : vector<128x32xf32>, vector<32x16xf32>, vector<128x16xf32> -> vector<128x16xf32>
    %51 = vector.broadcast %44 : vector<1x16xf32> to vector<128x16xf32>
    %52 = arith.addf %50, %51 : vector<128x16xf32>
    %cst_30 = arith.constant 0.000000e+00 : f32
    %53 = vector.broadcast %cst_30 : f32 to vector<128x16xf32>
    %54 = arith.maximumf %52, %53 : vector<128x16xf32>
    %c0_31 = arith.constant 0 : index
    %c768_32 = arith.constant 768 : index
    %55 = vector.load %arg3[%c0_31, %c768_32] : memref<256x896xf32, #tpu.memory_space<vmem>>, vector<16x128xf32>
    %c16 = arith.constant 16 : index
    %c768_33 = arith.constant 768 : index
    %56 = vector.load %arg3[%c16, %c768_33] : memref<256x896xf32, #tpu.memory_space<vmem>>, vector<16x128xf32>
    %c32_34 = arith.constant 32 : index
    %c768_35 = arith.constant 768 : index
    %57 = vector.load %arg3[%c32_34, %c768_35] : memref<256x896xf32, #tpu.memory_space<vmem>>, vector<1x128xf32>
    %cst_36 = arith.constant dense<0.000000e+00> : vector<128x128xf32>
    %58 = tpu.matmul %54, %55, %cst_36 {dimension_numbers = #tpu.dot_dimension_numbers<[1], [0], [0], [1], [0, 0, 1, 1], [], []>} : vector<128x16xf32>, vector<16x128xf32>, vector<128x128xf32> -> vector<128x128xf32>
    %cst_37 = arith.constant dense<0.000000e+00> : vector<128x128xf32>
    %59 = tpu.matmul %33, %56, %cst_37 {dimension_numbers = #tpu.dot_dimension_numbers<[1], [0], [0], [1], [0, 0, 1, 1], [], []>} : vector<128x16xf32>, vector<16x128xf32>, vector<128x128xf32> -> vector<128x128xf32>
    %60 = arith.addf %58, %59 : vector<128x128xf32>
    %61 = vector.broadcast %57 : vector<1x128xf32> to vector<128x128xf32>
    %62 = arith.addf %60, %61 : vector<128x128xf32>
    %c0_38 = arith.constant 0 : index
    %c0_39 = arith.constant 0 : index
    %63 = vector.load %arg4[%c0_38, %c0_39] : memref<128x128xf32, #tpu.memory_space<vmem>>, vector<128x128xf32>
    tpu.vector_store %arg4[%c0_38, %c0_39], %62 {strides = array<i32>} : memref<128x128xf32, #tpu.memory_space<vmem>>, vector<128x128xf32>,
    return
  }
  func.func @transform_0(%arg0: i32) -> (i32, i32) {
    %c0_i32 = arith.constant 0 : i32
    %c0_i32_0 = arith.constant 0 : i32
    return %arg0, %c0_i32 : i32, i32
  }
  func.func @transform_1(%arg0: i32) -> (i32, i32) {
    %c0_i32 = arith.constant 0 : i32
    %c0_i32_0 = arith.constant 0 : i32
    %c0_i32_1 = arith.constant 0 : i32
    return %c0_i32, %c0_i32_0 : i32, i32
  }
  func.func @transform_2(%arg0: i32) -> (i32, i32) {
    %c0_i32 = arith.constant 0 : i32
    %c0_i32_0 = arith.constant 0 : i32
    %c0_i32_1 = arith.constant 0 : i32
    return %c0_i32, %c0_i32_0 : i32, i32
  }
  func.func @transform_3(%arg0: i32) -> (i32, i32) {
    %c0_i32 = arith.constant 0 : i32
    %c0_i32_0 = arith.constant 0 : i32
    return %arg0, %c0_i32 : i32, i32
  }
}

</mosaic_0001>

<llo_original>
// kernel: tpu_custom_call.1
$region0: #{tpu_custom_call.1}
  #allocation0 [shape = 'u32[]', space=smem, size = 0x4, offset = 0x4, fixed_abs, tag = 'smem constant byte address 0x4 - core index']
  #allocation1 [shape = 'u32[144,128]{1,0:T(1,128)}', space=vmem, size = 0x12000, scoped, tag = 'internal scratch']
  %s0 = inlined_call_operand.vmem [shape: f32[512,160], index: 0, kind: input, shape index: {}]
  %s1 = inlined_call_operand.vmem [shape: f32[160,784], index: 1, kind: input, shape index: {}]
  %s2 = inlined_call_operand.hbm [shape: f32[256,896], index: 2, kind: input, shape index: {}]
  %s3 = inlined_call_operand.hbm [shape: f32[512,128], index: 3, kind: output, shape index: {}]
  %s4 = sld [smem:[#allocation0]]
  $region49: #{tpu_custom_call.1} parent=0
    _
  %s6 = ssub.s32 1, %s4
  %s7 = scalar_select 0, %s6, %s4
  $region1: #{tpu_custom_call.1} parent=0
    #allocation2 [shape = 'u8[917504]{0}', space=vmem, size = 0xe0000, scoped, tag = 'input window, operand 2, single buffered']
    #allocation3 [shape = 's32[2]{0}', space=sflag, size = 0x8, scoped, tag = 'scoped memory for tpu_custom_call.1']
    #allocation4 [shape = 's32[2]{0}', space=sflag, size = 0x8, scoped, tag = 'scoped memory for tpu_custom_call.1']
    #allocation5 [shape = 'u8[131072]{0}', space=vmem, size = 0x20000, scoped, tag = 'output window, operand 0']
    %8 = vsyncpa [#allocation3], 0
    %9 = vsyncpa [#allocation4], 0
    %s10 = scalar_lea.sflag [#allocation4], 1
    %11 = vsyncpa %s10, 0
    loop: start=0, step=1, limit=6
    $region2: #{tpu_custom_call.1} parent=1 // loop_pre_header
      _
    $region3: #{tpu_custom_call.1} parent=1 // loop_header
      %s13 = sphi 0, %s17
      %p14 = scmp.ge.s32.totalorder %s13, 6
      %s23 = sphi 0, %s25
      %s26 = sphi 0, %s23
      %s27 = sphi 0, %s26
      %s43 = sphi 0, %s27
      %s47 = sphi 0, %s47
      %s49 = sphi 0, %s47
      %s50 = sphi 0, %s49
      %s64 = sphi 0, %s50
      %s68 = sphi 0, %s68
      %s70 = sphi 0, %s68
      %s71 = sphi 0, %s70
      %s85 = sphi 0, %s71
      %s91 = sphi 0, %s93
      %s94 = sphi 0, %s91
      %s95 = sphi 0, %s94
      %s111 = sphi 0, %s95
    $region4: #{tpu_custom_call.1} parent=1 // loop_header_branch
      %16 = sbr.rel (%p14) target = $region8
    $region5: #{tpu_custom_call.1} parent=1 // loop_body
      %s18 = ssub.s32 %s13, 1
      %s19 = ssub.s32 %s13, 2
      %s20 = sadd.s32 %s13, 1
      %s21 = ssub.s32 %s13, %s20
      %p22 = scmp.eq.s32.totalorder %s21, 0
      %s24 = sadd.s32 %s23, 1
      %s25 = scalar_select %p22, %s23, %s24
      %p28 = pneg %p22
      %p29 = scmp.eq.s32.totalorder %s13, 3
      %p30 = por %p28, %p29
      %p31 = scmp.ne.s32.totalorder %s23, %s26
      %p32 = scmp.eq.s32.totalorder %s13, 0
      %p33 = por %p31, %p32
      %p34 = scmp.ne.s32.totalorder %s23, %s26
      %p35 = scmp.eq.s32.totalorder %s18, 3
      %p36 = por %p34, %p35
      %p37 = scmp.ne.s32.totalorder %s26, %s27
      %p38 = scmp.eq.s32.totalorder %s18, 0
      %p39 = por %p37, %p38
      %p40 = scmp.ne.s32.totalorder %s26, %s27
      %p41 = scmp.eq.s32.totalorder %s19, 3
      %p42 = por %p40, %p41
      %p44 = scmp.ne.s32.totalorder %s27, %s43
      %p45 = scmp.eq.s32.totalorder %s19, 0
      %p46 = por %p44, %p45
      %s48 = sadd.s32 %s47, 1
      %p51 = scmp.eq.s32.totalorder %s13, 3
      %p52 = scmp.ne.s32.totalorder %s47, %s49
      %p53 = scmp.eq.s32.totalorder %s13, 0
      %p54 = por %p52, %p53
      %p55 = scmp.ne.s32.totalorder %s47, %s49
      %p56 = scmp.eq.s32.totalorder %s18, 3
      %p57 = por %p55, %p56
      %p58 = scmp.ne.s32.totalorder %s49, %s50
      %p59 = scmp.eq.s32.totalorder %s18, 0
      %p60 = por %p58, %p59
      %p61 = scmp.ne.s32.totalorder %s49, %s50
      %p62 = scmp.eq.s32.totalorder %s19, 3
      %p63 = por %p61, %p62
      %p65 = scmp.ne.s32.totalorder %s50, %s64
      %p66 = scmp.eq.s32.totalorder %s19, 0
      %p67 = por %p65, %p66
      %s69 = sadd.s32 %s68, 1
      %p72 = scmp.eq.s32.totalorder %s13, 3
      %p73 = scmp.ne.s32.totalorder %s68, %s70
      %p74 = scmp.eq.s32.totalorder %s13, 0
      %p75 = por %p73, %p74
      %p76 = scmp.ne.s32.totalorder %s68, %s70
      %p77 = scmp.eq.s32.totalorder %s18, 3
      %p78 = por %p76, %p77
      %p79 = scmp.ne.s32.totalorder %s70, %s71
      %p80 = scmp.eq.s32.totalorder %s18, 0
      %p81 = por %p79, %p80
      %p82 = scmp.ne.s32.totalorder %s70, %s71
      %p83 = scmp.eq.s32.totalorder %s19, 3
      %p84 = por %p82, %p83
      %p86 = scmp.ne.s32.totalorder %s71, %s85
      %p87 = scmp.eq.s32.totalorder %s19, 0
      %p88 = por %p86, %p87
      %s89 = ssub.s32 %s13, %s20
      %p90 = scmp.eq.s32.totalorder %s89, 0
      %s92 = sadd.s32 %s91, 1
      %s93 = scalar_select %p90, %s91, %s92
      %p96 = pneg %p90
      %p97 = scmp.eq.s32.totalorder %s13, 3
      %p98 = por %p96, %p97
      %p99 = scmp.ne.s32.totalorder %s91, %s94
      %p100 = scmp.eq.s32.totalorder %s13, 0
      %p101 = por %p99, %p100
      %p102 = scmp.ne.s32.totalorder %s91, %s94
      %p103 = scmp.eq.s32.totalorder %s18, 3
      %p104 = por %p102, %p103
      %p105 = scmp.ne.s32.totalorder %s94, %s95
      %p106 = scmp.eq.s32.totalorder %s18, 0
      %p107 = por %p105, %p106
      %p108 = scmp.ne.s32.totalorder %s94, %s95
      %p109 = scmp.eq.s32.totalorder %s19, 3
      %p110 = por %p108, %p109
      %p112 = scmp.ne.s32.totalorder %s95, %s111
      %p113 = scmp.eq.s32.totalorder %s19, 0
      %p114 = por %p112, %p113
      %p115 = scmp.le.s32.totalorder 1, %s13
      %p116 = scmp.lt.s32.totalorder %s13, 5
      %p117 = pnand %p115, %p116
      %p118 = pneg %p117
      // Predicated region
      $region9: #{tpu_custom_call.1} parent=5 // pred_check
        _
      $region10: #{tpu_custom_call.1} parent=5 // pred_check_branch
        %120 = sbr.rel (%p117) target = $region12
      $region11: #{tpu_custom_call.1} parent=5 // pred_region
        %s121 = ssub.s32 %s13, 1
        // Predicated region
        $region13: #{tpu_custom_call.1} parent=11 // pred_check
          %p122 = pneg %p60
        $region14: #{tpu_custom_call.1} parent=11 // pred_check_branch
          %124 = sbr.rel (%p122) target = $region16
        $region15: #{tpu_custom_call.1} parent=11 // pred_region
          _
        $region16: #{tpu_custom_call.1} parent=11 // pred_fallthru
          _
        // Predicated region
        $region17: #{tpu_custom_call.1} parent=11 // pred_check
          %p125 = pneg %p81
        $region18: #{tpu_custom_call.1} parent=11 // pred_check_branch
          %127 = sbr.rel (%p125) target = $region20
        $region19: #{tpu_custom_call.1} parent=11 // pred_region
          %s129 = ssub.s32 28672, 28672
          %130 = vsyncadd [#allocation3], %s129
          %s131 = sshll.u32 [#allocation2], 4
          %s132 = int_to_ptr.vmem [resolvable:$true] %s131
          %137 = dma.hbm_to_vmem [thread:$0]  %s2, 28672, %s132, [#allocation3], 896, 896, 56
        $region20: #{tpu_custom_call.1} parent=11 // pred_fallthru
          _
      $region12: #{tpu_custom_call.1} parent=5 // pred_fallthru
        _
      %p138 = scmp.lt.s32.totalorder %s13, 4
      // Predicated region
      $region21: #{tpu_custom_call.1} parent=5 // pred_check
        %p139 = pneg %p138
      $region22: #{tpu_custom_call.1} parent=5 // pred_check_branch
        %141 = sbr.rel (%p139) target = $region24
      $region23: #{tpu_custom_call.1} parent=5 // pred_region
        // Predicated region
        $region25: #{tpu_custom_call.1} parent=23 // pred_check
          %p142 = pneg %p33
        $region26: #{tpu_custom_call.1} parent=23 // pred_check_branch
          %144 = sbr.rel (%p142) target = $region28
        $region27: #{tpu_custom_call.1} parent=23 // pred_region
          %s145 = smul.u32 16, %s13
          %p146 = scmp.lt.s32.totalorder %s145, 63
          %s147 = scalar_select %p146, %s145, 63
          %s148 = smul.addr %s147, 2
          %s149 = smul.addr %s148, 8
          %s150 = scalar_lea.vmem %s0, %s149
          %s151 = smul.u32 16, %s13
        $region28: #{tpu_custom_call.1} parent=23 // pred_fallthru
          _
      $region24: #{tpu_custom_call.1} parent=5 // pred_fallthru
        _
      %p152 = scmp.le.s32.totalorder 1, %s13
      %p153 = scmp.lt.s32.totalorder %s13, 5
      %p154 = pnand %p152, %p153
      %p155 = pneg %p154
      // Predicated region
      $region29: #{tpu_custom_call.1} parent=5 // pred_check
        _
      $region30: #{tpu_custom_call.1} parent=5 // pred_check_branch
        %157 = sbr.rel (%p154) target = $region32
      $region31: #{tpu_custom_call.1} parent=5 // pred_region
        %s158 = ssub.s32 %s13, 1
        // Predicated region
        $region33: #{tpu_custom_call.1} parent=31 // pred_check
          %p159 = pneg %p81
        $region34: #{tpu_custom_call.1} parent=31 // pred_check_branch
          %161 = sbr.rel (%p159) target = $region36
        $region35: #{tpu_custom_call.1} parent=31 // pred_region
          %162 = dma.done [#allocation3], 28672
        $region36: #{tpu_custom_call.1} parent=31 // pred_fallthru
          _
        %s163 = smul.u32 16, %s18
        %p164 = scmp.lt.s32.totalorder %s163, 63
        %s165 = scalar_select %p164, %s163, 63
        %s166 = smul.addr %s165, 2
        %s167 = smul.addr %s166, 8
        %s168 = scalar_lea.vmem %s0, %s167
        %p169 = pneg %p39
        %p170 = pneg %p36
        %p171 = pneg %p60
        %p172 = pneg %p57
        %p173 = pneg %p81
        %p174 = pneg %p78
        %p175 = pneg %p107
        %p176 = pneg %p104
        %s177 = sand.u32 %s94, 1
        %s178 = scalar_lea.sflag [#allocation4], %s177
        %s179 = sand.u32 %s94, 1
        %s180 = smul.addr %s179, 128
        %s181 = scalar_lea.vmem [#allocation5], %s180
        %s182 = smul.u32 16, %s18
        %p183 = scmp.lt.s32.totalorder %s182, 63
        %s184 = scalar_select %p183, %s182, 63
        %s185 = smul.addr %s184, 2
        %s186 = smul.addr %s185, 8
        %s187 = scalar_lea.vmem %s0, %s186
        %s188 = smul.u32 16, %s18
        %s189 = smul.u32 16, %s18
        %v190 = vld [vmem:[%s187] sm:$0xff]
        %v191 = vld [vmem:[%s187 + $0x8] sm:$0xff]
        %v192 = vld [vmem:[%s187 + $0x10] sm:$0xff]
        %v193 = vld [vmem:[%s187 + $0x18] sm:$0xff]
        %v194 = vld [vmem:[%s187 + $0x20] sm:$0xff]
        %v195 = vld [vmem:[%s187 + $0x28] sm:$0xff]
        %v196 = vld [vmem:[%s187 + $0x30] sm:$0xff]
        %v197 = vld [vmem:[%s187 + $0x38] sm:$0xff]
        %v198 = vld [vmem:[%s187 + $0x40] sm:$0xff]
        %v199 = vld [vmem:[%s187 + $0x48] sm:$0xff]
        %v200 = vld [vmem:[%s187 + $0x50] sm:$0xff]
        %v201 = vld [vmem:[%s187 + $0x58] sm:$0xff]
        %v202 = vld [vmem:[%s187 + $0x60] sm:$0xff]
        %v203 = vld [vmem:[%s187 + $0x68] sm:$0xff]
        %v204 = vld [vmem:[%s187 + $0x70] sm:$0xff]
        %v205 = vld [vmem:[%s187 + $0x78] sm:$0xff]
        %v206 = vld [vmem:[%s187 + $0x80] sm:$0xff]
        %v207 = vld [vmem:[%s187 + $0x88] sm:$0xff]
        %v208 = vld [vmem:[%s187 + $0x90] sm:$0xff]
        %v209 = vld [vmem:[%s187 + $0x98] sm:$0xff]
        %v210 = vld [vmem:[%s187 + $0xa0] sm:$0xff]
        %v211 = vld [vmem:[%s187 + $0xa8] sm:$0xff]
        %v212 = vld [vmem:[%s187 + $0xb0] sm:$0xff]
        %v213 = vld [vmem:[%s187 + $0xb8] sm:$0xff]
        %v214 = vld [vmem:[%s187 + $0xc0] sm:$0xff]
        %v215 = vld [vmem:[%s187 + $0xc8] sm:$0xff]
        %v216 = vld [vmem:[%s187 + $0xd0] sm:$0xff]
        %v217 = vld [vmem:[%s187 + $0xd8] sm:$0xff]
        %v218 = vld [vmem:[%s187 + $0xe0] sm:$0xff]
        %v219 = vld [vmem:[%s187 + $0xe8] sm:$0xff]
        %v220 = vld [vmem:[%s187 + $0xf0] sm:$0xff]
        %v221 = vld [vmem:[%s187 + $0xf8] sm:$0xff]
        %v222 = vld [vmem:[%s1] sm:$0xff]
        %v223 = vld [vmem:[%s1 + $0x8] sm:$0xff]
        %v224 = vld [vmem:[%s1 + $0x38] sm:$0xff]
        %v225 = vld [vmem:[%s1 + $0x40] sm:$0xff]
        %v226 = vld [vmem:[%s1 + $0x70] sm:$0xff]
        %v227 = vld [vmem:[%s1 + $0x78] sm:$0xff]
        %v228 = vld [vmem:[%s1 + $0xa8] sm:$0xff]
        %v229 = vld [vmem:[%s1 + $0xb0] sm:$0xff]
        %v230 = vld [vmem:[%s1 + $0xe0] sm:$0xff]
        %v231 = vld [vmem:[%s1 + $0xe8] sm:$0xff]
        %v232 = vld [vmem:[%s1 + $0x118] sm:$0xff]
        %v233 = vld [vmem:[%s1 + $0x120] sm:$0xff]
        %v234 = vld [vmem:[%s1 + $0x150] sm:$0xff]
        %v235 = vld [vmem:[%s1 + $0x158] sm:$0xff]
        %v236 = vld [vmem:[%s1 + $0x188] sm:$0xff]
        %v237 = vld [vmem:[%s1 + $0x190] sm:$0xff]
        %v238 = vld [vmem:[%s1 + $0x1c0] sm:$0xff]
        %v239 = vld [vmem:[%s1 + $0x1c8] sm:$0xff]
        %v240 = vld [vmem:[%s1 + $0x1f8] sm:$0xff]
        %v241 = vld [vmem:[%s1 + $0x200] sm:$0xff]
        %v242 = vld [vmem:[%s1 + $0x230] sm:$0xff]
        %v243 = vld [vmem:[%s1 + $0x238] sm:$0xff]
        %v244 = vld [vmem:[%s1 + $0x268] sm:$0xff]
        %v245 = vld [vmem:[%s1 + $0x270] sm:$0xff]
        %v246 = vld [vmem:[%s1 + $0x2a0] sm:$0xff]
        %v247 = vld [vmem:[%s1 + $0x2a8] sm:$0xff]
        %v248 = vld [vmem:[%s1 + $0x2d8] sm:$0xff]
        %v249 = vld [vmem:[%s1 + $0x2e0] sm:$0xff]
        %v250 = vld [vmem:[%s1 + $0x310] sm:$0xff]
        %v251 = vld [vmem:[%s1 + $0x318] sm:$0xff]
        %v252 = vld [vmem:[%s1 + $0x348] sm:$0xff]
        %v253 = vld [vmem:[%s1 + $0x350] sm:$0xff]
        %v254 = vld [vmem:[%s1 + $0x380] sm:$0xff]
        %v255 = vld [vmem:[%s1 + $0x388] sm:$0xff]
        %v256 = vld [vmem:[%s1 + $0x3b8] sm:$0xff]
        %v257 = vld [vmem:[%s1 + $0x3c0] sm:$0xff]
        %v258 = vld [vmem:[%s1 + $0x3f0] sm:$0xff]
        %v259 = vld [vmem:[%s1 + $0x3f8] sm:$0xff]
        %v260 = vld [vmem:[%s1 + $0x428] sm:$0xff]
        %v261 = vld [vmem:[%s1 + $0x430] sm:$0xff]
        %vm262 = vcmask 261120
        %v264 = vsel %vm262, %v191, 0
        %v267 = vsel %vm262, %v193, 0
        %v270 = vsel %vm262, %v195, 0
        %v273 = vsel %vm262, %v197, 0
        %v276 = vsel %vm262, %v199, 0
        %v279 = vsel %vm262, %v201, 0
        %v282 = vsel %vm262, %v203, 0
        %v285 = vsel %vm262, %v205, 0
        %v288 = vsel %vm262, %v207, 0
        %v291 = vsel %vm262, %v209, 0
        %v294 = vsel %vm262, %v211, 0
        %v297 = vsel %vm262, %v213, 0
        %v300 = vsel %vm262, %v215, 0
        %v303 = vsel %vm262, %v217, 0
        %v306 = vsel %vm262, %v219, 0
        %v309 = vsel %vm262, %v221, 0
        %311 = vmatprep.subr.mxu0 %v223
        %312 = vmatpush1.msra.mxu0 %v222
        %313 = vmatprep.subr.mxu0 %v225
        %314 = vmatpush1.msra.mxu0 %v224
        %315 = vmatprep.subr.mxu0 %v227
        %316 = vmatpush1.msra.mxu0 %v226
        %317 = vmatprep.subr.mxu0 %v229
        %318 = vmatpush1.msra.mxu0 %v228
        %319 = vmatprep.subr.mxu0 %v231
        %320 = vmatpush1.msra.mxu0 %v230
        %321 = vmatprep.subr.mxu0 %v233
        %322 = vmatpush1.msra.mxu0 %v232
        %323 = vmatprep.subr.mxu0 %v235
        %324 = vmatpush1.msra.mxu0 %v234
        %325 = vmatprep.subr.mxu0 %v237
        %326 = vmatpush1.msra.mxu0 %v236
        %327 = vmatprep.subr.mxu0 %v239
        %328 = vmatpush1.msra.mxu0 %v238
        %329 = vmatprep.subr.mxu0 %v241
        %330 = vmatpush1.msra.mxu0 %v240
        %331 = vmatprep.subr.mxu0 %v243
        %332 = vmatpush1.msra.mxu0 %v242
        %333 = vmatprep.subr.mxu0 %v245
        %334 = vmatpush1.msra.mxu0 %v244
        %335 = vmatprep.subr.mxu0 %v247
        %336 = vmatpush1.msra.mxu0 %v246
        %337 = vmatprep.subr.mxu0 %v249
        %338 = vmatpush1.msra.mxu0 %v248
        %339 = vmatprep.subr.mxu0 %v251
        %340 = vmatpush1.msra.mxu0 %v250
        %341 = vmatprep.subr.mxu0 %v253
        %342 = vmatpush1.msra.mxu0 %v252
        %343 = vmatprep.subr.mxu0 %v255
        %344 = vmatpush1.msra.mxu0 %v254
        %345 = vmatprep.subr.mxu0 %v257
        %346 = vmatpush1.msra.mxu0 %v256
        %347 = vmatprep.subr.mxu0 %v259
        %348 = vmatpush1.msra.mxu0 %v258
        %349 = vmatprep.subr.mxu0 %v261
        %350 = vmatpush1.msra.mxu0 %v260
        %351 = vmatprep.subr.mxu0 0.0
        %352 = vmatpush1.msra.mxu0 0.0
        %353 = vmatprep.subr.mxu0 0.0
        %354 = vmatpush1.msra.mxu0 0.0
        %355 = vmatprep.subr.mxu0 0.0
        %356 = vmatpush1.msra.mxu0 0.0
        %357 = vmatprep.subr.mxu0 0.0
        %358 = vmatpush1.msra.mxu0 0.0
        %359 = vmatprep.subr.mxu0 0.0
        %360 = vmatpush1.msra.mxu0 0.0
        %361 = vmatprep.subr.mxu0 0.0
        %362 = vmatpush1.msra.mxu0 0.0
        %363 = vmatprep.subr.mxu0 0.0
        %364 = vmatpush1.msra.mxu0 0.0
        %365 = vmatprep.subr.mxu0 0.0
        %366 = vmatpush1.msra.mxu0 0.0
        %367 = vmatprep.subr.mxu0 0.0
        %368 = vmatpush1.msra.mxu0 0.0
        %369 = vmatprep.subr.mxu0 0.0
        %370 = vmatpush1.msra.mxu0 0.0
        %371 = vmatprep.subr.mxu0 0.0
        %372 = vmatpush1.msra.mxu0 0.0
        %373 = vmatprep.subr.mxu0 0.0
        %374 = vmatpush1.msra.mxu0 0.0
        %375 = vmatprep.mubr.f32.mxu0 %v264
        %376 = vmatmul.mubr.f32.gmra.mrb[0].mxu0 %v190
        %v377 = vpop.f32.mrb[0].mxu0
        %v378 = vadd.f32 0.0, %v377
        %v379 = vpop.f32.mrb[0].mxu0
        %v380 = vadd.f32 0.0, %v379
        %381 = vmatprep.mubr.f32.mxu0 %v267
        %382 = vmatmul.mubr.f32.gmra.mrb[0].mxu0 %v192
        %v383 = vpop.f32.mrb[0].mxu0
        %v384 = vadd.f32 0.0, %v383
        %v385 = vpop.f32.mrb[0].mxu0
        %v386 = vadd.f32 0.0, %v385
        %387 = vmatprep.mubr.f32.mxu0 %v270
        %388 = vmatmul.mubr.f32.gmra.mrb[0].mxu0 %v194
        %v389 = vpop.f32.mrb[0].mxu0
        %v390 = vadd.f32 0.0, %v389
        %v391 = vpop.f32.mrb[0].mxu0
        %v392 = vadd.f32 0.0, %v391
        %393 = vmatprep.mubr.f32.mxu0 %v273
        %394 = vmatmul.mubr.f32.gmra.mrb[0].mxu0 %v196
        %v395 = vpop.f32.mrb[0].mxu0
        %v396 = vadd.f32 0.0, %v395
        %v397 = vpop.f32.mrb[0].mxu0
        %v398 = vadd.f32 0.0, %v397
        %399 = vmatprep.mubr.f32.mxu0 %v276
        %400 = vmatmul.mubr.f32.gmra.mrb[0].mxu0 %v198
        %v401 = vpop.f32.mrb[0].mxu0
        %v402 = vadd.f32 0.0, %v401
        %v403 = vpop.f32.mrb[0].mxu0
        %v404 = vadd.f32 0.0, %v403
        %405 = vmatprep.mubr.f32.mxu0 %v279
        %406 = vmatmul.mubr.f32.gmra.mrb[0].mxu0 %v200
        %v407 = vpop.f32.mrb[0].mxu0
        %v408 = vadd.f32 0.0, %v407
        %v409 = vpop.f32.mrb[0].mxu0
        %v410 = vadd.f32 0.0, %v409
        %411 = vmatprep.mubr.f32.mxu0 %v282
        %412 = vmatmul.mubr.f32.gmra.mrb[0].mxu0 %v202
        %v413 = vpop.f32.mrb[0].mxu0
        %v414 = vadd.f32 0.0, %v413
        %v415 = vpop.f32.mrb[0].mxu0
        %v416 = vadd.f32 0.0, %v415
        %417 = vmatprep.mubr.f32.mxu0 %v285
        %418 = vmatmul.mubr.f32.gmra.mrb[0].mxu0 %v204
        %v419 = vpop.f32.mrb[0].mxu0
        %v420 = vadd.f32 0.0, %v419
        %v421 = vpop.f32.mrb[0].mxu0
        %v422 = vadd.f32 0.0, %v421
        %423 = vmatprep.mubr.f32.mxu0 %v288
        %424 = vmatmul.mubr.f32.gmra.mrb[0].mxu0 %v206
        %v425 = vpop.f32.mrb[0].mxu0
        %v426 = vadd.f32 0.0, %v425
        %v427 = vpop.f32.mrb[0].mxu0
        %v428 = vadd.f32 0.0, %v427
        %429 = vmatprep.mubr.f32.mxu0 %v291
        %430 = vmatmul.mubr.f32.gmra.mrb[0].mxu0 %v208
        %v431 = vpop.f32.mrb[0].mxu0
        %v432 = vadd.f32 0.0, %v431
        %v433 = vpop.f32.mrb[0].mxu0
        %v434 = vadd.f32 0.0, %v433
        %435 = vmatprep.mubr.f32.mxu0 %v294
        %436 = vmatmul.mubr.f32.gmra.mrb[0].mxu0 %v210
        %v437 = vpop.f32.mrb[0].mxu0
        %v438 = vadd.f32 0.0, %v437
        %v439 = vpop.f32.mrb[0].mxu0
        %v440 = vadd.f32 0.0, %v439
        %441 = vmatprep.mubr.f32.mxu0 %v297
        %442 = vmatmul.mubr.f32.gmra.mrb[0].mxu0 %v212
        %v443 = vpop.f32.mrb[0].mxu0
        %v444 = vadd.f32 0.0, %v443
        %v445 = vpop.f32.mrb[0].mxu0
        %v446 = vadd.f32 0.0, %v445
        %447 = vmatprep.mubr.f32.mxu0 %v300
        %448 = vmatmul.mubr.f32.gmra.mrb[0].mxu0 %v214
        %v449 = vpop.f32.mrb[0].mxu0
        %v450 = vadd.f32 0.0, %v449
        %v451 = vpop.f32.mrb[0].mxu0
        %v452 = vadd.f32 0.0, %v451
        %453 = vmatprep.mubr.f32.mxu0 %v303
        %454 = vmatmul.mubr.f32.gmra.mrb[0].mxu0 %v216
        %v455 = vpop.f32.mrb[0].mxu0
        %v456 = vadd.f32 0.0, %v455
        %v457 = vpop.f32.mrb[0].mxu0
        %v458 = vadd.f32 0.0, %v457
        %459 = vmatprep.mubr.f32.mxu0 %v306
        %460 = vmatmul.mubr.f32.gmra.mrb[0].mxu0 %v218
        %v461 = vpop.f32.mrb[0].mxu0
        %v462 = vadd.f32 0.0, %v461
        %v463 = vpop.f32.mrb[0].mxu0
        %v464 = vadd.f32 0.0, %v463
        %465 = vmatprep.mubr.f32.mxu0 %v309
        %466 = vmatmul.mubr.f32.gmra.mrb[0].mxu0 %v220
        %v467 = vpop.f32.mrb[0].mxu0
        %v468 = vadd.f32 0.0, %v467
        %v469 = vpop.f32.mrb[0].mxu0
        %v470 = vadd.f32 0.0, %v469
        %471 = vdwg.mxu0
        %v472 = vld [vmem:[%s1 + $0x20] sm:$0xff]
        %v473 = vld [vmem:[%s1 + $0x28] sm:$0xff]
        %v474 = vld [vmem:[%s1 + $0x58] sm:$0xff]
        %v475 = vld [vmem:[%s1 + $0x60] sm:$0xff]
        %v476 = vld [vmem:[%s1 + $0x90] sm:$0xff]
        %v477 = vld [vmem:[%s1 + $0x98] sm:$0xff]
        %v478 = vld [vmem:[%s1 + $0xc8] sm:$0xff]
        %v479 = vld [vmem:[%s1 + $0xd0] sm:$0xff]
        %v480 = vld [vmem:[%s1 + $0x100] sm:$0xff]
        %v481 = vld [vmem:[%s1 + $0x108] sm:$0xff]
        %v482 = vld [vmem:[%s1 + $0x138] sm:$0xff]
        %v483 = vld [vmem:[%s1 + $0x140] sm:$0xff]
        %v484 = vld [vmem:[%s1 + $0x170] sm:$0xff]
        %v485 = vld [vmem:[%s1 + $0x178] sm:$0xff]
        %v486 = vld [vmem:[%s1 + $0x1a8] sm:$0xff]
        %v487 = vld [vmem:[%s1 + $0x1b0] sm:$0xff]
        %v488 = vld [vmem:[%s1 + $0x1e0] sm:$0xff]
        %v489 = vld [vmem:[%s1 + $0x1e8] sm:$0xff]
        %v490 = vld [vmem:[%s1 + $0x218] sm:$0xff]
        %v491 = vld [vmem:[%s1 + $0x220] sm:$0xff]
        %v492 = vld [vmem:[%s1 + $0x250] sm:$0xff]
        %v493 = vld [vmem:[%s1 + $0x258] sm:$0xff]
        %v494 = vld [vmem:[%s1 + $0x288] sm:$0xff]
        %v495 = vld [vmem:[%s1 + $0x290] sm:$0xff]
        %v496 = vld [vmem:[%s1 + $0x2c0] sm:$0xff]
        %v497 = vld [vmem:[%s1 + $0x2c8] sm:$0xff]
        %v498 = vld [vmem:[%s1 + $0x2f8] sm:$0xff]
        %v499 = vld [vmem:[%s1 + $0x300] sm:$0xff]
        %v500 = vld [vmem:[%s1 + $0x330] sm:$0xff]
        %v501 = vld [vmem:[%s1 + $0x338] sm:$0xff]
        %v502 = vld [vmem:[%s1 + $0x368] sm:$0xff]
        %v503 = vld [vmem:[%s1 + $0x370] sm:$0xff]
        %v504 = vld [vmem:[%s1 + $0x3a0] sm:$0xff]
        %v505 = vld [vmem:[%s1 + $0x3a8] sm:$0xff]
        %v506 = vld [vmem:[%s1 + $0x3d8] sm:$0xff]
        %v507 = vld [vmem:[%s1 + $0x3e0] sm:$0xff]
        %v508 = vld [vmem:[%s1 + $0x410] sm:$0xff]
        %v509 = vld [vmem:[%s1 + $0x418] sm:$0xff]
        %v510 = vld [vmem:[%s1 + $0x448] sm:$0xff]
        %v511 = vld [vmem:[%s1 + $0x450] sm:$0xff]
        %512 = vmatprep.subr.mxu0 %v473
        %513 = vmatpush1.msra.mxu0 %v472
        %514 = vmatprep.subr.mxu0 %v475
        %515 = vmatpush1.msra.mxu0 %v474
        %516 = vmatprep.subr.mxu0 %v477
        %517 = vmatpush1.msra.mxu0 %v476
        %518 = vmatprep.subr.mxu0 %v479
        %519 = vmatpush1.msra.mxu0 %v478
        %520 = vmatprep.subr.mxu0 %v481
        %521 = vmatpush1.msra.mxu0 %v480
        %522 = vmatprep.subr.mxu0 %v483
        %523 = vmatpush1.msra.mxu0 %v482
        %524 = vmatprep.subr.mxu0 %v485
        %525 = vmatpush1.msra.mxu0 %v484
        %526 = vmatprep.subr.mxu0 %v487
        %527 = vmatpush1.msra.mxu0 %v486
        %528 = vmatprep.subr.mxu0 %v489
        %529 = vmatpush1.msra.mxu0 %v488
        %530 = vmatprep.subr.mxu0 %v491
        %531 = vmatpush1.msra.mxu0 %v490
        %532 = vmatprep.subr.mxu0 %v493
        %533 = vmatpush1.msra.mxu0 %v492
        %534 = vmatprep.subr.mxu0 %v495
        %535 = vmatpush1.msra.mxu0 %v494
        %536 = vmatprep.subr.mxu0 %v497
        %537 = vmatpush1.msra.mxu0 %v496
        %538 = vmatprep.subr.mxu0 %v499
        %539 = vmatpush1.msra.mxu0 %v498
        %540 = vmatprep.subr.mxu0 %v501
        %541 = vmatpush1.msra.mxu0 %v500
        %542 = vmatprep.subr.mxu0 %v503
        %543 = vmatpush1.msra.mxu0 %v502
        %544 = vmatprep.subr.mxu0 %v505
        %545 = vmatpush1.msra.mxu0 %v504
        %546 = vmatprep.subr.mxu0 %v507
        %547 = vmatpush1.msra.mxu0 %v506
        %548 = vmatprep.subr.mxu0 %v509
        %549 = vmatpush1.msra.mxu0 %v508
        %550 = vmatprep.subr.mxu0 %v511
        %551 = vmatpush1.msra.mxu0 %v510
        %552 = vmatprep.subr.mxu0 0.0
        %553 = vmatpush1.msra.mxu0 0.0
        %554 = vmatprep.subr.mxu0 0.0
        %555 = vmatpush1.msra.mxu0 0.0
        %556 = vmatprep.subr.mxu0 0.0
        %557 = vmatpush1.msra.mxu0 0.0
        %558 = vmatprep.subr.mxu0 0.0
        %559 = vmatpush1.msra.mxu0 0.0
        %560 = vmatprep.subr.mxu0 0.0
        %561 = vmatpush1.msra.mxu0 0.0
        %562 = vmatprep.subr.mxu0 0.0
        %563 = vmatpush1.msra.mxu0 0.0
        %564 = vmatprep.subr.mxu0 0.0
        %565 = vmatpush1.msra.mxu0 0.0
        %566 = vmatprep.subr.mxu0 0.0
        %567 = vmatpush1.msra.mxu0 0.0
        %568 = vmatprep.subr.mxu0 0.0
        %569 = vmatpush1.msra.mxu0 0.0
        %570 = vmatprep.subr.mxu0 0.0
        %571 = vmatpush1.msra.mxu0 0.0
        %572 = vmatprep.subr.mxu0 0.0
        %573 = vmatpush1.msra.mxu0 0.0
        %574 = vmatprep.subr.mxu0 0.0
        %575 = vmatpush1.msra.mxu0 0.0
        %576 = vmatprep.mubr.f32.mxu0 %v264
        %577 = vmatmul.mubr.f32.gmra.mrb[0].mxu0 %v190
        %v578 = vpop.f32.mrb[0].mxu0
        %v579 = vadd.f32 0.0, %v578
        %v580 = vpop.f32.mrb[0].mxu0
        %v581 = vadd.f32 0.0, %v580
        %582 = vmatprep.mubr.f32.mxu0 %v267
        %583 = vmatmul.mubr.f32.gmra.mrb[0].mxu0 %v192
        %v584 = vpop.f32.mrb[0].mxu0
        %v585 = vadd.f32 0.0, %v584
        %v586 = vpop.f32.mrb[0].mxu0
        %v587 = vadd.f32 0.0, %v586
        %588 = vmatprep.mubr.f32.mxu0 %v270
        %589 = vmatmul.mubr.f32.gmra.mrb[0].mxu0 %v194
        %v590 = vpop.f32.mrb[0].mxu0
        %v591 = vadd.f32 0.0, %v590
        %v592 = vpop.f32.mrb[0].mxu0
        %v593 = vadd.f32 0.0, %v592
        %594 = vmatprep.mubr.f32.mxu0 %v273
        %595 = vmatmul.mubr.f32.gmra.mrb[0].mxu0 %v196
        %v596 = vpop.f32.mrb[0].mxu0
        %v597 = vadd.f32 0.0, %v596
        %v598 = vpop.f32.mrb[0].mxu0
        %v599 = vadd.f32 0.0, %v598
        %600 = vmatprep.mubr.f32.mxu0 %v276
        %601 = vmatmul.mubr.f32.gmra.mrb[0].mxu0 %v198
        %v602 = vpop.f32.mrb[0].mxu0
        %v603 = vadd.f32 0.0, %v602
        %v604 = vpop.f32.mrb[0].mxu0
        %v605 = vadd.f32 0.0, %v604
        %606 = vmatprep.mubr.f32.mxu0 %v279
        %607 = vmatmul.mubr.f32.gmra.mrb[0].mxu0 %v200
        %v608 = vpop.f32.mrb[0].mxu0
        %v609 = vadd.f32 0.0, %v608
        %v610 = vpop.f32.mrb[0].mxu0
        %v611 = vadd.f32 0.0, %v610
        %612 = vmatprep.mubr.f32.mxu0 %v282
        %613 = vmatmul.mubr.f32.gmra.mrb[0].mxu0 %v202
        %v614 = vpop.f32.mrb[0].mxu0
        %v615 = vadd.f32 0.0, %v614
        %v616 = vpop.f32.mrb[0].mxu0
        %v617 = vadd.f32 0.0, %v616
        %618 = vmatprep.mubr.f32.mxu0 %v285
        %619 = vmatmul.mubr.f32.gmra.mrb[0].mxu0 %v204
        %v620 = vpop.f32.mrb[0].mxu0
        %v621 = vadd.f32 0.0, %v620
        %v622 = vpop.f32.mrb[0].mxu0
        %v623 = vadd.f32 0.0, %v622
        %624 = vmatprep.mubr.f32.mxu0 %v288
        %625 = vmatmul.mubr.f32.gmra.mrb[0].mxu0 %v206
        %v626 = vpop.f32.mrb[0].mxu0
        %v627 = vadd.f32 0.0, %v626
        %v628 = vpop.f32.mrb[0].mxu0
        %v629 = vadd.f32 0.0, %v628
        %630 = vmatprep.mubr.f32.mxu0 %v291
        %631 = vmatmul.mubr.f32.gmra.mrb[0].mxu0 %v208
        %v632 = vpop.f32.mrb[0].mxu0
        %v633 = vadd.f32 0.0, %v632
        %v634 = vpop.f32.mrb[0].mxu0
        %v635 = vadd.f32 0.0, %v634
        %636 = vmatprep.mubr.f32.mxu0 %v294
        %637 = vmatmul.mubr.f32.gmra.mrb[0].mxu0 %v210
        %v638 = vpop.f32.mrb[0].mxu0
        %v639 = vadd.f32 0.0, %v638
        %v640 = vpop.f32.mrb[0].mxu0
        %v641 = vadd.f32 0.0, %v640
        %642 = vmatprep.mubr.f32.mxu0 %v297
        %643 = vmatmul.mubr.f32.gmra.mrb[0].mxu0 %v212
        %v644 = vpop.f32.mrb[0].mxu0
        %v645 = vadd.f32 0.0, %v644
        %v646 = vpop.f32.mrb[0].mxu0
        %v647 = vadd.f32 0.0, %v646
        %648 = vmatprep.mubr.f32.mxu0 %v300
        %649 = vmatmul.mubr.f32.gmra.mrb[0].mxu0 %v214
        %v650 = vpop.f32.mrb[0].mxu0
        %v651 = vadd.f32 0.0, %v650
        %v652 = vpop.f32.mrb[0].mxu0
        %v653 = vadd.f32 0.0, %v652
        %654 = vmatprep.mubr.f32.mxu0 %v303
        %655 = vmatmul.mubr.f32.gmra.mrb[0].mxu0 %v216
        %v656 = vpop.f32.mrb[0].mxu0
        %v657 = vadd.f32 0.0, %v656
        %v658 = vpop.f32.mrb[0].mxu0
        %v659 = vadd.f32 0.0, %v658
        %660 = vmatprep.mubr.f32.mxu0 %v306
        %661 = vmatmul.mubr.f32.gmra.mrb[0].mxu0 %v218
        %v662 = vpop.f32.mrb[0].mxu0
        %v663 = vadd.f32 0.0, %v662
        %v664 = vpop.f32.mrb[0].mxu0
        %v665 = vadd.f32 0.0, %v664
        %666 = vmatprep.mubr.f32.mxu0 %v309
        %667 = vmatmul.mubr.f32.gmra.mrb[0].mxu0 %v220
        %v668 = vpop.f32.mrb[0].mxu0
        %v669 = vadd.f32 0.0, %v668
        %v670 = vpop.f32.mrb[0].mxu0
        %v671 = vadd.f32 0.0, %v670
        %672 = vdwg.mxu0
        %v673 = vld [vmem:[%s1 + $0x30] sm:$0xff]
        %v674 = vld [vmem:[%s1 + $0x68] sm:$0xff]
        %v675 = vld [vmem:[%s1 + $0xa0] sm:$0xff]
        %v676 = vld [vmem:[%s1 + $0xd8] sm:$0xff]
        %v677 = vld [vmem:[%s1 + $0x110] sm:$0xff]
        %v678 = vld [vmem:[%s1 + $0x148] sm:$0xff]
        %v679 = vld [vmem:[%s1 + $0x180] sm:$0xff]
        %v680 = vld [vmem:[%s1 + $0x1b8] sm:$0xff]
        %v681 = vld [vmem:[%s1 + $0x1f0] sm:$0xff]
        %v682 = vld [vmem:[%s1 + $0x228] sm:$0xff]
        %v683 = vld [vmem:[%s1 + $0x260] sm:$0xff]
        %v684 = vld [vmem:[%s1 + $0x298] sm:$0xff]
        %v685 = vld [vmem:[%s1 + $0x2d0] sm:$0xff]
        %v686 = vld [vmem:[%s1 + $0x308] sm:$0xff]
        %v687 = vld [vmem:[%s1 + $0x340] sm:$0xff]
        %v688 = vld [vmem:[%s1 + $0x378] sm:$0xff]
        %v689 = vld [vmem:[%s1 + $0x3b0] sm:$0xff]
        %v690 = vld [vmem:[%s1 + $0x3e8] sm:$0xff]
        %v691 = vld [vmem:[%s1 + $0x420] sm:$0xff]
        %v692 = vld [vmem:[%s1 + $0x458] sm:$0xff]
        %693 = vmatprep.subr.mxu0 0.0
        %694 = vmatpush1.msra.mxu0 %v673
        %695 = vmatprep.subr.mxu0 0.0
        %696 = vmatpush1.msra.mxu0 %v674
        %697 = vmatprep.subr.mxu0 0.0
        %698 = vmatpush1.msra.mxu0 %v675
        %699 = vmatprep.subr.mxu0 0.0
        %700 = vmatpush1.msra.mxu0 %v676
        %701 = vmatprep.subr.mxu0 0.0
        %702 = vmatpush1.msra.mxu0 %v677
        %703 = vmatprep.subr.mxu0 0.0
        %704 = vmatpush1.msra.mxu0 %v678
        %705 = vmatprep.subr.mxu0 0.0
        %706 = vmatpush1.msra.mxu0 %v679
        %707 = vmatprep.subr.mxu0 0.0
        %708 = vmatpush1.msra.mxu0 %v680
        %709 = vmatprep.subr.mxu0 0.0
        %710 = vmatpush1.msra.mxu0 %v681
        %711 = vmatprep.subr.mxu0 0.0
        %712 = vmatpush1.msra.mxu0 %v682
        %713 = vmatprep.subr.mxu0 0.0
        %714 = vmatpush1.msra.mxu0 %v683
        %715 = vmatprep.subr.mxu0 0.0
        %716 = vmatpush1.msra.mxu0 %v684
        %717 = vmatprep.subr.mxu0 0.0
        %718 = vmatpush1.msra.mxu0 %v685
        %719 = vmatprep.subr.mxu0 0.0
        %720 = vmatpush1.msra.mxu0 %v686
        %721 = vmatprep.subr.mxu0 0.0
        %722 = vmatpush1.msra.mxu0 %v687
        %723 = vmatprep.subr.mxu0 0.0
        %724 = vmatpush1.msra.mxu0 %v688
        %725 = vmatprep.subr.mxu0 0.0
        %726 = vmatpush1.msra.mxu0 %v689
        %727 = vmatprep.subr.mxu0 0.0
        %728 = vmatpush1.msra.mxu0 %v690
        %729 = vmatprep.subr.mxu0 0.0
        %730 = vmatpush1.msra.mxu0 %v691
        %731 = vmatprep.subr.mxu0 0.0
        %732 = vmatpush1.msra.mxu0 %v692
        %733 = vmatprep.subr.mxu0 0.0
        %734 = vmatpush1.msra.mxu0 0.0
        %735 = vmatprep.subr.mxu0 0.0
        %736 = vmatpush1.msra.mxu0 0.0
        %737 = vmatprep.subr.mxu0 0.0
        %738 = vmatpush1.msra.mxu0 0.0
        %739 = vmatprep.subr.mxu0 0.0
        %740 = vmatpush1.msra.mxu0 0.0
        %741 = vmatprep.subr.mxu0 0.0
        %742 = vmatpush1.msra.mxu0 0.0
        %743 = vmatprep.subr.mxu0 0.0
        %744 = vmatpush1.msra.mxu0 0.0
        %745 = vmatprep.subr.mxu0 0.0
        %746 = vmatpush1.msra.mxu0 0.0
        %747 = vmatprep.subr.mxu0 0.0
        %748 = vmatpush1.msra.mxu0 0.0
        %749 = vmatprep.subr.mxu0 0.0
        %750 = vmatpush1.msra.mxu0 0.0
        %751 = vmatprep.subr.mxu0 0.0
        %752 = vmatpush1.msra.mxu0 0.0
        %753 = vmatprep.subr.mxu0 0.0
        %754 = vmatpush1.msra.mxu0 0.0
        %755 = vmatprep.subr.mxu0 0.0
        %756 = vmatpush1.msra.mxu0 0.0
        %757 = vmatprep.mubr.f32.mxu0 %v264
        %758 = vmatmul.mubr.f32.gmra.mrb[0].mxu0 %v190
        %v759 = vpop.f32.mrb[0].mxu0
        %v760 = vadd.f32 0.0, %v759
        %v761 = vpop.f32.mrb[0].mxu0
        %762 = vmatprep.mubr.f32.mxu0 %v267
        %763 = vmatmul.mubr.f32.gmra.mrb[0].mxu0 %v192
        %v764 = vpop.f32.mrb[0].mxu0
        %v765 = vadd.f32 0.0, %v764
        %v766 = vpop.f32.mrb[0].mxu0
        %767 = vmatprep.mubr.f32.mxu0 %v270
        %768 = vmatmul.mubr.f32.gmra.mrb[0].mxu0 %v194
        %v769 = vpop.f32.mrb[0].mxu0
        %v770 = vadd.f32 0.0, %v769
        %v771 = vpop.f32.mrb[0].mxu0
        %772 = vmatprep.mubr.f32.mxu0 %v273
        %773 = vmatmul.mubr.f32.gmra.mrb[0].mxu0 %v196
        %v774 = vpop.f32.mrb[0].mxu0
        %v775 = vadd.f32 0.0, %v774
        %v776 = vpop.f32.mrb[0].mxu0
        %777 = vmatprep.mubr.f32.mxu0 %v276
        %778 = vmatmul.mubr.f32.gmra.mrb[0].mxu0 %v198
        %v779 = vpop.f32.mrb[0].mxu0
        %v780 = vadd.f32 0.0, %v779
        %v781 = vpop.f32.mrb[0].mxu0
        %782 = vmatprep.mubr.f32.mxu0 %v279
        %783 = vmatmul.mubr.f32.gmra.mrb[0].mxu0 %v200
        %v784 = vpop.f32.mrb[0].mxu0
        %v785 = vadd.f32 0.0, %v784
        %v786 = vpop.f32.mrb[0].mxu0
        %787 = vmatprep.mubr.f32.mxu0 %v282
        %788 = vmatmul.mubr.f32.gmra.mrb[0].mxu0 %v202
        %v789 = vpop.f32.mrb[0].mxu0
        %v790 = vadd.f32 0.0, %v789
        %v791 = vpop.f32.mrb[0].mxu0
        %792 = vmatprep.mubr.f32.mxu0 %v285
        %793 = vmatmul.mubr.f32.gmra.mrb[0].mxu0 %v204
        %v794 = vpop.f32.mrb[0].mxu0
        %v795 = vadd.f32 0.0, %v794
        %v796 = vpop.f32.mrb[0].mxu0
        %797 = vmatprep.mubr.f32.mxu0 %v288
        %798 = vmatmul.mubr.f32.gmra.mrb[0].mxu0 %v206
        %v799 = vpop.f32.mrb[0].mxu0
        %v800 = vadd.f32 0.0, %v799
        %v801 = vpop.f32.mrb[0].mxu0
        %802 = vmatprep.mubr.f32.mxu0 %v291
        %803 = vmatmul.mubr.f32.gmra.mrb[0].mxu0 %v208
        %v804 = vpop.f32.mrb[0].mxu0
        %v805 = vadd.f32 0.0, %v804
        %v806 = vpop.f32.mrb[0].mxu0
        %807 = vmatprep.mubr.f32.mxu0 %v294
        %808 = vmatmul.mubr.f32.gmra.mrb[0].mxu0 %v210
        %v809 = vpop.f32.mrb[0].mxu0
        %v810 = vadd.f32 0.0, %v809
        %v811 = vpop.f32.mrb[0].mxu0
        %812 = vmatprep.mubr.f32.mxu0 %v297
        %813 = vmatmul.mubr.f32.gmra.mrb[0].mxu0 %v212
        %v814 = vpop.f32.mrb[0].mxu0
        %v815 = vadd.f32 0.0, %v814
        %v816 = vpop.f32.mrb[0].mxu0
        %817 = vmatprep.mubr.f32.mxu0 %v300
        %818 = vmatmul.mubr.f32.gmra.mrb[0].mxu0 %v214
        %v819 = vpop.f32.mrb[0].mxu0
        %v820 = vadd.f32 0.0, %v819
        %v821 = vpop.f32.mrb[0].mxu0
        %822 = vmatprep.mubr.f32.mxu0 %v303
        %823 = vmatmul.mubr.f32.gmra.mrb[0].mxu0 %v216
        %v824 = vpop.f32.mrb[0].mxu0
        %v825 = vadd.f32 0.0, %v824
        %v826 = vpop.f32.mrb[0].mxu0
        %827 = vmatprep.mubr.f32.mxu0 %v306
        %828 = vmatmul.mubr.f32.gmra.mrb[0].mxu0 %v218
        %v829 = vpop.f32.mrb[0].mxu0
        %v830 = vadd.f32 0.0, %v829
        %v831 = vpop.f32.mrb[0].mxu0
        %832 = vmatprep.mubr.f32.mxu0 %v309
        %833 = vmatmul.mubr.f32.gmra.mrb[0].mxu0 %v220
        %v834 = vpop.f32.mrb[0].mxu0
        %v835 = vadd.f32 0.0, %v834
        %v836 = vpop.f32.mrb[0].mxu0
        %837 = vdwg.mxu0
        %v838 = vld [vmem:[#allocation2 + $0x10] sm:$0xff]
        %v839 = vld [vmem:[#allocation2 + $0x48] sm:$0xff]
        %v840 = vld [vmem:[#allocation2 + $0x80] sm:$0xff]
        %v841 = vld [vmem:[#allocation2 + $0xb8] sm:$0xff]
        %v842 = vld [vmem:[#allocation2 + $0xf0] sm:$0xff]
        %v843 = vld [vmem:[#allocation2 + $0x128] sm:$0xff]
        %v844 = vld [vmem:[#allocation2 + $0x160] sm:$0xff]
        %v845 = vld [vmem:[#allocation2 + $0x198] sm:$0xff]
        %v846 = vld [vmem:[#allocation2 + $0x1d0] sm:$0xff]
        %v847 = vld [vmem:[#allocation2 + $0x208] sm:$0xff]
        %v848 = vld [vmem:[#allocation2 + $0x240] sm:$0xff]
        %v849 = vld [vmem:[#allocation2 + $0x278] sm:$0xff]
        %v850 = vld [vmem:[#allocation2 + $0x2b0] sm:$0xff]
        %v851 = vld [vmem:[#allocation2 + $0x2e8] sm:$0xff]
        %v852 = vld [vmem:[#allocation2 + $0x320] sm:$0xff]
        %v853 = vld [vmem:[#allocation2 + $0x358] sm:$0xff]
        %v854 = vld [vmem:[#allocation2 + $0x390] sm:$0xff]
        %v855 = vld [vmem:[#allocation2 + $0x3c8] sm:$0xff]
        %v856 = vld [vmem:[#allocation2 + $0x400] sm:$0xff]
        %v857 = vld [vmem:[#allocation2 + $0x438] sm:$0xff]
        %v858 = vld [vmem:[#allocation2 + $0x470] sm:$0xff]
        %v859 = vld [vmem:[#allocation2 + $0x4a8] sm:$0xff]
        %v860 = vld [vmem:[#allocation2 + $0x4e0] sm:$0xff]
        %v861 = vld [vmem:[#allocation2 + $0x518] sm:$0xff]
        %v862 = vld [vmem:[#allocation2 + $0x550] sm:$0xff]
        %v863 = vld [vmem:[#allocation2 + $0x588] sm:$0xff]
        %v864 = vld [vmem:[#allocation2 + $0x5c0] sm:$0xff]
        %v865 = vld [vmem:[#allocation2 + $0x5f8] sm:$0xff]
        %v866 = vld [vmem:[#allocation2 + $0x630] sm:$0xff]
        %v867 = vld [vmem:[#allocation2 + $0x668] sm:$0xff]
        %v868 = vld [vmem:[#allocation2 + $0x6a0] sm:$0xff]
        %v869 = vld [vmem:[#allocation2 + $0x6d8] sm:$0xff]
        %v870 = vmul.f32 %v579, %v378
        %v871 = vmul.f32 %v581, %v380
        %v872 = vmul.f32 %v585, %v384
        %v873 = vmul.f32 %v587, %v386
        %v874 = vmul.f32 %v591, %v390
        %v875 = vmul.f32 %v593, %v392
        %v876 = vmul.f32 %v597, %v396
        %v877 = vmul.f32 %v599, %v398
        %v878 = vmul.f32 %v603, %v402
        %v879 = vmul.f32 %v605, %v404
        %v880 = vmul.f32 %v609, %v408
        %v881 = vmul.f32 %v611, %v410
        %v882 = vmul.f32 %v615, %v414
        %v883 = vmul.f32 %v617, %v416
        %v884 = vmul.f32 %v621, %v420
        %v885 = vmul.f32 %v623, %v422
        %v886 = vmul.f32 %v627, %v426
        %v887 = vmul.f32 %v629, %v428
        %v888 = vmul.f32 %v633, %v432
        %v889 = vmul.f32 %v635, %v434
        %v890 = vmul.f32 %v639, %v438
        %v891 = vmul.f32 %v641, %v440
        %v892 = vmul.f32 %v645, %v444
        %v893 = vmul.f32 %v647, %v446
        %v894 = vmul.f32 %v651, %v450
        %v895 = vmul.f32 %v653, %v452
        %v896 = vmul.f32 %v657, %v456
        %v897 = vmul.f32 %v659, %v458
        %v898 = vmul.f32 %v663, %v462
        %v899 = vmul.f32 %v665, %v464
        %v900 = vmul.f32 %v669, %v468
        %v901 = vmul.f32 %v671, %v470
        %902 = vmatprep.subr.mxu0 0.0
        %903 = vmatpush1.msra.mxu0 %v838
        %904 = vmatprep.subr.mxu0 0.0
        %905 = vmatpush1.msra.mxu0 %v839
        %906 = vmatprep.subr.mxu0 0.0
        %907 = vmatpush1.msra.mxu0 %v840
        %908 = vmatprep.subr.mxu0 0.0
        %909 = vmatpush1.msra.mxu0 %v841
        %910 = vmatprep.subr.mxu0 0.0
        %911 = vmatpush1.msra.mxu0 %v842
        %912 = vmatprep.subr.mxu0 0.0
        %913 = vmatpush1.msra.mxu0 %v843
        %914 = vmatprep.subr.mxu0 0.0
        %915 = vmatpush1.msra.mxu0 %v844
        %916 = vmatprep.subr.mxu0 0.0
        %917 = vmatpush1.msra.mxu0 %v845
        %918 = vmatprep.subr.mxu0 0.0
        %919 = vmatpush1.msra.mxu0 %v846
        %920 = vmatprep.subr.mxu0 0.0
        %921 = vmatpush1.msra.mxu0 %v847
        %922 = vmatprep.subr.mxu0 0.0
        %923 = vmatpush1.msra.mxu0 %v848
        %924 = vmatprep.subr.mxu0 0.0
        %925 = vmatpush1.msra.mxu0 %v849
        %926 = vmatprep.subr.mxu0 0.0
        %927 = vmatpush1.msra.mxu0 %v850
        %928 = vmatprep.subr.mxu0 0.0
        %929 = vmatpush1.msra.mxu0 %v851
        %930 = vmatprep.subr.mxu0 0.0
        %931 = vmatpush1.msra.mxu0 %v852
        %932 = vmatprep.subr.mxu0 0.0
        %933 = vmatpush1.msra.mxu0 %v853
        %934 = vmatprep.subr.mxu0 0.0
        %935 = vmatpush1.msra.mxu0 %v854
        %936 = vmatprep.subr.mxu0 0.0
        %937 = vmatpush1.msra.mxu0 %v855
        %938 = vmatprep.subr.mxu0 0.0
        %939 = vmatpush1.msra.mxu0 %v856
        %940 = vmatprep.subr.mxu0 0.0
        %941 = vmatpush1.msra.mxu0 %v857
        %942 = vmatprep.subr.mxu0 0.0
        %943 = vmatpush1.msra.mxu0 %v858
        %944 = vmatprep.subr.mxu0 0.0
        %945 = vmatpush1.msra.mxu0 %v859
        %946 = vmatprep.subr.mxu0 0.0
        %947 = vmatpush1.msra.mxu0 %v860
        %948 = vmatprep.subr.mxu0 0.0
        %949 = vmatpush1.msra.mxu0 %v861
        %950 = vmatprep.subr.mxu0 0.0
        %951 = vmatpush1.msra.mxu0 %v862
        %952 = vmatprep.subr.mxu0 0.0
        %953 = vmatpush1.msra.mxu0 %v863
        %954 = vmatprep.subr.mxu0 0.0
        %955 = vmatpush1.msra.mxu0 %v864
        %956 = vmatprep.subr.mxu0 0.0
        %957 = vmatpush1.msra.mxu0 %v865
        %958 = vmatprep.subr.mxu0 0.0
        %959 = vmatpush1.msra.mxu0 %v866
        %960 = vmatprep.subr.mxu0 0.0
        %961 = vmatpush1.msra.mxu0 %v867
        %962 = vmatprep.subr.mxu0 0.0
        %963 = vmatpush1.msra.mxu0 %v868
        %964 = vmatprep.subr.mxu0 0.0
        %965 = vmatpush1.msra.mxu0 %v869
        %966 = vmatprep.mubr.f32.mxu0 %v871
        %967 = vmatmul.mubr.f32.gmra.mrb[0].mxu0 %v870
        %v968 = vpop.f32.mrb[0].mxu0
        %v969 = vadd.f32 %v760, %v968
        %v970 = vpop.f32.mrb[0].mxu0
        %971 = vmatprep.mubr.f32.mxu0 %v873
        %972 = vmatmul.mubr.f32.gmra.mrb[0].mxu0 %v872
        %v973 = vpop.f32.mrb[0].mxu0
        %v974 = vadd.f32 %v765, %v973
        %v975 = vpop.f32.mrb[0].mxu0
        %976 = vmatprep.mubr.f32.mxu0 %v875
        %977 = vmatmul.mubr.f32.gmra.mrb[0].mxu0 %v874
        %v978 = vpop.f32.mrb[0].mxu0
        %v979 = vadd.f32 %v770, %v978
        %v980 = vpop.f32.mrb[0].mxu0
        %981 = vmatprep.mubr.f32.mxu0 %v877
        %982 = vmatmul.mubr.f32.gmra.mrb[0].mxu0 %v876
        %v983 = vpop.f32.mrb[0].mxu0
        %v984 = vadd.f32 %v775, %v983
        %v985 = vpop.f32.mrb[0].mxu0
        %986 = vmatprep.mubr.f32.mxu0 %v879
        %987 = vmatmul.mubr.f32.gmra.mrb[0].mxu0 %v878
        %v988 = vpop.f32.mrb[0].mxu0
        %v989 = vadd.f32 %v780, %v988
        %v990 = vpop.f32.mrb[0].mxu0
        %991 = vmatprep.mubr.f32.mxu0 %v881
        %992 = vmatmul.mubr.f32.gmra.mrb[0].mxu0 %v880
        %v993 = vpop.f32.mrb[0].mxu0
        %v994 = vadd.f32 %v785, %v993
        %v995 = vpop.f32.mrb[0].mxu0
        %996 = vmatprep.mubr.f32.mxu0 %v883
        %997 = vmatmul.mubr.f32.gmra.mrb[0].mxu0 %v882
        %v998 = vpop.f32.mrb[0].mxu0
        %v999 = vadd.f32 %v790, %v998
        %v1000 = vpop.f32.mrb[0].mxu0
        %1001 = vmatprep.mubr.f32.mxu0 %v885
        %1002 = vmatmul.mubr.f32.gmra.mrb[0].mxu0 %v884
        %v1003 = vpop.f32.mrb[0].mxu0
        %v1004 = vadd.f32 %v795, %v1003
        %v1005 = vpop.f32.mrb[0].mxu0
        %1006 = vmatprep.mubr.f32.mxu0 %v887
        %1007 = vmatmul.mubr.f32.gmra.mrb[0].mxu0 %v886
        %v1008 = vpop.f32.mrb[0].mxu0
        %v1009 = vadd.f32 %v800, %v1008
        %v1010 = vpop.f32.mrb[0].mxu0
        %1011 = vmatprep.mubr.f32.mxu0 %v889
        %1012 = vmatmul.mubr.f32.gmra.mrb[0].mxu0 %v888
        %v1013 = vpop.f32.mrb[0].mxu0
        %v1014 = vadd.f32 %v805, %v1013
        %v1015 = vpop.f32.mrb[0].mxu0
        %1016 = vmatprep.mubr.f32.mxu0 %v891
        %1017 = vmatmul.mubr.f32.gmra.mrb[0].mxu0 %v890
        %v1018 = vpop.f32.mrb[0].mxu0
        %v1019 = vadd.f32 %v810, %v1018
        %v1020 = vpop.f32.mrb[0].mxu0
        %1021 = vmatprep.mubr.f32.mxu0 %v893
        %1022 = vmatmul.mubr.f32.gmra.mrb[0].mxu0 %v892
        %v1023 = vpop.f32.mrb[0].mxu0
        %v1024 = vadd.f32 %v815, %v1023
        %v1025 = vpop.f32.mrb[0].mxu0
        %1026 = vmatprep.mubr.f32.mxu0 %v895
        %1027 = vmatmul.mubr.f32.gmra.mrb[0].mxu0 %v894
        %v1028 = vpop.f32.mrb[0].mxu0
        %v1029 = vadd.f32 %v820, %v1028
        %v1030 = vpop.f32.mrb[0].mxu0
        %1031 = vmatprep.mubr.f32.mxu0 %v897
        %1032 = vmatmul.mubr.f32.gmra.mrb[0].mxu0 %v896
        %v1033 = vpop.f32.mrb[0].mxu0
        %v1034 = vadd.f32 %v825, %v1033
        %v1035 = vpop.f32.mrb[0].mxu0
        %1036 = vmatprep.mubr.f32.mxu0 %v899
        %1037 = vmatmul.mubr.f32.gmra.mrb[0].mxu0 %v898
        %v1038 = vpop.f32.mrb[0].mxu0
        %v1039 = vadd.f32 %v830, %v1038
        %v1040 = vpop.f32.mrb[0].mxu0
        %1041 = vmatprep.mubr.f32.mxu0 %v901
        %1042 = vmatmul.mubr.f32.gmra.mrb[0].mxu0 %v900
        %v1043 = vpop.f32.mrb[0].mxu0
        %v1044 = vadd.f32 %v835, %v1043
        %v1045 = vpop.f32.mrb[0].mxu0
        %1046 = vdwg.mxu0
        %vm1047 = vcmask 64512
        %v1048 = vsel %vm1047, %v969, -inf
        %1049 = vmax.xlane.f32.xlu0 %v1048
        %v1050 = vpop.xlane.xlu0 %1049
        %v1051 = vsel %vm1047, %v974, -inf
        %1052 = vmax.xlane.f32.xlu0 %v1051
        %v1053 = vpop.xlane.xlu0 %1052
        %v1054 = vsel %vm1047, %v979, -inf
        %1055 = vmax.xlane.f32.xlu0 %v1054
        %v1056 = vpop.xlane.xlu0 %1055
        %v1057 = vsel %vm1047, %v984, -inf
        %1058 = vmax.xlane.f32.xlu0 %v1057
        %v1059 = vpop.xlane.xlu0 %1058
        %v1060 = vsel %vm1047, %v989, -inf
        %1061 = vmax.xlane.f32.xlu0 %v1060
        %v1062 = vpop.xlane.xlu0 %1061
        %v1063 = vsel %vm1047, %v994, -inf
        %1064 = vmax.xlane.f32.xlu0 %v1063
        %v1065 = vpop.xlane.xlu0 %1064
        %v1066 = vsel %vm1047, %v999, -inf
        %1067 = vmax.xlane.f32.xlu0 %v1066
        %v1068 = vpop.xlane.xlu0 %1067
        %v1069 = vsel %vm1047, %v1004, -inf
        %1070 = vmax.xlane.f32.xlu0 %v1069
        %v1071 = vpop.xlane.xlu0 %1070
        %v1072 = vsel %vm1047, %v1009, -inf
        %1073 = vmax.xlane.f32.xlu0 %v1072
        %v1074 = vpop.xlane.xlu0 %1073
        %v1075 = vsel %vm1047, %v1014, -inf
        %1076 = vmax.xlane.f32.xlu0 %v1075
        %v1077 = vpop.xlane.xlu0 %1076
        %v1078 = vsel %vm1047, %v1019, -inf
        %1079 = vmax.xlane.f32.xlu0 %v1078
        %v1080 = vpop.xlane.xlu0 %1079
        %v1081 = vsel %vm1047, %v1024, -inf
        %1082 = vmax.xlane.f32.xlu0 %v1081
        %v1083 = vpop.xlane.xlu0 %1082
        %v1084 = vsel %vm1047, %v1029, -inf
        %1085 = vmax.xlane.f32.xlu0 %v1084
        %v1086 = vpop.xlane.xlu0 %1085
        %v1087 = vsel %vm1047, %v1034, -inf
        %1088 = vmax.xlane.f32.xlu0 %v1087
        %v1089 = vpop.xlane.xlu0 %1088
        %v1090 = vsel %vm1047, %v1039, -inf
        %1091 = vmax.xlane.f32.xlu0 %v1090
        %v1092 = vpop.xlane.xlu0 %1091
        %v1093 = vsel %vm1047, %v1044, -inf
        %1094 = vmax.xlane.f32.xlu0 %v1093
        %v1095 = vpop.xlane.xlu0 %1094
        %v1096 = vsub.f32 %v969, %v1050
        %v1097 = vsub.f32 %v974, %v1053
        %v1098 = vsub.f32 %v979, %v1056
        %v1099 = vsub.f32 %v984, %v1059
        %v1100 = vsub.f32 %v989, %v1062
        %v1101 = vsub.f32 %v994, %v1065
        %v1102 = vsub.f32 %v999, %v1068
        %v1103 = vsub.f32 %v1004, %v1071
        %v1104 = vsub.f32 %v1009, %v1074
        %v1105 = vsub.f32 %v1014, %v1077
        %v1106 = vsub.f32 %v1019, %v1080
        %v1107 = vsub.f32 %v1024, %v1083
        %v1108 = vsub.f32 %v1029, %v1086
        %v1109 = vsub.f32 %v1034, %v1089
        %v1110 = vsub.f32 %v1039, %v1092
        %v1111 = vsub.f32 %v1044, %v1095
        %v1112 = vmul.f32 %v1096, 1.442695
        %v1113 = vpow.pop %v1112
        %v1114 = vmul.f32 %v1097, 1.442695
        %v1115 = vpow.pop %v1114
        %v1116 = vmul.f32 %v1098, 1.442695
        %v1117 = vpow.pop %v1116
        %v1118 = vmul.f32 %v1099, 1.442695
        %v1119 = vpow.pop %v1118
        %v1120 = vmul.f32 %v1100, 1.442695
        %v1121 = vpow.pop %v1120
        %v1122 = vmul.f32 %v1101, 1.442695
        %v1123 = vpow.pop %v1122
        %v1124 = vmul.f32 %v1102, 1.442695
        %v1125 = vpow.pop %v1124
        %v1126 = vmul.f32 %v1103, 1.442695
        %v1127 = vpow.pop %v1126
        %v1128 = vmul.f32 %v1104, 1.442695
        %v1129 = vpow.pop %v1128
        %v1130 = vmul.f32 %v1105, 1.442695
        %v1131 = vpow.pop %v1130
        %v1132 = vmul.f32 %v1106, 1.442695
        %v1133 = vpow.pop %v1132
        %v1134 = vmul.f32 %v1107, 1.442695
        %v1135 = vpow.pop %v1134
        %v1136 = vmul.f32 %v1108, 1.442695
        %v1137 = vpow.pop %v1136
        %v1138 = vmul.f32 %v1109, 1.442695
        %v1139 = vpow.pop %v1138
        %v1140 = vmul.f32 %v1110, 1.442695
        %v1141 = vpow.pop %v1140
        %v1142 = vmul.f32 %v1111, 1.442695
        %v1143 = vpow.pop %v1142
        %v1144 = vsel %vm1047, %v1113, 0.0
        %1145 = vadd.xlane.f32.xlu0 %v1144
        %v1146 = vpop.xlane.xlu0 %1145
        %v1147 = vsel %vm1047, %v1115, 0.0
        %1148 = vadd.xlane.f32.xlu0 %v1147
        %v1149 = vpop.xlane.xlu0 %1148
        %v1150 = vsel %vm1047, %v1117, 0.0
        %1151 = vadd.xlane.f32.xlu0 %v1150
        %v1152 = vpop.xlane.xlu0 %1151
        %v1153 = vsel %vm1047, %v1119, 0.0
        %1154 = vadd.xlane.f32.xlu0 %v1153
        %v1155 = vpop.xlane.xlu0 %1154
        %v1156 = vsel %vm1047, %v1121, 0.0
        %1157 = vadd.xlane.f32.xlu0 %v1156
        %v1158 = vpop.xlane.xlu0 %1157
        %v1159 = vsel %vm1047, %v1123, 0.0
        %1160 = vadd.xlane.f32.xlu0 %v1159
        %v1161 = vpop.xlane.xlu0 %1160
        %v1162 = vsel %vm1047, %v1125, 0.0
        %1163 = vadd.xlane.f32.xlu0 %v1162
        %v1164 = vpop.xlane.xlu0 %1163
        %v1165 = vsel %vm1047, %v1127, 0.0
        %1166 = vadd.xlane.f32.xlu0 %v1165
        %v1167 = vpop.xlane.xlu0 %1166
        %v1168 = vsel %vm1047, %v1129, 0.0
        %1169 = vadd.xlane.f32.xlu0 %v1168
        %v1170 = vpop.xlane.xlu0 %1169
        %v1171 = vsel %vm1047, %v1131, 0.0
        %1172 = vadd.xlane.f32.xlu0 %v1171
        %v1173 = vpop.xlane.xlu0 %1172
        %v1174 = vsel %vm1047, %v1133, 0.0
        %1175 = vadd.xlane.f32.xlu0 %v1174
        %v1176 = vpop.xlane.xlu0 %1175
        %v1177 = vsel %vm1047, %v1135, 0.0
        %1178 = vadd.xlane.f32.xlu0 %v1177
        %v1179 = vpop.xlane.xlu0 %1178
        %v1180 = vsel %vm1047, %v1137, 0.0
        %1181 = vadd.xlane.f32.xlu0 %v1180
        %v1182 = vpop.xlane.xlu0 %1181
        %v1183 = vsel %vm1047, %v1139, 0.0
        %1184 = vadd.xlane.f32.xlu0 %v1183
        %v1185 = vpop.xlane.xlu0 %1184
        %v1186 = vsel %vm1047, %v1141, 0.0
        %1187 = vadd.xlane.f32.xlu0 %v1186
        %v1188 = vpop.xlane.xlu0 %1187
        %v1189 = vsel %vm1047, %v1143, 0.0
        %1190 = vadd.xlane.f32.xlu0 %v1189
        %v1191 = vpop.xlane.xlu0 %1190
        %v1192 = vrcp.pop %v1146
        %v1193 = vrcp.pop %v1149
        %v1194 = vrcp.pop %v1152
        %v1195 = vrcp.pop %v1155
        %v1196 = vrcp.pop %v1158
        %v1197 = vrcp.pop %v1161
        %v1198 = vrcp.pop %v1164
        %v1199 = vrcp.pop %v1167
        %v1200 = vrcp.pop %v1170
        %v1201 = vrcp.pop %v1173
        %v1202 = vrcp.pop %v1176
        %v1203 = vrcp.pop %v1179
        %v1204 = vrcp.pop %v1182
        %v1205 = vrcp.pop %v1185
        %v1206 = vrcp.pop %v1188
        %v1207 = vrcp.pop %v1191
        %v1208 = vmul.f32 %v1113, %v1192
        %v1209 = vmul.f32 %v1115, %v1193
        %v1210 = vmul.f32 %v1117, %v1194
        %v1211 = vmul.f32 %v1119, %v1195
        %v1212 = vmul.f32 %v1121, %v1196
        %v1213 = vmul.f32 %v1123, %v1197
        %v1214 = vmul.f32 %v1125, %v1198
        %v1215 = vmul.f32 %v1127, %v1199
        %v1216 = vmul.f32 %v1129, %v1200
        %v1217 = vmul.f32 %v1131, %v1201
        %v1218 = vmul.f32 %v1133, %v1202
        %v1219 = vmul.f32 %v1135, %v1203
        %v1220 = vmul.f32 %v1137, %v1204
        %v1221 = vmul.f32 %v1139, %v1205
        %v1222 = vmul.f32 %v1141, %v1206
        %v1223 = vmul.f32 %v1143, %v1207
        %vm1224 = vcmask 130112
        %v1225 = vsel %vm1224, %v969, -inf
        %1226 = vmax.xlane.f32.xlu0 %v1225
        %v1227 = vpop.xlane.xlu0 %1226
        %v1228 = vsel %vm1224, %v974, -inf
        %1229 = vmax.xlane.f32.xlu0 %v1228
        %v1230 = vpop.xlane.xlu0 %1229
        %v1231 = vsel %vm1224, %v979, -inf
        %1232 = vmax.xlane.f32.xlu0 %v1231
        %v1233 = vpop.xlane.xlu0 %1232
        %v1234 = vsel %vm1224, %v984, -inf
        %1235 = vmax.xlane.f32.xlu0 %v1234
        %v1236 = vpop.xlane.xlu0 %1235
        %v1237 = vsel %vm1224, %v989, -inf
        %1238 = vmax.xlane.f32.xlu0 %v1237
        %v1239 = vpop.xlane.xlu0 %1238
        %v1240 = vsel %vm1224, %v994, -inf
        %1241 = vmax.xlane.f32.xlu0 %v1240
        %v1242 = vpop.xlane.xlu0 %1241
        %v1243 = vsel %vm1224, %v999, -inf
        %1244 = vmax.xlane.f32.xlu0 %v1243
        %v1245 = vpop.xlane.xlu0 %1244
        %v1246 = vsel %vm1224, %v1004, -inf
        %1247 = vmax.xlane.f32.xlu0 %v1246
        %v1248 = vpop.xlane.xlu0 %1247
        %v1249 = vsel %vm1224, %v1009, -inf
        %1250 = vmax.xlane.f32.xlu0 %v1249
        %v1251 = vpop.xlane.xlu0 %1250
        %v1252 = vsel %vm1224, %v1014, -inf
        %1253 = vmax.xlane.f32.xlu0 %v1252
        %v1254 = vpop.xlane.xlu0 %1253
        %v1255 = vsel %vm1224, %v1019, -inf
        %1256 = vmax.xlane.f32.xlu0 %v1255
        %v1257 = vpop.xlane.xlu0 %1256
        %v1258 = vsel %vm1224, %v1024, -inf
        %1259 = vmax.xlane.f32.xlu0 %v1258
        %v1260 = vpop.xlane.xlu0 %1259
        %v1261 = vsel %vm1224, %v1029, -inf
        %1262 = vmax.xlane.f32.xlu0 %v1261
        %v1263 = vpop.xlane.xlu0 %1262
        %v1264 = vsel %vm1224, %v1034, -inf
        %1265 = vmax.xlane.f32.xlu0 %v1264
        %v1266 = vpop.xlane.xlu0 %1265
        %v1267 = vsel %vm1224, %v1039, -inf
        %1268 = vmax.xlane.f32.xlu0 %v1267
        %v1269 = vpop.xlane.xlu0 %1268
        %v1270 = vsel %vm1224, %v1044, -inf
        %1271 = vmax.xlane.f32.xlu0 %v1270
        %v1272 = vpop.xlane.xlu0 %1271
        %v1273 = vsub.f32 %v969, %v1227
        %v1274 = vsub.f32 %v974, %v1230
        %v1275 = vsub.f32 %v979, %v1233
        %v1276 = vsub.f32 %v984, %v1236
        %v1277 = vsub.f32 %v989, %v1239
        %v1278 = vsub.f32 %v994, %v1242
        %v1279 = vsub.f32 %v999, %v1245
        %v1280 = vsub.f32 %v1004, %v1248
        %v1281 = vsub.f32 %v1009, %v1251
        %v1282 = vsub.f32 %v1014, %v1254
        %v1283 = vsub.f32 %v1019, %v1257
        %v1284 = vsub.f32 %v1024, %v1260
        %v1285 = vsub.f32 %v1029, %v1263
        %v1286 = vsub.f32 %v1034, %v1266
        %v1287 = vsub.f32 %v1039, %v1269
        %v1288 = vsub.f32 %v1044, %v1272
        %v1289 = vmul.f32 %v1273, 1.442695
        %v1290 = vpow.pop %v1289
        %v1291 = vmul.f32 %v1274, 1.442695
        %v1292 = vpow.pop %v1291
        %v1293 = vmul.f32 %v1275, 1.442695
        %v1294 = vpow.pop %v1293
        %v1295 = vmul.f32 %v1276, 1.442695
        %v1296 = vpow.pop %v1295
        %v1297 = vmul.f32 %v1277, 1.442695
        %v1298 = vpow.pop %v1297
        %v1299 = vmul.f32 %v1278, 1.442695
        %v1300 = vpow.pop %v1299
        %v1301 = vmul.f32 %v1279, 1.442695
        %v1302 = vpow.pop %v1301
        %v1303 = vmul.f32 %v1280, 1.442695
        %v1304 = vpow.pop %v1303
        %v1305 = vmul.f32 %v1281, 1.442695
        %v1306 = vpow.pop %v1305
        %v1307 = vmul.f32 %v1282, 1.442695
        %v1308 = vpow.pop %v1307
        %v1309 = vmul.f32 %v1283, 1.442695
        %v1310 = vpow.pop %v1309
        %v1311 = vmul.f32 %v1284, 1.442695
        %v1312 = vpow.pop %v1311
        %v1313 = vmul.f32 %v1285, 1.442695
        %v1314 = vpow.pop %v1313
        %v1315 = vmul.f32 %v1286, 1.442695
        %v1316 = vpow.pop %v1315
        %v1317 = vmul.f32 %v1287, 1.442695
        %v1318 = vpow.pop %v1317
        %v1319 = vmul.f32 %v1288, 1.442695
        %v1320 = vpow.pop %v1319
        %1337 = vrot.lane.b32.xlu0 %v1290, 120
        %v1338 = vpop.permute.xlu0 %1337
        %1339 = vrot.lane.b32.xlu0 %v1292, 120
        %v1340 = vpop.permute.xlu0 %1339
        %1341 = vrot.lane.b32.xlu0 %v1294, 120
        %v1342 = vpop.permute.xlu0 %1341
        %1343 = vrot.lane.b32.xlu0 %v1296, 120
        %v1344 = vpop.permute.xlu0 %1343
        %1345 = vrot.lane.b32.xlu0 %v1298, 120
        %v1346 = vpop.permute.xlu0 %1345
        %1347 = vrot.lane.b32.xlu0 %v1300, 120
        %v1348 = vpop.permute.xlu0 %1347
        %1349 = vrot.lane.b32.xlu0 %v1302, 120
        %v1350 = vpop.permute.xlu0 %1349
        %1351 = vrot.lane.b32.xlu0 %v1304, 120
        %v1352 = vpop.permute.xlu0 %1351
        %1353 = vrot.lane.b32.xlu0 %v1306, 120
        %v1354 = vpop.permute.xlu0 %1353
        %1355 = vrot.lane.b32.xlu0 %v1308, 120
        %v1356 = vpop.permute.xlu0 %1355
        %1357 = vrot.lane.b32.xlu0 %v1310, 120
        %v1358 = vpop.permute.xlu0 %1357
        %1359 = vrot.lane.b32.xlu0 %v1312, 120
        %v1360 = vpop.permute.xlu0 %1359
        %1361 = vrot.lane.b32.xlu0 %v1314, 120
        %v1362 = vpop.permute.xlu0 %1361
        %1363 = vrot.lane.b32.xlu0 %v1316, 120
        %v1364 = vpop.permute.xlu0 %1363
        %1365 = vrot.lane.b32.xlu0 %v1318, 120
        %v1366 = vpop.permute.xlu0 %1365
        %1367 = vrot.lane.b32.xlu0 %v1320, 120
        %v1368 = vpop.permute.xlu0 %1367
        %v1385 = vsel %vm1047, %v1338, 0.0
        %1386 = vadd.xlane.f32.xlu0 %v1385
        %v1387 = vpop.xlane.xlu0 %1386
        %v1388 = vsel %vm1047, %v1340, 0.0
        %1389 = vadd.xlane.f32.xlu0 %v1388
        %v1390 = vpop.xlane.xlu0 %1389
        %v1391 = vsel %vm1047, %v1342, 0.0
        %1392 = vadd.xlane.f32.xlu0 %v1391
        %v1393 = vpop.xlane.xlu0 %1392
        %v1394 = vsel %vm1047, %v1344, 0.0
        %1395 = vadd.xlane.f32.xlu0 %v1394
        %v1396 = vpop.xlane.xlu0 %1395
        %v1397 = vsel %vm1047, %v1346, 0.0
        %1398 = vadd.xlane.f32.xlu0 %v1397
        %v1399 = vpop.xlane.xlu0 %1398
        %v1400 = vsel %vm1047, %v1348, 0.0
        %1401 = vadd.xlane.f32.xlu0 %v1400
        %v1402 = vpop.xlane.xlu0 %1401
        %v1403 = vsel %vm1047, %v1350, 0.0
        %1404 = vadd.xlane.f32.xlu0 %v1403
        %v1405 = vpop.xlane.xlu0 %1404
        %v1406 = vsel %vm1047, %v1352, 0.0
        %1407 = vadd.xlane.f32.xlu0 %v1406
        %v1408 = vpop.xlane.xlu0 %1407
        %v1409 = vsel %vm1047, %v1354, 0.0
        %1410 = vadd.xlane.f32.xlu0 %v1409
        %v1411 = vpop.xlane.xlu0 %1410
        %v1412 = vsel %vm1047, %v1356, 0.0
        %1413 = vadd.xlane.f32.xlu0 %v1412
        %v1414 = vpop.xlane.xlu0 %1413
        %v1415 = vsel %vm1047, %v1358, 0.0
        %1416 = vadd.xlane.f32.xlu0 %v1415
        %v1417 = vpop.xlane.xlu0 %1416
        %v1418 = vsel %vm1047, %v1360, 0.0
        %1419 = vadd.xlane.f32.xlu0 %v1418
        %v1420 = vpop.xlane.xlu0 %1419
        %v1421 = vsel %vm1047, %v1362, 0.0
        %1422 = vadd.xlane.f32.xlu0 %v1421
        %v1423 = vpop.xlane.xlu0 %1422
        %v1424 = vsel %vm1047, %v1364, 0.0
        %1425 = vadd.xlane.f32.xlu0 %v1424
        %v1426 = vpop.xlane.xlu0 %1425
        %v1427 = vsel %vm1047, %v1366, 0.0
        %1428 = vadd.xlane.f32.xlu0 %v1427
        %v1429 = vpop.xlane.xlu0 %1428
        %v1430 = vsel %vm1047, %v1368, 0.0
        %1431 = vadd.xlane.f32.xlu0 %v1430
        %v1432 = vpop.xlane.xlu0 %1431
        %v1433 = vrcp.pop %v1387
        %v1434 = vrcp.pop %v1390
        %v1435 = vrcp.pop %v1393
        %v1436 = vrcp.pop %v1396
        %v1437 = vrcp.pop %v1399
        %v1438 = vrcp.pop %v1402
        %v1439 = vrcp.pop %v1405
        %v1440 = vrcp.pop %v1408
        %v1441 = vrcp.pop %v1411
        %v1442 = vrcp.pop %v1414
        %v1443 = vrcp.pop %v1417
        %v1444 = vrcp.pop %v1420
        %v1445 = vrcp.pop %v1423
        %v1446 = vrcp.pop %v1426
        %v1447 = vrcp.pop %v1429
        %v1448 = vrcp.pop %v1432
        %v1449 = vmul.f32 %v1290, %v1433
        %v1450 = vmul.f32 %v1292, %v1434
        %v1451 = vmul.f32 %v1294, %v1435
        %v1452 = vmul.f32 %v1296, %v1436
        %v1453 = vmul.f32 %v1298, %v1437
        %v1454 = vmul.f32 %v1300, %v1438
        %v1455 = vmul.f32 %v1302, %v1439
        %v1456 = vmul.f32 %v1304, %v1440
        %v1457 = vmul.f32 %v1306, %v1441
        %v1458 = vmul.f32 %v1308, %v1442
        %v1459 = vmul.f32 %v1310, %v1443
        %v1460 = vmul.f32 %v1312, %v1444
        %v1461 = vmul.f32 %v1314, %v1445
        %v1462 = vmul.f32 %v1316, %v1446
        %v1463 = vmul.f32 %v1318, %v1447
        %v1464 = vmul.f32 %v1320, %v1448
        %v1465 = vsel %vm1047, %v1208, %v1449
        %v1466 = vsel %vm1047, %v1209, %v1450
        %v1467 = vsel %vm1047, %v1210, %v1451
        %v1468 = vsel %vm1047, %v1211, %v1452
        %v1469 = vsel %vm1047, %v1212, %v1453
        %v1470 = vsel %vm1047, %v1213, %v1454
        %v1471 = vsel %vm1047, %v1214, %v1455
        %v1472 = vsel %vm1047, %v1215, %v1456
        %v1473 = vsel %vm1047, %v1216, %v1457
        %v1474 = vsel %vm1047, %v1217, %v1458
        %v1475 = vsel %vm1047, %v1218, %v1459
        %v1476 = vsel %vm1047, %v1219, %v1460
        %v1477 = vsel %vm1047, %v1220, %v1461
        %v1478 = vsel %vm1047, %v1221, %v1462
        %v1479 = vsel %vm1047, %v1222, %v1463
        %v1480 = vsel %vm1047, %v1223, %v1464
        %v1481 = vld [vmem:[%s1 + $0x10] sm:$0xff]
        %v1482 = vld [vmem:[%s1 + $0x18] sm:$0xff]
        %v1483 = vld [vmem:[%s1 + $0x48] sm:$0xff]
        %v1484 = vld [vmem:[%s1 + $0x50] sm:$0xff]
        %v1485 = vld [vmem:[%s1 + $0x80] sm:$0xff]
        %v1486 = vld [vmem:[%s1 + $0x88] sm:$0xff]
        %v1487 = vld [vmem:[%s1 + $0xb8] sm:$0xff]
        %v1488 = vld [vmem:[%s1 + $0xc0] sm:$0xff]
        %v1489 = vld [vmem:[%s1 + $0xf0] sm:$0xff]
        %v1490 = vld [vmem:[%s1 + $0xf8] sm:$0xff]
        %v1491 = vld [vmem:[%s1 + $0x128] sm:$0xff]
        %v1492 = vld [vmem:[%s1 + $0x130] sm:$0xff]
        %v1493 = vld [vmem:[%s1 + $0x160] sm:$0xff]
        %v1494 = vld [vmem:[%s1 + $0x168] sm:$0xff]
        %v1495 = vld [vmem:[%s1 + $0x198] sm:$0xff]
        %v1496 = vld [vmem:[%s1 + $0x1a0] sm:$0xff]
        %v1497 = vld [vmem:[%s1 + $0x1d0] sm:$0xff]
        %v1498 = vld [vmem:[%s1 + $0x1d8] sm:$0xff]
        %v1499 = vld [vmem:[%s1 + $0x208] sm:$0xff]
        %v1500 = vld [vmem:[%s1 + $0x210] sm:$0xff]
        %v1501 = vld [vmem:[%s1 + $0x240] sm:$0xff]
        %v1502 = vld [vmem:[%s1 + $0x248] sm:$0xff]
        %v1503 = vld [vmem:[%s1 + $0x278] sm:$0xff]
        %v1504 = vld [vmem:[%s1 + $0x280] sm:$0xff]
        %v1505 = vld [vmem:[%s1 + $0x2b0] sm:$0xff]
        %v1506 = vld [vmem:[%s1 + $0x2b8] sm:$0xff]
        %v1507 = vld [vmem:[%s1 + $0x2e8] sm:$0xff]
        %v1508 = vld [vmem:[%s1 + $0x2f0] sm:$0xff]
        %v1509 = vld [vmem:[%s1 + $0x320] sm:$0xff]
        %v1510 = vld [vmem:[%s1 + $0x328] sm:$0xff]
        %v1511 = vld [vmem:[%s1 + $0x358] sm:$0xff]
        %v1512 = vld [vmem:[%s1 + $0x360] sm:$0xff]
        %v1513 = vld [vmem:[%s1 + $0x390] sm:$0xff]
        %v1514 = vld [vmem:[%s1 + $0x398] sm:$0xff]
        %v1515 = vld [vmem:[%s1 + $0x3c8] sm:$0xff]
        %v1516 = vld [vmem:[%s1 + $0x3d0] sm:$0xff]
        %v1517 = vld [vmem:[%s1 + $0x400] sm:$0xff]
        %v1518 = vld [vmem:[%s1 + $0x408] sm:$0xff]
        %v1519 = vld [vmem:[%s1 + $0x438] sm:$0xff]
        %v1520 = vld [vmem:[%s1 + $0x440] sm:$0xff]
        %1521 = vmatprep.subr.mxu0 %v1482
        %1522 = vmatpush1.msra.mxu0 %v1481
        %1523 = vmatprep.subr.mxu0 %v1484
        %1524 = vmatpush1.msra.mxu0 %v1483
        %1525 = vmatprep.subr.mxu0 %v1486
        %1526 = vmatpush1.msra.mxu0 %v1485
        %1527 = vmatprep.subr.mxu0 %v1488
        %1528 = vmatpush1.msra.mxu0 %v1487
        %1529 = vmatprep.subr.mxu0 %v1490
        %1530 = vmatpush1.msra.mxu0 %v1489
        %1531 = vmatprep.subr.mxu0 %v1492
        %1532 = vmatpush1.msra.mxu0 %v1491
        %1533 = vmatprep.subr.mxu0 %v1494
        %1534 = vmatpush1.msra.mxu0 %v1493
        %1535 = vmatprep.subr.mxu0 %v1496
        %1536 = vmatpush1.msra.mxu0 %v1495
        %1537 = vmatprep.subr.mxu0 %v1498
        %1538 = vmatpush1.msra.mxu0 %v1497
        %1539 = vmatprep.subr.mxu0 %v1500
        %1540 = vmatpush1.msra.mxu0 %v1499
        %1541 = vmatprep.subr.mxu0 %v1502
        %1542 = vmatpush1.msra.mxu0 %v1501
        %1543 = vmatprep.subr.mxu0 %v1504
        %1544 = vmatpush1.msra.mxu0 %v1503
        %1545 = vmatprep.subr.mxu0 %v1506
        %1546 = vmatpush1.msra.mxu0 %v1505
        %1547 = vmatprep.subr.mxu0 %v1508
        %1548 = vmatpush1.msra.mxu0 %v1507
        %1549 = vmatprep.subr.mxu0 %v1510
        %1550 = vmatpush1.msra.mxu0 %v1509
        %1551 = vmatprep.subr.mxu0 %v1512
        %1552 = vmatpush1.msra.mxu0 %v1511
        %1553 = vmatprep.subr.mxu0 %v1514
        %1554 = vmatpush1.msra.mxu0 %v1513
        %1555 = vmatprep.subr.mxu0 %v1516
        %1556 = vmatpush1.msra.mxu0 %v1515
        %1557 = vmatprep.subr.mxu0 %v1518
        %1558 = vmatpush1.msra.mxu0 %v1517
        %1559 = vmatprep.subr.mxu0 %v1520
        %1560 = vmatpush1.msra.mxu0 %v1519
        %1561 = vmatprep.subr.mxu0 0.0
        %1562 = vmatpush1.msra.mxu0 0.0
        %1563 = vmatprep.subr.mxu0 0.0
        %1564 = vmatpush1.msra.mxu0 0.0
        %1565 = vmatprep.subr.mxu0 0.0
        %1566 = vmatpush1.msra.mxu0 0.0
        %1567 = vmatprep.subr.mxu0 0.0
        %1568 = vmatpush1.msra.mxu0 0.0
        %1569 = vmatprep.subr.mxu0 0.0
        %1570 = vmatpush1.msra.mxu0 0.0
        %1571 = vmatprep.subr.mxu0 0.0
        %1572 = vmatpush1.msra.mxu0 0.0
        %1573 = vmatprep.subr.mxu0 0.0
        %1574 = vmatpush1.msra.mxu0 0.0
        %1575 = vmatprep.subr.mxu0 0.0
        %1576 = vmatpush1.msra.mxu0 0.0
        %1577 = vmatprep.subr.mxu0 0.0
        %1578 = vmatpush1.msra.mxu0 0.0
        %1579 = vmatprep.subr.mxu0 0.0
        %1580 = vmatpush1.msra.mxu0 0.0
        %1581 = vmatprep.subr.mxu0 0.0
        %1582 = vmatpush1.msra.mxu0 0.0
        %1583 = vmatprep.subr.mxu0 0.0
        %1584 = vmatpush1.msra.mxu0 0.0
        %1585 = vmatprep.mubr.f32.mxu0 %v264
        %1586 = vmatmul.mubr.f32.gmra.mrb[0].mxu0 %v190
        %v1587 = vpop.f32.mrb[0].mxu0
        %v1588 = vadd.f32 0.0, %v1587
        %v1589 = vpop.f32.mrb[0].mxu0
        %v1590 = vadd.f32 0.0, %v1589
        %1591 = vmatprep.mubr.f32.mxu0 %v267
        %1592 = vmatmul.mubr.f32.gmra.mrb[0].mxu0 %v192
        %v1593 = vpop.f32.mrb[0].mxu0
        %v1594 = vadd.f32 0.0, %v1593
        %v1595 = vpop.f32.mrb[0].mxu0
        %v1596 = vadd.f32 0.0, %v1595
        %1597 = vmatprep.mubr.f32.mxu0 %v270
        %1598 = vmatmul.mubr.f32.gmra.mrb[0].mxu0 %v194
        %v1599 = vpop.f32.mrb[0].mxu0
        %v1600 = vadd.f32 0.0, %v1599
        %v1601 = vpop.f32.mrb[0].mxu0
        %v1602 = vadd.f32 0.0, %v1601
        %1603 = vmatprep.mubr.f32.mxu0 %v273
        %1604 = vmatmul.mubr.f32.gmra.mrb[0].mxu0 %v196
        %v1605 = vpop.f32.mrb[0].mxu0
        %v1606 = vadd.f32 0.0, %v1605
        %v1607 = vpop.f32.mrb[0].mxu0
        %v1608 = vadd.f32 0.0, %v1607
        %1609 = vmatprep.mubr.f32.mxu0 %v276
        %1610 = vmatmul.mubr.f32.gmra.mrb[0].mxu0 %v198
        %v1611 = vpop.f32.mrb[0].mxu0
        %v1612 = vadd.f32 0.0, %v1611
        %v1613 = vpop.f32.mrb[0].mxu0
        %v1614 = vadd.f32 0.0, %v1613
        %1615 = vmatprep.mubr.f32.mxu0 %v279
        %1616 = vmatmul.mubr.f32.gmra.mrb[0].mxu0 %v200
        %v1617 = vpop.f32.mrb[0].mxu0
        %v1618 = vadd.f32 0.0, %v1617
        %v1619 = vpop.f32.mrb[0].mxu0
        %v1620 = vadd.f32 0.0, %v1619
        %1621 = vmatprep.mubr.f32.mxu0 %v282
        %1622 = vmatmul.mubr.f32.gmra.mrb[0].mxu0 %v202
        %v1623 = vpop.f32.mrb[0].mxu0
        %v1624 = vadd.f32 0.0, %v1623
        %v1625 = vpop.f32.mrb[0].mxu0
        %v1626 = vadd.f32 0.0, %v1625
        %1627 = vmatprep.mubr.f32.mxu0 %v285
        %1628 = vmatmul.mubr.f32.gmra.mrb[0].mxu0 %v204
        %v1629 = vpop.f32.mrb[0].mxu0
        %v1630 = vadd.f32 0.0, %v1629
        %v1631 = vpop.f32.mrb[0].mxu0
        %v1632 = vadd.f32 0.0, %v1631
        %1633 = vmatprep.mubr.f32.mxu0 %v288
        %1634 = vmatmul.mubr.f32.gmra.mrb[0].mxu0 %v206
        %v1635 = vpop.f32.mrb[0].mxu0
        %v1636 = vadd.f32 0.0, %v1635
        %v1637 = vpop.f32.mrb[0].mxu0
        %v1638 = vadd.f32 0.0, %v1637
        %1639 = vmatprep.mubr.f32.mxu0 %v291
        %1640 = vmatmul.mubr.f32.gmra.mrb[0].mxu0 %v208
        %v1641 = vpop.f32.mrb[0].mxu0
        %v1642 = vadd.f32 0.0, %v1641
        %v1643 = vpop.f32.mrb[0].mxu0
        %v1644 = vadd.f32 0.0, %v1643
        %1645 = vmatprep.mubr.f32.mxu0 %v294
        %1646 = vmatmul.mubr.f32.gmra.mrb[0].mxu0 %v210
        %v1647 = vpop.f32.mrb[0].mxu0
        %v1648 = vadd.f32 0.0, %v1647
        %v1649 = vpop.f32.mrb[0].mxu0
        %v1650 = vadd.f32 0.0, %v1649
        %1651 = vmatprep.mubr.f32.mxu0 %v297
        %1652 = vmatmul.mubr.f32.gmra.mrb[0].mxu0 %v212
        %v1653 = vpop.f32.mrb[0].mxu0
        %v1654 = vadd.f32 0.0, %v1653
        %v1655 = vpop.f32.mrb[0].mxu0
        %v1656 = vadd.f32 0.0, %v1655
        %1657 = vmatprep.mubr.f32.mxu0 %v300
        %1658 = vmatmul.mubr.f32.gmra.mrb[0].mxu0 %v214
        %v1659 = vpop.f32.mrb[0].mxu0
        %v1660 = vadd.f32 0.0, %v1659
        %v1661 = vpop.f32.mrb[0].mxu0
        %v1662 = vadd.f32 0.0, %v1661
        %1663 = vmatprep.mubr.f32.mxu0 %v303
        %1664 = vmatmul.mubr.f32.gmra.mrb[0].mxu0 %v216
        %v1665 = vpop.f32.mrb[0].mxu0
        %v1666 = vadd.f32 0.0, %v1665
        %v1667 = vpop.f32.mrb[0].mxu0
        %v1668 = vadd.f32 0.0, %v1667
        %1669 = vmatprep.mubr.f32.mxu0 %v306
        %1670 = vmatmul.mubr.f32.gmra.mrb[0].mxu0 %v218
        %v1671 = vpop.f32.mrb[0].mxu0
        %v1672 = vadd.f32 0.0, %v1671
        %v1673 = vpop.f32.mrb[0].mxu0
        %v1674 = vadd.f32 0.0, %v1673
        %1675 = vmatprep.mubr.f32.mxu0 %v309
        %1676 = vmatmul.mubr.f32.gmra.mrb[0].mxu0 %v220
        %v1677 = vpop.f32.mrb[0].mxu0
        %v1678 = vadd.f32 0.0, %v1677
        %v1679 = vpop.f32.mrb[0].mxu0
        %v1680 = vadd.f32 0.0, %v1679
        %1681 = vdwg.mxu0
        %v1682 = vld [vmem:[#allocation2] sm:$0xff]
        %v1683 = vld [vmem:[#allocation2 + $0x8] sm:$0xff]
        %v1684 = vld [vmem:[#allocation2 + $0x38] sm:$0xff]
        %v1685 = vld [vmem:[#allocation2 + $0x40] sm:$0xff]
        %v1686 = vld [vmem:[#allocation2 + $0x18] sm:$0xff]
        %v1687 = vld [vmem:[#allocation2 + $0x50] sm:$0xff]
        %v1688 = vld [vmem:[#allocation2 + $0x88] sm:$0xff]
        %v1689 = vld [vmem:[#allocation2 + $0xc0] sm:$0xff]
        %v1690 = vld [vmem:[#allocation2 + $0xf8] sm:$0xff]
        %v1691 = vld [vmem:[#allocation2 + $0x130] sm:$0xff]
        %v1692 = vld [vmem:[#allocation2 + $0x168] sm:$0xff]
        %v1693 = vld [vmem:[#allocation2 + $0x1a0] sm:$0xff]
        %v1694 = vld [vmem:[#allocation2 + $0x1d8] sm:$0xff]
        %v1695 = vld [vmem:[#allocation2 + $0x210] sm:$0xff]
        %v1696 = vld [vmem:[#allocation2 + $0x248] sm:$0xff]
        %v1697 = vld [vmem:[#allocation2 + $0x280] sm:$0xff]
        %v1698 = vld [vmem:[#allocation2 + $0x2b8] sm:$0xff]
        %v1699 = vld [vmem:[#allocation2 + $0x2f0] sm:$0xff]
        %v1700 = vld [vmem:[#allocation2 + $0x328] sm:$0xff]
        %v1701 = vld [vmem:[#allocation2 + $0x360] sm:$0xff]
        %v1702 = vld [vmem:[#allocation2 + $0x398] sm:$0xff]
        %v1703 = vld [vmem:[#allocation2 + $0x3d0] sm:$0xff]
        %v1704 = vld [vmem:[#allocation2 + $0x408] sm:$0xff]
        %v1705 = vld [vmem:[#allocation2 + $0x440] sm:$0xff]
        %v1706 = vld [vmem:[#allocation2 + $0x478] sm:$0xff]
        %v1707 = vld [vmem:[#allocation2 + $0x4b0] sm:$0xff]
        %v1708 = vld [vmem:[#allocation2 + $0x4e8] sm:$0xff]
        %v1709 = vld [vmem:[#allocation2 + $0x520] sm:$0xff]
        %v1710 = vld [vmem:[#allocation2 + $0x558] sm:$0xff]
        %v1711 = vld [vmem:[#allocation2 + $0x590] sm:$0xff]
        %v1712 = vld [vmem:[#allocation2 + $0x5c8] sm:$0xff]
        %v1713 = vld [vmem:[#allocation2 + $0x600] sm:$0xff]
        %v1714 = vld [vmem:[#allocation2 + $0x638] sm:$0xff]
        %v1715 = vld [vmem:[#allocation2 + $0x670] sm:$0xff]
        %v1716 = vld [vmem:[#allocation2 + $0x6a8] sm:$0xff]
        %v1717 = vld [vmem:[#allocation2 + $0x6e0] sm:$0xff]
        %vm1718 = vcmask 130048
        %v1720 = vsel %vm1718, %v1465, 0
        %v1723 = vsel %vm1718, %v1466, 0
        %v1726 = vsel %vm1718, %v1467, 0
        %v1729 = vsel %vm1718, %v1468, 0
        %v1732 = vsel %vm1718, %v1469, 0
        %v1735 = vsel %vm1718, %v1470, 0
        %v1738 = vsel %vm1718, %v1471, 0
        %v1741 = vsel %vm1718, %v1472, 0
        %v1744 = vsel %vm1718, %v1473, 0
        %v1747 = vsel %vm1718, %v1474, 0
        %v1750 = vsel %vm1718, %v1475, 0
        %v1753 = vsel %vm1718, %v1476, 0
        %v1756 = vsel %vm1718, %v1477, 0
        %v1759 = vsel %vm1718, %v1478, 0
        %v1762 = vsel %vm1718, %v1479, 0
        %v1765 = vsel %vm1718, %v1480, 0
        %1767 = vmatprep.subr.mxu0 %v1683
        %1768 = vmatpush1.msra.mxu0 %v1682
        %1769 = vmatprep.subr.mxu0 %v1685
        %1770 = vmatpush1.msra.mxu0 %v1684
        %1771 = vmatprep.subr.mxu0 0.0
        %1772 = vmatpush1.msra.mxu0 0.0
        %1773 = vmatprep.subr.mxu0 0.0
        %1774 = vmatpush1.msra.mxu0 0.0
        %1775 = vmatprep.subr.mxu0 0.0
        %1776 = vmatpush1.msra.mxu0 0.0
        %1777 = vmatprep.subr.mxu0 0.0
        %1778 = vmatpush1.msra.mxu0 0.0
        %1779 = vmatprep.subr.mxu0 0.0
        %1780 = vmatpush1.msra.mxu0 0.0
        %1781 = vmatprep.subr.mxu0 0.0
        %1782 = vmatpush1.msra.mxu0 0.0
        %1783 = vmatprep.subr.mxu0 0.0
        %1784 = vmatpush1.msra.mxu0 0.0
        %1785 = vmatprep.subr.mxu0 0.0
        %1786 = vmatpush1.msra.mxu0 0.0
        %1787 = vmatprep.subr.mxu0 0.0
        %1788 = vmatpush1.msra.mxu0 0.0
        %1789 = vmatprep.subr.mxu0 0.0
        %1790 = vmatpush1.msra.mxu0 0.0
        %1791 = vmatprep.subr.mxu0 0.0
        %1792 = vmatpush1.msra.mxu0 0.0
        %1793 = vmatprep.subr.mxu0 0.0
        %1794 = vmatpush1.msra.mxu0 0.0
        %1795 = vmatprep.subr.mxu0 0.0
        %1796 = vmatpush1.msra.mxu0 0.0
        %1797 = vmatprep.subr.mxu0 0.0
        %1798 = vmatpush1.msra.mxu0 0.0
        %1799 = vmatprep.subr.mxu0 0.0
        %1800 = vmatpush1.msra.mxu0 0.0
        %1801 = vmatprep.subr.mxu0 0.0
        %1802 = vmatpush1.msra.mxu0 0.0
        %1803 = vmatprep.subr.mxu0 0.0
        %1804 = vmatpush1.msra.mxu0 0.0
        %1805 = vmatprep.subr.mxu0 0.0
        %1806 = vmatpush1.msra.mxu0 0.0
        %1807 = vmatprep.subr.mxu0 0.0
        %1808 = vmatpush1.msra.mxu0 0.0
        %1809 = vmatprep.subr.mxu0 0.0
        %1810 = vmatpush1.msra.mxu0 0.0
        %1811 = vmatprep.subr.mxu0 0.0
        %1812 = vmatpush1.msra.mxu0 0.0
        %1813 = vmatprep.subr.mxu0 0.0
        %1814 = vmatpush1.msra.mxu0 0.0
        %1815 = vmatprep.subr.mxu0 0.0
        %1816 = vmatpush1.msra.mxu0 0.0
        %1817 = vmatprep.subr.mxu0 0.0
        %1818 = vmatpush1.msra.mxu0 0.0
        %1819 = vmatprep.subr.mxu0 0.0
        %1820 = vmatpush1.msra.mxu0 0.0
        %1821 = vmatprep.subr.mxu0 0.0
        %1822 = vmatpush1.msra.mxu0 0.0
        %1823 = vmatprep.subr.mxu0 0.0
        %1824 = vmatpush1.msra.mxu0 0.0
        %1825 = vmatprep.subr.mxu0 0.0
        %1826 = vmatpush1.msra.mxu0 0.0
        %1827 = vmatprep.subr.mxu0 0.0
        %1828 = vmatpush1.msra.mxu0 0.0
        %1829 = vmatprep.subr.mxu0 0.0
        %1830 = vmatpush1.msra.mxu0 0.0
        %1831 = vmatprep.mubr.f32.mxu0 0.0
        %1832 = vmatmul.mubr.f32.gmra.mrb[0].mxu0 %v1720
        %v1833 = vpop.f32.mrb[0].mxu0
        %v1834 = vadd.f32 0.0, %v1833
        %v1835 = vpop.f32.mrb[0].mxu0
        %v1836 = vadd.f32 0.0, %v1835
        %1837 = vmatprep.mubr.f32.mxu0 0.0
        %1838 = vmatmul.mubr.f32.gmra.mrb[0].mxu0 %v1723
        %v1839 = vpop.f32.mrb[0].mxu0
        %v1840 = vadd.f32 0.0, %v1839
        %v1841 = vpop.f32.mrb[0].mxu0
        %v1842 = vadd.f32 0.0, %v1841
        %1843 = vmatprep.mubr.f32.mxu0 0.0
        %1844 = vmatmul.mubr.f32.gmra.mrb[0].mxu0 %v1726
        %v1845 = vpop.f32.mrb[0].mxu0
        %v1846 = vadd.f32 0.0, %v1845
        %v1847 = vpop.f32.mrb[0].mxu0
        %v1848 = vadd.f32 0.0, %v1847
        %1849 = vmatprep.mubr.f32.mxu0 0.0
        %1850 = vmatmul.mubr.f32.gmra.mrb[0].mxu0 %v1729
        %v1851 = vpop.f32.mrb[0].mxu0
        %v1852 = vadd.f32 0.0, %v1851
        %v1853 = vpop.f32.mrb[0].mxu0
        %v1854 = vadd.f32 0.0, %v1853
        %1855 = vmatprep.mubr.f32.mxu0 0.0
        %1856 = vmatmul.mubr.f32.gmra.mrb[0].mxu0 %v1732
        %v1857 = vpop.f32.mrb[0].mxu0
        %v1858 = vadd.f32 0.0, %v1857
        %v1859 = vpop.f32.mrb[0].mxu0
        %v1860 = vadd.f32 0.0, %v1859
        %1861 = vmatprep.mubr.f32.mxu0 0.0
        %1862 = vmatmul.mubr.f32.gmra.mrb[0].mxu0 %v1735
        %v1863 = vpop.f32.mrb[0].mxu0
        %v1864 = vadd.f32 0.0, %v1863
        %v1865 = vpop.f32.mrb[0].mxu0
        %v1866 = vadd.f32 0.0, %v1865
        %1867 = vmatprep.mubr.f32.mxu0 0.0
        %1868 = vmatmul.mubr.f32.gmra.mrb[0].mxu0 %v1738
        %v1869 = vpop.f32.mrb[0].mxu0
        %v1870 = vadd.f32 0.0, %v1869
        %v1871 = vpop.f32.mrb[0].mxu0
        %v1872 = vadd.f32 0.0, %v1871
        %1873 = vmatprep.mubr.f32.mxu0 0.0
        %1874 = vmatmul.mubr.f32.gmra.mrb[0].mxu0 %v1741
        %v1875 = vpop.f32.mrb[0].mxu0
        %v1876 = vadd.f32 0.0, %v1875
        %v1877 = vpop.f32.mrb[0].mxu0
        %v1878 = vadd.f32 0.0, %v1877
        %1879 = vmatprep.mubr.f32.mxu0 0.0
        %1880 = vmatmul.mubr.f32.gmra.mrb[0].mxu0 %v1744
        %v1881 = vpop.f32.mrb[0].mxu0
        %v1882 = vadd.f32 0.0, %v1881
        %v1883 = vpop.f32.mrb[0].mxu0
        %v1884 = vadd.f32 0.0, %v1883
        %1885 = vmatprep.mubr.f32.mxu0 0.0
        %1886 = vmatmul.mubr.f32.gmra.mrb[0].mxu0 %v1747
        %v1887 = vpop.f32.mrb[0].mxu0
        %v1888 = vadd.f32 0.0, %v1887
        %v1889 = vpop.f32.mrb[0].mxu0
        %v1890 = vadd.f32 0.0, %v1889
        %1891 = vmatprep.mubr.f32.mxu0 0.0
        %1892 = vmatmul.mubr.f32.gmra.mrb[0].mxu0 %v1750
        %v1893 = vpop.f32.mrb[0].mxu0
        %v1894 = vadd.f32 0.0, %v1893
        %v1895 = vpop.f32.mrb[0].mxu0
        %v1896 = vadd.f32 0.0, %v1895
        %1897 = vmatprep.mubr.f32.mxu0 0.0
        %1898 = vmatmul.mubr.f32.gmra.mrb[0].mxu0 %v1753
        %v1899 = vpop.f32.mrb[0].mxu0
        %v1900 = vadd.f32 0.0, %v1899
        %v1901 = vpop.f32.mrb[0].mxu0
        %v1902 = vadd.f32 0.0, %v1901
        %1903 = vmatprep.mubr.f32.mxu0 0.0
        %1904 = vmatmul.mubr.f32.gmra.mrb[0].mxu0 %v1756
        %v1905 = vpop.f32.mrb[0].mxu0
        %v1906 = vadd.f32 0.0, %v1905
        %v1907 = vpop.f32.mrb[0].mxu0
        %v1908 = vadd.f32 0.0, %v1907
        %1909 = vmatprep.mubr.f32.mxu0 0.0
        %1910 = vmatmul.mubr.f32.gmra.mrb[0].mxu0 %v1759
        %v1911 = vpop.f32.mrb[0].mxu0
        %v1912 = vadd.f32 0.0, %v1911
        %v1913 = vpop.f32.mrb[0].mxu0
        %v1914 = vadd.f32 0.0, %v1913
        %1915 = vmatprep.mubr.f32.mxu0 0.0
        %1916 = vmatmul.mubr.f32.gmra.mrb[0].mxu0 %v1762
        %v1917 = vpop.f32.mrb[0].mxu0
        %v1918 = vadd.f32 0.0, %v1917
        %v1919 = vpop.f32.mrb[0].mxu0
        %v1920 = vadd.f32 0.0, %v1919
        %1921 = vmatprep.mubr.f32.mxu0 0.0
        %1922 = vmatmul.mubr.f32.gmra.mrb[0].mxu0 %v1765
        %v1923 = vpop.f32.mrb[0].mxu0
        %v1924 = vadd.f32 0.0, %v1923
        %v1925 = vpop.f32.mrb[0].mxu0
        %v1926 = vadd.f32 0.0, %v1925
        %1927 = vdwg.mxu0
        %v1928 = vmul.f32 %v1834, %v1588
        %v1929 = vmul.f32 %v1836, %v1590
        %v1930 = vmul.f32 %v1840, %v1594
        %v1931 = vmul.f32 %v1842, %v1596
        %v1932 = vmul.f32 %v1846, %v1600
        %v1933 = vmul.f32 %v1848, %v1602
        %v1934 = vmul.f32 %v1852, %v1606
        %v1935 = vmul.f32 %v1854, %v1608
        %v1936 = vmul.f32 %v1858, %v1612
        %v1937 = vmul.f32 %v1860, %v1614
        %v1938 = vmul.f32 %v1864, %v1618
        %v1939 = vmul.f32 %v1866, %v1620
        %v1940 = vmul.f32 %v1870, %v1624
        %v1941 = vmul.f32 %v1872, %v1626
        %v1942 = vmul.f32 %v1876, %v1630
        %v1943 = vmul.f32 %v1878, %v1632
        %v1944 = vmul.f32 %v1882, %v1636
        %v1945 = vmul.f32 %v1884, %v1638
        %v1946 = vmul.f32 %v1888, %v1642
        %v1947 = vmul.f32 %v1890, %v1644
        %v1948 = vmul.f32 %v1894, %v1648
        %v1949 = vmul.f32 %v1896, %v1650
        %v1950 = vmul.f32 %v1900, %v1654
        %v1951 = vmul.f32 %v1902, %v1656
        %v1952 = vmul.f32 %v1906, %v1660
        %v1953 = vmul.f32 %v1908, %v1662
        %v1954 = vmul.f32 %v1912, %v1666
        %v1955 = vmul.f32 %v1914, %v1668
        %v1956 = vmul.f32 %v1918, %v1672
        %v1957 = vmul.f32 %v1920, %v1674
        %v1958 = vmul.f32 %v1924, %v1678
        %v1959 = vmul.f32 %v1926, %v1680
        %1960 = vmatprep.subr.mxu0 0.0
        %1961 = vmatpush1.msra.mxu0 %v1686
        %1962 = vmatprep.subr.mxu0 0.0
        %1963 = vmatpush1.msra.mxu0 %v1687
        %1964 = vmatprep.subr.mxu0 0.0
        %1965 = vmatpush1.msra.mxu0 %v1688
        %1966 = vmatprep.subr.mxu0 0.0
        %1967 = vmatpush1.msra.mxu0 %v1689
        %1968 = vmatprep.subr.mxu0 0.0
        %1969 = vmatpush1.msra.mxu0 %v1690
        %1970 = vmatprep.subr.mxu0 0.0
        %1971 = vmatpush1.msra.mxu0 %v1691
        %1972 = vmatprep.subr.mxu0 0.0
        %1973 = vmatpush1.msra.mxu0 %v1692
        %1974 = vmatprep.subr.mxu0 0.0
        %1975 = vmatpush1.msra.mxu0 %v1693
        %1976 = vmatprep.subr.mxu0 0.0
        %1977 = vmatpush1.msra.mxu0 %v1694
        %1978 = vmatprep.subr.mxu0 0.0
        %1979 = vmatpush1.msra.mxu0 %v1695
        %1980 = vmatprep.subr.mxu0 0.0
        %1981 = vmatpush1.msra.mxu0 %v1696
        %1982 = vmatprep.subr.mxu0 0.0
        %1983 = vmatpush1.msra.mxu0 %v1697
        %1984 = vmatprep.subr.mxu0 0.0
        %1985 = vmatpush1.msra.mxu0 %v1698
        %1986 = vmatprep.subr.mxu0 0.0
        %1987 = vmatpush1.msra.mxu0 %v1699
        %1988 = vmatprep.subr.mxu0 0.0
        %1989 = vmatpush1.msra.mxu0 %v1700
        %1990 = vmatprep.subr.mxu0 0.0
        %1991 = vmatpush1.msra.mxu0 %v1701
        %1992 = vmatprep.subr.mxu0 0.0
        %1993 = vmatpush1.msra.mxu0 %v1702
        %1994 = vmatprep.subr.mxu0 0.0
        %1995 = vmatpush1.msra.mxu0 %v1703
        %1996 = vmatprep.subr.mxu0 0.0
        %1997 = vmatpush1.msra.mxu0 %v1704
        %1998 = vmatprep.subr.mxu0 0.0
        %1999 = vmatpush1.msra.mxu0 %v1705
        %2000 = vmatprep.subr.mxu0 0.0
        %2001 = vmatpush1.msra.mxu0 %v1706
        %2002 = vmatprep.subr.mxu0 0.0
        %2003 = vmatpush1.msra.mxu0 %v1707
        %2004 = vmatprep.subr.mxu0 0.0
        %2005 = vmatpush1.msra.mxu0 %v1708
        %2006 = vmatprep.subr.mxu0 0.0
        %2007 = vmatpush1.msra.mxu0 %v1709
        %2008 = vmatprep.subr.mxu0 0.0
        %2009 = vmatpush1.msra.mxu0 %v1710
        %2010 = vmatprep.subr.mxu0 0.0
        %2011 = vmatpush1.msra.mxu0 %v1711
        %2012 = vmatprep.subr.mxu0 0.0
        %2013 = vmatpush1.msra.mxu0 %v1712
        %2014 = vmatprep.subr.mxu0 0.0
        %2015 = vmatpush1.msra.mxu0 %v1713
        %2016 = vmatprep.subr.mxu0 0.0
        %2017 = vmatpush1.msra.mxu0 %v1714
        %2018 = vmatprep.subr.mxu0 0.0
        %2019 = vmatpush1.msra.mxu0 %v1715
        %2020 = vmatprep.subr.mxu0 0.0
        %2021 = vmatpush1.msra.mxu0 %v1716
        %2022 = vmatprep.subr.mxu0 0.0
        %2023 = vmatpush1.msra.mxu0 %v1717
        %2024 = vmatprep.mubr.f32.mxu0 %v1929
        %2025 = vmatmul.mubr.f32.gmra.mrb[0].mxu0 %v1928
        %v2026 = vpop.f32.mrb[0].mxu0
        %v2027 = vadd.f32 0.0, %v2026
        %v2028 = vpop.f32.mrb[0].mxu0
        %2029 = vmatprep.mubr.f32.mxu0 %v1931
        %2030 = vmatmul.mubr.f32.gmra.mrb[0].mxu0 %v1930
        %v2031 = vpop.f32.mrb[0].mxu0
        %v2032 = vadd.f32 0.0, %v2031
        %v2033 = vpop.f32.mrb[0].mxu0
        %2034 = vmatprep.mubr.f32.mxu0 %v1933
        %2035 = vmatmul.mubr.f32.gmra.mrb[0].mxu0 %v1932
        %v2036 = vpop.f32.mrb[0].mxu0
        %v2037 = vadd.f32 0.0, %v2036
        %v2038 = vpop.f32.mrb[0].mxu0
        %2039 = vmatprep.mubr.f32.mxu0 %v1935
        %2040 = vmatmul.mubr.f32.gmra.mrb[0].mxu0 %v1934
        %v2041 = vpop.f32.mrb[0].mxu0
        %v2042 = vadd.f32 0.0, %v2041
        %v2043 = vpop.f32.mrb[0].mxu0
        %2044 = vmatprep.mubr.f32.mxu0 %v1937
        %2045 = vmatmul.mubr.f32.gmra.mrb[0].mxu0 %v1936
        %v2046 = vpop.f32.mrb[0].mxu0
        %v2047 = vadd.f32 0.0, %v2046
        %v2048 = vpop.f32.mrb[0].mxu0
        %2049 = vmatprep.mubr.f32.mxu0 %v1939
        %2050 = vmatmul.mubr.f32.gmra.mrb[0].mxu0 %v1938
        %v2051 = vpop.f32.mrb[0].mxu0
        %v2052 = vadd.f32 0.0, %v2051
        %v2053 = vpop.f32.mrb[0].mxu0
        %2054 = vmatprep.mubr.f32.mxu0 %v1941
        %2055 = vmatmul.mubr.f32.gmra.mrb[0].mxu0 %v1940
        %v2056 = vpop.f32.mrb[0].mxu0
        %v2057 = vadd.f32 0.0, %v2056
        %v2058 = vpop.f32.mrb[0].mxu0
        %2059 = vmatprep.mubr.f32.mxu0 %v1943
        %2060 = vmatmul.mubr.f32.gmra.mrb[0].mxu0 %v1942
        %v2061 = vpop.f32.mrb[0].mxu0
        %v2062 = vadd.f32 0.0, %v2061
        %v2063 = vpop.f32.mrb[0].mxu0
        %2064 = vmatprep.mubr.f32.mxu0 %v1945
        %2065 = vmatmul.mubr.f32.gmra.mrb[0].mxu0 %v1944
        %v2066 = vpop.f32.mrb[0].mxu0
        %v2067 = vadd.f32 0.0, %v2066
        %v2068 = vpop.f32.mrb[0].mxu0
        %2069 = vmatprep.mubr.f32.mxu0 %v1947
        %2070 = vmatmul.mubr.f32.gmra.mrb[0].mxu0 %v1946
        %v2071 = vpop.f32.mrb[0].mxu0
        %v2072 = vadd.f32 0.0, %v2071
        %v2073 = vpop.f32.mrb[0].mxu0
        %2074 = vmatprep.mubr.f32.mxu0 %v1949
        %2075 = vmatmul.mubr.f32.gmra.mrb[0].mxu0 %v1948
        %v2076 = vpop.f32.mrb[0].mxu0
        %v2077 = vadd.f32 0.0, %v2076
        %v2078 = vpop.f32.mrb[0].mxu0
        %2079 = vmatprep.mubr.f32.mxu0 %v1951
        %2080 = vmatmul.mubr.f32.gmra.mrb[0].mxu0 %v1950
        %v2081 = vpop.f32.mrb[0].mxu0
        %v2082 = vadd.f32 0.0, %v2081
        %v2083 = vpop.f32.mrb[0].mxu0
        %2084 = vmatprep.mubr.f32.mxu0 %v1953
        %2085 = vmatmul.mubr.f32.gmra.mrb[0].mxu0 %v1952
        %v2086 = vpop.f32.mrb[0].mxu0
        %v2087 = vadd.f32 0.0, %v2086
        %v2088 = vpop.f32.mrb[0].mxu0
        %2089 = vmatprep.mubr.f32.mxu0 %v1955
        %2090 = vmatmul.mubr.f32.gmra.mrb[0].mxu0 %v1954
        %v2091 = vpop.f32.mrb[0].mxu0
        %v2092 = vadd.f32 0.0, %v2091
        %v2093 = vpop.f32.mrb[0].mxu0
        %2094 = vmatprep.mubr.f32.mxu0 %v1957
        %2095 = vmatmul.mubr.f32.gmra.mrb[0].mxu0 %v1956
        %v2096 = vpop.f32.mrb[0].mxu0
        %v2097 = vadd.f32 0.0, %v2096
        %v2098 = vpop.f32.mrb[0].mxu0
        %2099 = vmatprep.mubr.f32.mxu0 %v1959
        %2100 = vmatmul.mubr.f32.gmra.mrb[0].mxu0 %v1958
        %v2101 = vpop.f32.mrb[0].mxu0
        %v2102 = vadd.f32 0.0, %v2101
        %v2103 = vpop.f32.mrb[0].mxu0
        %2104 = vdwg.mxu0
        %v2105 = vld [vmem:[#allocation2 + $0x20] sm:$0xff]
        %v2106 = vld [vmem:[#allocation2 + $0x58] sm:$0xff]
        %v2107 = vld [vmem:[#allocation2 + $0x90] sm:$0xff]
        %v2108 = vld [vmem:[#allocation2 + $0xc8] sm:$0xff]
        %v2109 = vld [vmem:[#allocation2 + $0x100] ss:$0 sm:$0xff]
        %v2110 = vld [vmem:[#allocation2 + $0x28] sm:$0xff]
        %v2111 = vld [vmem:[#allocation2 + $0x60] sm:$0xff]
        %v2112 = vld [vmem:[#allocation2 + $0x98] sm:$0xff]
        %v2113 = vld [vmem:[#allocation2 + $0xd0] sm:$0xff]
        %v2114 = vld [vmem:[#allocation2 + $0x108] ss:$0 sm:$0xff]
        %v2116 = vsel %vm262, %v2027, 0
        %v2119 = vsel %vm262, %v2032, 0
        %v2122 = vsel %vm262, %v2037, 0
        %v2125 = vsel %vm262, %v2042, 0
        %v2128 = vsel %vm262, %v2047, 0
        %v2131 = vsel %vm262, %v2052, 0
        %v2134 = vsel %vm262, %v2057, 0
        %v2137 = vsel %vm262, %v2062, 0
        %v2140 = vsel %vm262, %v2067, 0
        %v2143 = vsel %vm262, %v2072, 0
        %v2146 = vsel %vm262, %v2077, 0
        %v2149 = vsel %vm262, %v2082, 0
        %v2152 = vsel %vm262, %v2087, 0
        %v2155 = vsel %vm262, %v2092, 0
        %v2158 = vsel %vm262, %v2097, 0
        %v2161 = vsel %vm262, %v2102, 0
        %2163 = vmatprep.subr.mxu0 0.0
        %2164 = vmatpush1.msra.mxu0 %v2105
        %2165 = vmatprep.subr.mxu0 0.0
        %2166 = vmatpush1.msra.mxu0 %v2106
        %2167 = vmatprep.subr.mxu0 0.0
        %2168 = vmatpush1.msra.mxu0 %v2107
        %2169 = vmatprep.subr.mxu0 0.0
        %2170 = vmatpush1.msra.mxu0 %v2108
        %2171 = vmatprep.subr.mxu0 0.0
        %2172 = vmatpush1.msra.mxu0 0.0
        %2173 = vmatprep.subr.mxu0 0.0
        %2174 = vmatpush1.msra.mxu0 0.0
        %2175 = vmatprep.subr.mxu0 0.0
        %2176 = vmatpush1.msra.mxu0 0.0
        %2177 = vmatprep.subr.mxu0 0.0
        %2178 = vmatpush1.msra.mxu0 0.0
        %2179 = vmatprep.subr.mxu0 0.0
        %2180 = vmatpush1.msra.mxu0 0.0
        %2181 = vmatprep.subr.mxu0 0.0
        %2182 = vmatpush1.msra.mxu0 0.0
        %2183 = vmatprep.subr.mxu0 0.0
        %2184 = vmatpush1.msra.mxu0 0.0
        %2185 = vmatprep.subr.mxu0 0.0
        %2186 = vmatpush1.msra.mxu0 0.0
        %2187 = vmatprep.subr.mxu0 0.0
        %2188 = vmatpush1.msra.mxu0 0.0
        %2189 = vmatprep.subr.mxu0 0.0
        %2190 = vmatpush1.msra.mxu0 0.0
        %2191 = vmatprep.subr.mxu0 0.0
        %2192 = vmatpush1.msra.mxu0 0.0
        %2193 = vmatprep.subr.mxu0 0.0
        %2194 = vmatpush1.msra.mxu0 0.0
        %2195 = vmatprep.subr.mxu0 0.0
        %2196 = vmatpush1.msra.mxu0 0.0
        %2197 = vmatprep.subr.mxu0 0.0
        %2198 = vmatpush1.msra.mxu0 0.0
        %2199 = vmatprep.subr.mxu0 0.0
        %2200 = vmatpush1.msra.mxu0 0.0
        %2201 = vmatprep.subr.mxu0 0.0
        %2202 = vmatpush1.msra.mxu0 0.0
        %2203 = vmatprep.subr.mxu0 0.0
        %2204 = vmatpush1.msra.mxu0 0.0
        %2205 = vmatprep.subr.mxu0 0.0
        %2206 = vmatpush1.msra.mxu0 0.0
        %2207 = vmatprep.subr.mxu0 0.0
        %2208 = vmatpush1.msra.mxu0 0.0
        %2209 = vmatprep.subr.mxu0 0.0
        %2210 = vmatpush1.msra.mxu0 0.0
        %2211 = vmatprep.subr.mxu0 0.0
        %2212 = vmatpush1.msra.mxu0 0.0
        %2213 = vmatprep.subr.mxu0 0.0
        %2214 = vmatpush1.msra.mxu0 0.0
        %2215 = vmatprep.subr.mxu0 0.0
        %2216 = vmatpush1.msra.mxu0 0.0
        %2217 = vmatprep.subr.mxu0 0.0
        %2218 = vmatpush1.msra.mxu0 0.0
        %2219 = vmatprep.subr.mxu0 0.0
        %2220 = vmatpush1.msra.mxu0 0.0
        %2221 = vmatprep.subr.mxu0 0.0
        %2222 = vmatpush1.msra.mxu0 0.0
        %2223 = vmatprep.subr.mxu0 0.0
        %2224 = vmatpush1.msra.mxu0 0.0
        %2225 = vmatprep.subr.mxu0 0.0
        %2226 = vmatpush1.msra.mxu0 0.0
        %2227 = vmatprep.mubr.f32.mxu0 0.0
        %2228 = vmatmul.mubr.f32.gmra.mrb[0].mxu0 %v2116
        %v2229 = vpop.f32.mrb[0].mxu0
        %v2230 = vadd.f32 %v2109, %v2229
        %v2231 = vpop.f32.mrb[0].mxu0
        %2232 = vmatprep.mubr.f32.mxu0 0.0
        %2233 = vmatmul.mubr.f32.gmra.mrb[0].mxu0 %v2119
        %v2234 = vpop.f32.mrb[0].mxu0
        %v2235 = vadd.f32 %v2109, %v2234
        %v2236 = vpop.f32.mrb[0].mxu0
        %2237 = vmatprep.mubr.f32.mxu0 0.0
        %2238 = vmatmul.mubr.f32.gmra.mrb[0].mxu0 %v2122
        %v2239 = vpop.f32.mrb[0].mxu0
        %v2240 = vadd.f32 %v2109, %v2239
        %v2241 = vpop.f32.mrb[0].mxu0
        %2242 = vmatprep.mubr.f32.mxu0 0.0
        %2243 = vmatmul.mubr.f32.gmra.mrb[0].mxu0 %v2125
        %v2244 = vpop.f32.mrb[0].mxu0
        %v2245 = vadd.f32 %v2109, %v2244
        %v2246 = vpop.f32.mrb[0].mxu0
        %2247 = vmatprep.mubr.f32.mxu0 0.0
        %2248 = vmatmul.mubr.f32.gmra.mrb[0].mxu0 %v2128
        %v2249 = vpop.f32.mrb[0].mxu0
        %v2250 = vadd.f32 %v2109, %v2249
        %v2251 = vpop.f32.mrb[0].mxu0
        %2252 = vmatprep.mubr.f32.mxu0 0.0
        %2253 = vmatmul.mubr.f32.gmra.mrb[0].mxu0 %v2131
        %v2254 = vpop.f32.mrb[0].mxu0
        %v2255 = vadd.f32 %v2109, %v2254
        %v2256 = vpop.f32.mrb[0].mxu0
        %2257 = vmatprep.mubr.f32.mxu0 0.0
        %2258 = vmatmul.mubr.f32.gmra.mrb[0].mxu0 %v2134
        %v2259 = vpop.f32.mrb[0].mxu0
        %v2260 = vadd.f32 %v2109, %v2259
        %v2261 = vpop.f32.mrb[0].mxu0
        %2262 = vmatprep.mubr.f32.mxu0 0.0
        %2263 = vmatmul.mubr.f32.gmra.mrb[0].mxu0 %v2137
        %v2264 = vpop.f32.mrb[0].mxu0
        %v2265 = vadd.f32 %v2109, %v2264
        %v2266 = vpop.f32.mrb[0].mxu0
        %2267 = vmatprep.mubr.f32.mxu0 0.0
        %2268 = vmatmul.mubr.f32.gmra.mrb[0].mxu0 %v2140
        %v2269 = vpop.f32.mrb[0].mxu0
        %v2270 = vadd.f32 %v2109, %v2269
        %v2271 = vpop.f32.mrb[0].mxu0
        %2272 = vmatprep.mubr.f32.mxu0 0.0
        %2273 = vmatmul.mubr.f32.gmra.mrb[0].mxu0 %v2143
        %v2274 = vpop.f32.mrb[0].mxu0
        %v2275 = vadd.f32 %v2109, %v2274
        %v2276 = vpop.f32.mrb[0].mxu0
        %2277 = vmatprep.mubr.f32.mxu0 0.0
        %2278 = vmatmul.mubr.f32.gmra.mrb[0].mxu0 %v2146
        %v2279 = vpop.f32.mrb[0].mxu0
        %v2280 = vadd.f32 %v2109, %v2279
        %v2281 = vpop.f32.mrb[0].mxu0
        %2282 = vmatprep.mubr.f32.mxu0 0.0
        %2283 = vmatmul.mubr.f32.gmra.mrb[0].mxu0 %v2149
        %v2284 = vpop.f32.mrb[0].mxu0
        %v2285 = vadd.f32 %v2109, %v2284
        %v2286 = vpop.f32.mrb[0].mxu0
        %2287 = vmatprep.mubr.f32.mxu0 0.0
        %2288 = vmatmul.mubr.f32.gmra.mrb[0].mxu0 %v2152
        %v2289 = vpop.f32.mrb[0].mxu0
        %v2290 = vadd.f32 %v2109, %v2289
        %v2291 = vpop.f32.mrb[0].mxu0
        %2292 = vmatprep.mubr.f32.mxu0 0.0
        %2293 = vmatmul.mubr.f32.gmra.mrb[0].mxu0 %v2155
        %v2294 = vpop.f32.mrb[0].mxu0
        %v2295 = vadd.f32 %v2109, %v2294
        %v2296 = vpop.f32.mrb[0].mxu0
        %2297 = vmatprep.mubr.f32.mxu0 0.0
        %2298 = vmatmul.mubr.f32.gmra.mrb[0].mxu0 %v2158
        %v2299 = vpop.f32.mrb[0].mxu0
        %v2300 = vadd.f32 %v2109, %v2299
        %v2301 = vpop.f32.mrb[0].mxu0
        %2302 = vmatprep.mubr.f32.mxu0 0.0
        %2303 = vmatmul.mubr.f32.gmra.mrb[0].mxu0 %v2161
        %v2304 = vpop.f32.mrb[0].mxu0
        %v2305 = vadd.f32 %v2109, %v2304
        %v2306 = vpop.f32.mrb[0].mxu0
        %2307 = vdwg.mxu0
        %v2308 = vmax.f32 %v2230, 0.0
        %v2309 = vmax.f32 %v2235, 0.0
        %v2310 = vmax.f32 %v2240, 0.0
        %v2311 = vmax.f32 %v2245, 0.0
        %v2312 = vmax.f32 %v2250, 0.0
        %v2313 = vmax.f32 %v2255, 0.0
        %v2314 = vmax.f32 %v2260, 0.0
        %v2315 = vmax.f32 %v2265, 0.0
        %v2316 = vmax.f32 %v2270, 0.0
        %v2317 = vmax.f32 %v2275, 0.0
        %v2318 = vmax.f32 %v2280, 0.0
        %v2319 = vmax.f32 %v2285, 0.0
        %v2320 = vmax.f32 %v2290, 0.0
        %v2321 = vmax.f32 %v2295, 0.0
        %v2322 = vmax.f32 %v2300, 0.0
        %v2323 = vmax.f32 %v2305, 0.0
        %v2325 = vsel %vm262, %v2308, 0
        %v2328 = vsel %vm262, %v2309, 0
        %v2331 = vsel %vm262, %v2310, 0
        %v2334 = vsel %vm262, %v2311, 0
        %v2337 = vsel %vm262, %v2312, 0
        %v2340 = vsel %vm262, %v2313, 0
        %v2343 = vsel %vm262, %v2314, 0
        %v2346 = vsel %vm262, %v2315, 0
        %v2349 = vsel %vm262, %v2316, 0
        %v2352 = vsel %vm262, %v2317, 0
        %v2355 = vsel %vm262, %v2318, 0
        %v2358 = vsel %vm262, %v2319, 0
        %v2361 = vsel %vm262, %v2320, 0
        %v2364 = vsel %vm262, %v2321, 0
        %v2367 = vsel %vm262, %v2322, 0
        %v2370 = vsel %vm262, %v2323, 0
        %2372 = vmatprep.subr.mxu0 0.0
        %2373 = vmatpush1.msra.mxu0 %v2110
        %2374 = vmatprep.subr.mxu0 0.0
        %2375 = vmatpush1.msra.mxu0 %v2111
        %2376 = vmatprep.subr.mxu0 0.0
        %2377 = vmatpush1.msra.mxu0 %v2112
        %2378 = vmatprep.subr.mxu0 0.0
        %2379 = vmatpush1.msra.mxu0 %v2113
        %2380 = vmatprep.subr.mxu0 0.0
        %2381 = vmatpush1.msra.mxu0 0.0
        %2382 = vmatprep.subr.mxu0 0.0
        %2383 = vmatpush1.msra.mxu0 0.0
        %2384 = vmatprep.subr.mxu0 0.0
        %2385 = vmatpush1.msra.mxu0 0.0
        %2386 = vmatprep.subr.mxu0 0.0
        %2387 = vmatpush1.msra.mxu0 0.0
        %2388 = vmatprep.subr.mxu0 0.0
        %2389 = vmatpush1.msra.mxu0 0.0
        %2390 = vmatprep.subr.mxu0 0.0
        %2391 = vmatpush1.msra.mxu0 0.0
        %2392 = vmatprep.subr.mxu0 0.0
        %2393 = vmatpush1.msra.mxu0 0.0
        %2394 = vmatprep.subr.mxu0 0.0
        %2395 = vmatpush1.msra.mxu0 0.0
        %2396 = vmatprep.subr.mxu0 0.0
        %2397 = vmatpush1.msra.mxu0 0.0
        %2398 = vmatprep.subr.mxu0 0.0
        %2399 = vmatpush1.msra.mxu0 0.0
        %2400 = vmatprep.subr.mxu0 0.0
        %2401 = vmatpush1.msra.mxu0 0.0
        %2402 = vmatprep.subr.mxu0 0.0
        %2403 = vmatpush1.msra.mxu0 0.0
        %2404 = vmatprep.subr.mxu0 0.0
        %2405 = vmatpush1.msra.mxu0 0.0
        %2406 = vmatprep.subr.mxu0 0.0
        %2407 = vmatpush1.msra.mxu0 0.0
        %2408 = vmatprep.subr.mxu0 0.0
        %2409 = vmatpush1.msra.mxu0 0.0
        %2410 = vmatprep.subr.mxu0 0.0
        %2411 = vmatpush1.msra.mxu0 0.0
        %2412 = vmatprep.subr.mxu0 0.0
        %2413 = vmatpush1.msra.mxu0 0.0
        %2414 = vmatprep.subr.mxu0 0.0
        %2415 = vmatpush1.msra.mxu0 0.0
        %2416 = vmatprep.subr.mxu0 0.0
        %2417 = vmatpush1.msra.mxu0 0.0
        %2418 = vmatprep.subr.mxu0 0.0
        %2419 = vmatpush1.msra.mxu0 0.0
        %2420 = vmatprep.subr.mxu0 0.0
        %2421 = vmatpush1.msra.mxu0 0.0
        %2422 = vmatprep.subr.mxu0 0.0
        %2423 = vmatpush1.msra.mxu0 0.0
        %2424 = vmatprep.subr.mxu0 0.0
        %2425 = vmatpush1.msra.mxu0 0.0
        %2426 = vmatprep.subr.mxu0 0.0
        %2427 = vmatpush1.msra.mxu0 0.0
        %2428 = vmatprep.subr.mxu0 0.0
        %2429 = vmatpush1.msra.mxu0 0.0
        %2430 = vmatprep.subr.mxu0 0.0
        %2431 = vmatpush1.msra.mxu0 0.0
        %2432 = vmatprep.subr.mxu0 0.0
        %2433 = vmatpush1.msra.mxu0 0.0
        %2434 = vmatprep.subr.mxu0 0.0
        %2435 = vmatpush1.msra.mxu0 0.0
        %2436 = vmatprep.mubr.f32.mxu0 0.0
        %2437 = vmatmul.mubr.f32.gmra.mrb[0].mxu0 %v2325
        %v2438 = vpop.f32.mrb[0].mxu0
        %v2439 = vadd.f32 %v2114, %v2438
        %v2440 = vpop.f32.mrb[0].mxu0
        %2441 = vmatprep.mubr.f32.mxu0 0.0
        %2442 = vmatmul.mubr.f32.gmra.mrb[0].mxu0 %v2328
        %v2443 = vpop.f32.mrb[0].mxu0
        %v2444 = vadd.f32 %v2114, %v2443
        %v2445 = vpop.f32.mrb[0].mxu0
        %2446 = vmatprep.mubr.f32.mxu0 0.0
        %2447 = vmatmul.mubr.f32.gmra.mrb[0].mxu0 %v2331
        %v2448 = vpop.f32.mrb[0].mxu0
        %v2449 = vadd.f32 %v2114, %v2448
        %v2450 = vpop.f32.mrb[0].mxu0
        %2451 = vmatprep.mubr.f32.mxu0 0.0
        %2452 = vmatmul.mubr.f32.gmra.mrb[0].mxu0 %v2334
        %v2453 = vpop.f32.mrb[0].mxu0
        %v2454 = vadd.f32 %v2114, %v2453
        %v2455 = vpop.f32.mrb[0].mxu0
        %2456 = vmatprep.mubr.f32.mxu0 0.0
        %2457 = vmatmul.mubr.f32.gmra.mrb[0].mxu0 %v2337
        %v2458 = vpop.f32.mrb[0].mxu0
        %v2459 = vadd.f32 %v2114, %v2458
        %v2460 = vpop.f32.mrb[0].mxu0
        %2461 = vmatprep.mubr.f32.mxu0 0.0
        %2462 = vmatmul.mubr.f32.gmra.mrb[0].mxu0 %v2340
        %v2463 = vpop.f32.mrb[0].mxu0
        %v2464 = vadd.f32 %v2114, %v2463
        %v2465 = vpop.f32.mrb[0].mxu0
        %2466 = vmatprep.mubr.f32.mxu0 0.0
        %2467 = vmatmul.mubr.f32.gmra.mrb[0].mxu0 %v2343
        %v2468 = vpop.f32.mrb[0].mxu0
        %v2469 = vadd.f32 %v2114, %v2468
        %v2470 = vpop.f32.mrb[0].mxu0
        %2471 = vmatprep.mubr.f32.mxu0 0.0
        %2472 = vmatmul.mubr.f32.gmra.mrb[0].mxu0 %v2346
        %v2473 = vpop.f32.mrb[0].mxu0
        %v2474 = vadd.f32 %v2114, %v2473
        %v2475 = vpop.f32.mrb[0].mxu0
        %2476 = vmatprep.mubr.f32.mxu0 0.0
        %2477 = vmatmul.mubr.f32.gmra.mrb[0].mxu0 %v2349
        %v2478 = vpop.f32.mrb[0].mxu0
        %v2479 = vadd.f32 %v2114, %v2478
        %v2480 = vpop.f32.mrb[0].mxu0
        %2481 = vmatprep.mubr.f32.mxu0 0.0
        %2482 = vmatmul.mubr.f32.gmra.mrb[0].mxu0 %v2352
        %v2483 = vpop.f32.mrb[0].mxu0
        %v2484 = vadd.f32 %v2114, %v2483
        %v2485 = vpop.f32.mrb[0].mxu0
        %2486 = vmatprep.mubr.f32.mxu0 0.0
        %2487 = vmatmul.mubr.f32.gmra.mrb[0].mxu0 %v2355
        %v2488 = vpop.f32.mrb[0].mxu0
        %v2489 = vadd.f32 %v2114, %v2488
        %v2490 = vpop.f32.mrb[0].mxu0
        %2491 = vmatprep.mubr.f32.mxu0 0.0
        %2492 = vmatmul.mubr.f32.gmra.mrb[0].mxu0 %v2358
        %v2493 = vpop.f32.mrb[0].mxu0
        %v2494 = vadd.f32 %v2114, %v2493
        %v2495 = vpop.f32.mrb[0].mxu0
        %2496 = vmatprep.mubr.f32.mxu0 0.0
        %2497 = vmatmul.mubr.f32.gmra.mrb[0].mxu0 %v2361
        %v2498 = vpop.f32.mrb[0].mxu0
        %v2499 = vadd.f32 %v2114, %v2498
        %v2500 = vpop.f32.mrb[0].mxu0
        %2501 = vmatprep.mubr.f32.mxu0 0.0
        %2502 = vmatmul.mubr.f32.gmra.mrb[0].mxu0 %v2364
        %v2503 = vpop.f32.mrb[0].mxu0
        %v2504 = vadd.f32 %v2114, %v2503
        %v2505 = vpop.f32.mrb[0].mxu0
        %2506 = vmatprep.mubr.f32.mxu0 0.0
        %2507 = vmatmul.mubr.f32.gmra.mrb[0].mxu0 %v2367
        %v2508 = vpop.f32.mrb[0].mxu0
        %v2509 = vadd.f32 %v2114, %v2508
        %v2510 = vpop.f32.mrb[0].mxu0
        %2511 = vmatprep.mubr.f32.mxu0 0.0
        %2512 = vmatmul.mubr.f32.gmra.mrb[0].mxu0 %v2370
        %v2513 = vpop.f32.mrb[0].mxu0
        %v2514 = vadd.f32 %v2114, %v2513
        %v2515 = vpop.f32.mrb[0].mxu0
        %2516 = vdwg.mxu0
        %v2517 = vmax.f32 %v2439, 0.0
        %v2518 = vmax.f32 %v2444, 0.0
        %v2519 = vmax.f32 %v2449, 0.0
        %v2520 = vmax.f32 %v2454, 0.0
        %v2521 = vmax.f32 %v2459, 0.0
        %v2522 = vmax.f32 %v2464, 0.0
        %v2523 = vmax.f32 %v2469, 0.0
        %v2524 = vmax.f32 %v2474, 0.0
        %v2525 = vmax.f32 %v2479, 0.0
        %v2526 = vmax.f32 %v2484, 0.0
        %v2527 = vmax.f32 %v2489, 0.0
        %v2528 = vmax.f32 %v2494, 0.0
        %v2529 = vmax.f32 %v2499, 0.0
        %v2530 = vmax.f32 %v2504, 0.0
        %v2531 = vmax.f32 %v2509, 0.0
        %v2532 = vmax.f32 %v2514, 0.0
        %v2533 = vld [vmem:[#allocation2 + $0x30] sm:$0xff]
        %v2534 = vld [vmem:[#allocation2 + $0x68] sm:$0xff]
        %v2535 = vld [vmem:[#allocation2 + $0xa0] sm:$0xff]
        %v2536 = vld [vmem:[#allocation2 + $0xd8] sm:$0xff]
        %v2537 = vld [vmem:[#allocation2 + $0x110] ss:$0 sm:$0xff]
        %2538 = vmatprep.subr.mxu0 0.0
        %2539 = vmatpush1.msra.mxu0 %v2535
        %2540 = vmatprep.subr.mxu0 0.0
        %2541 = vmatpush1.msra.mxu0 %v2536
        %2542 = vmatprep.subr.mxu0 0.0
        %2543 = vmatpush1.msra.mxu0 0.0
        %2544 = vmatprep.subr.mxu0 0.0
        %2545 = vmatpush1.msra.mxu0 0.0
        %2546 = vmatprep.subr.mxu0 0.0
        %2547 = vmatpush1.msra.mxu0 0.0
        %2548 = vmatprep.subr.mxu0 0.0
        %2549 = vmatpush1.msra.mxu0 0.0
        %2550 = vmatprep.subr.mxu0 0.0
        %2551 = vmatpush1.msra.mxu0 0.0
        %2552 = vmatprep.subr.mxu0 0.0
        %2553 = vmatpush1.msra.mxu0 0.0
        %2554 = vmatprep.subr.mxu0 0.0
        %2555 = vmatpush1.msra.mxu0 0.0
        %2556 = vmatprep.subr.mxu0 0.0
        %2557 = vmatpush1.msra.mxu0 0.0
        %2558 = vmatprep.subr.mxu0 0.0
        %2559 = vmatpush1.msra.mxu0 0.0
        %2560 = vmatprep.subr.mxu0 0.0
        %2561 = vmatpush1.msra.mxu0 0.0
        %2562 = vmatprep.subr.mxu0 0.0
        %2563 = vmatpush1.msra.mxu0 0.0
        %2564 = vmatprep.subr.mxu0 0.0
        %2565 = vmatpush1.msra.mxu0 0.0
        %2566 = vmatprep.subr.mxu0 0.0
        %2567 = vmatpush1.msra.mxu0 0.0
        %2568 = vmatprep.subr.mxu0 0.0
        %2569 = vmatpush1.msra.mxu0 0.0
        %2570 = vmatprep.subr.mxu0 0.0
        %2571 = vmatpush1.msra.mxu0 0.0
        %2572 = vmatprep.subr.mxu0 0.0
        %2573 = vmatpush1.msra.mxu0 0.0
        %2574 = vmatprep.subr.mxu0 0.0
        %2575 = vmatpush1.msra.mxu0 0.0
        %2576 = vmatprep.subr.mxu0 0.0
        %2577 = vmatpush1.msra.mxu0 0.0
        %2578 = vmatprep.subr.mxu0 0.0
        %2579 = vmatpush1.msra.mxu0 0.0
        %2580 = vmatprep.subr.mxu0 0.0
        %2581 = vmatpush1.msra.mxu0 0.0
        %2582 = vmatprep.subr.mxu0 0.0
        %2583 = vmatpush1.msra.mxu0 0.0
        %2584 = vmatprep.subr.mxu0 0.0
        %2585 = vmatpush1.msra.mxu0 0.0
        %2586 = vmatprep.subr.mxu0 0.0
        %2587 = vmatpush1.msra.mxu0 0.0
        %2588 = vmatprep.subr.mxu0 0.0
        %2589 = vmatpush1.msra.mxu0 0.0
        %2590 = vmatprep.subr.mxu0 0.0
        %2591 = vmatpush1.msra.mxu0 0.0
        %2592 = vmatprep.subr.mxu0 0.0
        %2593 = vmatpush1.msra.mxu0 0.0
        %2594 = vmatprep.subr.mxu0 0.0
        %2595 = vmatpush1.msra.mxu0 0.0
        %2596 = vmatprep.subr.mxu0 0.0
        %2597 = vmatpush1.msra.mxu0 0.0
        %2598 = vmatprep.subr.mxu0 0.0
        %2599 = vmatpush1.msra.mxu0 0.0
        %2600 = vmatprep.subr.mxu0 0.0
        %2601 = vmatpush1.msra.mxu0 0.0
        %2602 = vmatprep.mubr.f32.mxu0 0.0
        %2603 = vmatmul.mubr.f32.gmra.mrb[0].mxu0 %v1720
        %v2604 = vpop.f32.mrb[0].mxu0
        %v2605 = vadd.f32 0.0, %v2604
        %v2606 = vpop.f32.mrb[0].mxu0
        %2607 = vmatprep.mubr.f32.mxu0 0.0
        %2608 = vmatmul.mubr.f32.gmra.mrb[0].mxu0 %v1723
        %v2609 = vpop.f32.mrb[0].mxu0
        %v2610 = vadd.f32 0.0, %v2609
        %v2611 = vpop.f32.mrb[0].mxu0
        %2612 = vmatprep.mubr.f32.mxu0 0.0
        %2613 = vmatmul.mubr.f32.gmra.mrb[0].mxu0 %v1726
        %v2614 = vpop.f32.mrb[0].mxu0
        %v2615 = vadd.f32 0.0, %v2614
        %v2616 = vpop.f32.mrb[0].mxu0
        %2617 = vmatprep.mubr.f32.mxu0 0.0
        %2618 = vmatmul.mubr.f32.gmra.mrb[0].mxu0 %v1729
        %v2619 = vpop.f32.mrb[0].mxu0
        %v2620 = vadd.f32 0.0, %v2619
        %v2621 = vpop.f32.mrb[0].mxu0
        %2622 = vmatprep.mubr.f32.mxu0 0.0
        %2623 = vmatmul.mubr.f32.gmra.mrb[0].mxu0 %v1732
        %v2624 = vpop.f32.mrb[0].mxu0
        %v2625 = vadd.f32 0.0, %v2624
        %v2626 = vpop.f32.mrb[0].mxu0
        %2627 = vmatprep.mubr.f32.mxu0 0.0
        %2628 = vmatmul.mubr.f32.gmra.mrb[0].mxu0 %v1735
        %v2629 = vpop.f32.mrb[0].mxu0
        %v2630 = vadd.f32 0.0, %v2629
        %v2631 = vpop.f32.mrb[0].mxu0
        %2632 = vmatprep.mubr.f32.mxu0 0.0
        %2633 = vmatmul.mubr.f32.gmra.mrb[0].mxu0 %v1738
        %v2634 = vpop.f32.mrb[0].mxu0
        %v2635 = vadd.f32 0.0, %v2634
        %v2636 = vpop.f32.mrb[0].mxu0
        %2637 = vmatprep.mubr.f32.mxu0 0.0
        %2638 = vmatmul.mubr.f32.gmra.mrb[0].mxu0 %v1741
        %v2639 = vpop.f32.mrb[0].mxu0
        %v2640 = vadd.f32 0.0, %v2639
        %v2641 = vpop.f32.mrb[0].mxu0
        %2642 = vmatprep.mubr.f32.mxu0 0.0
        %2643 = vmatmul.mubr.f32.gmra.mrb[0].mxu0 %v1744
        %v2644 = vpop.f32.mrb[0].mxu0
        %v2645 = vadd.f32 0.0, %v2644
        %v2646 = vpop.f32.mrb[0].mxu0
        %2647 = vmatprep.mubr.f32.mxu0 0.0
        %2648 = vmatmul.mubr.f32.gmra.mrb[0].mxu0 %v1747
        %v2649 = vpop.f32.mrb[0].mxu0
        %v2650 = vadd.f32 0.0, %v2649
        %v2651 = vpop.f32.mrb[0].mxu0
        %2652 = vmatprep.mubr.f32.mxu0 0.0
        %2653 = vmatmul.mubr.f32.gmra.mrb[0].mxu0 %v1750
        %v2654 = vpop.f32.mrb[0].mxu0
        %v2655 = vadd.f32 0.0, %v2654
        %v2656 = vpop.f32.mrb[0].mxu0
        %2657 = vmatprep.mubr.f32.mxu0 0.0
        %2658 = vmatmul.mubr.f32.gmra.mrb[0].mxu0 %v1753
        %v2659 = vpop.f32.mrb[0].mxu0
        %v2660 = vadd.f32 0.0, %v2659
        %v2661 = vpop.f32.mrb[0].mxu0
        %2662 = vmatprep.mubr.f32.mxu0 0.0
        %2663 = vmatmul.mubr.f32.gmra.mrb[0].mxu0 %v1756
        %v2664 = vpop.f32.mrb[0].mxu0
        %v2665 = vadd.f32 0.0, %v2664
        %v2666 = vpop.f32.mrb[0].mxu0
        %2667 = vmatprep.mubr.f32.mxu0 0.0
        %2668 = vmatmul.mubr.f32.gmra.mrb[0].mxu0 %v1759
        %v2669 = vpop.f32.mrb[0].mxu0
        %v2670 = vadd.f32 0.0, %v2669
        %v2671 = vpop.f32.mrb[0].mxu0
        %2672 = vmatprep.mubr.f32.mxu0 0.0
        %2673 = vmatmul.mubr.f32.gmra.mrb[0].mxu0 %v1762
        %v2674 = vpop.f32.mrb[0].mxu0
        %v2675 = vadd.f32 0.0, %v2674
        %v2676 = vpop.f32.mrb[0].mxu0
        %2677 = vmatprep.mubr.f32.mxu0 0.0
        %2678 = vmatmul.mubr.f32.gmra.mrb[0].mxu0 %v1765
        %v2679 = vpop.f32.mrb[0].mxu0
        %v2680 = vadd.f32 0.0, %v2679
        %v2681 = vpop.f32.mrb[0].mxu0
        %2682 = vdwg.mxu0
        %v2684 = vsel %vm1718, %v2517, 0
        %v2687 = vsel %vm1718, %v2518, 0
        %v2690 = vsel %vm1718, %v2519, 0
        %v2693 = vsel %vm1718, %v2520, 0
        %v2696 = vsel %vm1718, %v2521, 0
        %v2699 = vsel %vm1718, %v2522, 0
        %v2702 = vsel %vm1718, %v2523, 0
        %v2705 = vsel %vm1718, %v2524, 0
        %v2708 = vsel %vm1718, %v2525, 0
        %v2711 = vsel %vm1718, %v2526, 0
        %v2714 = vsel %vm1718, %v2527, 0
        %v2717 = vsel %vm1718, %v2528, 0
        %v2720 = vsel %vm1718, %v2529, 0
        %v2723 = vsel %vm1718, %v2530, 0
        %v2726 = vsel %vm1718, %v2531, 0
        %v2729 = vsel %vm1718, %v2532, 0
        %2731 = vmatprep.subr.mxu0 0.0
        %2732 = vmatpush1.msra.mxu0 %v2533
        %2733 = vmatprep.subr.mxu0 0.0
        %2734 = vmatpush1.msra.mxu0 %v2534
        %2735 = vmatprep.subr.mxu0 0.0
        %2736 = vmatpush1.msra.mxu0 0.0
        %2737 = vmatprep.subr.mxu0 0.0
        %2738 = vmatpush1.msra.mxu0 0.0
        %2739 = vmatprep.subr.mxu0 0.0
        %2740 = vmatpush1.msra.mxu0 0.0
        %2741 = vmatprep.subr.mxu0 0.0
        %2742 = vmatpush1.msra.mxu0 0.0
        %2743 = vmatprep.subr.mxu0 0.0
        %2744 = vmatpush1.msra.mxu0 0.0
        %2745 = vmatprep.subr.mxu0 0.0
        %2746 = vmatpush1.msra.mxu0 0.0
        %2747 = vmatprep.subr.mxu0 0.0
        %2748 = vmatpush1.msra.mxu0 0.0
        %2749 = vmatprep.subr.mxu0 0.0
        %2750 = vmatpush1.msra.mxu0 0.0
        %2751 = vmatprep.subr.mxu0 0.0
        %2752 = vmatpush1.msra.mxu0 0.0
        %2753 = vmatprep.subr.mxu0 0.0
        %2754 = vmatpush1.msra.mxu0 0.0
        %2755 = vmatprep.subr.mxu0 0.0
        %2756 = vmatpush1.msra.mxu0 0.0
        %2757 = vmatprep.subr.mxu0 0.0
        %2758 = vmatpush1.msra.mxu0 0.0
        %2759 = vmatprep.subr.mxu0 0.0
        %2760 = vmatpush1.msra.mxu0 0.0
        %2761 = vmatprep.subr.mxu0 0.0
        %2762 = vmatpush1.msra.mxu0 0.0
        %2763 = vmatprep.subr.mxu0 0.0
        %2764 = vmatpush1.msra.mxu0 0.0
        %2765 = vmatprep.subr.mxu0 0.0
        %2766 = vmatpush1.msra.mxu0 0.0
        %2767 = vmatprep.subr.mxu0 0.0
        %2768 = vmatpush1.msra.mxu0 0.0
        %2769 = vmatprep.subr.mxu0 0.0
        %2770 = vmatpush1.msra.mxu0 0.0
        %2771 = vmatprep.subr.mxu0 0.0
        %2772 = vmatpush1.msra.mxu0 0.0
        %2773 = vmatprep.subr.mxu0 0.0
        %2774 = vmatpush1.msra.mxu0 0.0
        %2775 = vmatprep.subr.mxu0 0.0
        %2776 = vmatpush1.msra.mxu0 0.0
        %2777 = vmatprep.subr.mxu0 0.0
        %2778 = vmatpush1.msra.mxu0 0.0
        %2779 = vmatprep.subr.mxu0 0.0
        %2780 = vmatpush1.msra.mxu0 0.0
        %2781 = vmatprep.subr.mxu0 0.0
        %2782 = vmatpush1.msra.mxu0 0.0
        %2783 = vmatprep.subr.mxu0 0.0
        %2784 = vmatpush1.msra.mxu0 0.0
        %2785 = vmatprep.subr.mxu0 0.0
        %2786 = vmatpush1.msra.mxu0 0.0
        %2787 = vmatprep.subr.mxu0 0.0
        %2788 = vmatpush1.msra.mxu0 0.0
        %2789 = vmatprep.subr.mxu0 0.0
        %2790 = vmatpush1.msra.mxu0 0.0
        %2791 = vmatprep.subr.mxu0 0.0
        %2792 = vmatpush1.msra.mxu0 0.0
        %2793 = vmatprep.subr.mxu0 0.0
        %2794 = vmatpush1.msra.mxu0 0.0
        %2795 = vmatprep.mubr.f32.mxu0 0.0
        %2796 = vmatmul.mubr.f32.gmra.mrb[0].mxu0 %v2684
        %v2797 = vpop.f32.mrb[0].mxu0
        %v2798 = vadd.f32 %v2605, %v2797
        %v2799 = vpop.f32.mrb[0].mxu0
        %2800 = vmatprep.mubr.f32.mxu0 0.0
        %2801 = vmatmul.mubr.f32.gmra.mrb[0].mxu0 %v2687
        %v2802 = vpop.f32.mrb[0].mxu0
        %v2803 = vadd.f32 %v2610, %v2802
        %v2804 = vpop.f32.mrb[0].mxu0
        %2805 = vmatprep.mubr.f32.mxu0 0.0
        %2806 = vmatmul.mubr.f32.gmra.mrb[0].mxu0 %v2690
        %v2807 = vpop.f32.mrb[0].mxu0
        %v2808 = vadd.f32 %v2615, %v2807
        %v2809 = vpop.f32.mrb[0].mxu0
        %2810 = vmatprep.mubr.f32.mxu0 0.0
        %2811 = vmatmul.mubr.f32.gmra.mrb[0].mxu0 %v2693
        %v2812 = vpop.f32.mrb[0].mxu0
        %v2813 = vadd.f32 %v2620, %v2812
        %v2814 = vpop.f32.mrb[0].mxu0
        %2815 = vmatprep.mubr.f32.mxu0 0.0
        %2816 = vmatmul.mubr.f32.gmra.mrb[0].mxu0 %v2696
        %v2817 = vpop.f32.mrb[0].mxu0
        %v2818 = vadd.f32 %v2625, %v2817
        %v2819 = vpop.f32.mrb[0].mxu0
        %2820 = vmatprep.mubr.f32.mxu0 0.0
        %2821 = vmatmul.mubr.f32.gmra.mrb[0].mxu0 %v2699
        %v2822 = vpop.f32.mrb[0].mxu0
        %v2823 = vadd.f32 %v2630, %v2822
        %v2824 = vpop.f32.mrb[0].mxu0
        %2825 = vmatprep.mubr.f32.mxu0 0.0
        %2826 = vmatmul.mubr.f32.gmra.mrb[0].mxu0 %v2702
        %v2827 = vpop.f32.mrb[0].mxu0
        %v2828 = vadd.f32 %v2635, %v2827
        %v2829 = vpop.f32.mrb[0].mxu0
        %2830 = vmatprep.mubr.f32.mxu0 0.0
        %2831 = vmatmul.mubr.f32.gmra.mrb[0].mxu0 %v2705
        %v2832 = vpop.f32.mrb[0].mxu0
        %v2833 = vadd.f32 %v2640, %v2832
        %v2834 = vpop.f32.mrb[0].mxu0
        %2835 = vmatprep.mubr.f32.mxu0 0.0
        %2836 = vmatmul.mubr.f32.gmra.mrb[0].mxu0 %v2708
        %v2837 = vpop.f32.mrb[0].mxu0
        %v2838 = vadd.f32 %v2645, %v2837
        %v2839 = vpop.f32.mrb[0].mxu0
        %2840 = vmatprep.mubr.f32.mxu0 0.0
        %2841 = vmatmul.mubr.f32.gmra.mrb[0].mxu0 %v2711
        %v2842 = vpop.f32.mrb[0].mxu0
        %v2843 = vadd.f32 %v2650, %v2842
        %v2844 = vpop.f32.mrb[0].mxu0
        %2845 = vmatprep.mubr.f32.mxu0 0.0
        %2846 = vmatmul.mubr.f32.gmra.mrb[0].mxu0 %v2714
        %v2847 = vpop.f32.mrb[0].mxu0
        %v2848 = vadd.f32 %v2655, %v2847
        %v2849 = vpop.f32.mrb[0].mxu0
        %2850 = vmatprep.mubr.f32.mxu0 0.0
        %2851 = vmatmul.mubr.f32.gmra.mrb[0].mxu0 %v2717
        %v2852 = vpop.f32.mrb[0].mxu0
        %v2853 = vadd.f32 %v2660, %v2852
        %v2854 = vpop.f32.mrb[0].mxu0
        %2855 = vmatprep.mubr.f32.mxu0 0.0
        %2856 = vmatmul.mubr.f32.gmra.mrb[0].mxu0 %v2720
        %v2857 = vpop.f32.mrb[0].mxu0
        %v2858 = vadd.f32 %v2665, %v2857
        %v2859 = vpop.f32.mrb[0].mxu0
        %2860 = vmatprep.mubr.f32.mxu0 0.0
        %2861 = vmatmul.mubr.f32.gmra.mrb[0].mxu0 %v2723
        %v2862 = vpop.f32.mrb[0].mxu0
        %v2863 = vadd.f32 %v2670, %v2862
        %v2864 = vpop.f32.mrb[0].mxu0
        %2865 = vmatprep.mubr.f32.mxu0 0.0
        %2866 = vmatmul.mubr.f32.gmra.mrb[0].mxu0 %v2726
        %v2867 = vpop.f32.mrb[0].mxu0
        %v2868 = vadd.f32 %v2675, %v2867
        %v2869 = vpop.f32.mrb[0].mxu0
        %2870 = vmatprep.mubr.f32.mxu0 0.0
        %2871 = vmatmul.mubr.f32.gmra.mrb[0].mxu0 %v2729
        %v2872 = vpop.f32.mrb[0].mxu0
        %v2873 = vadd.f32 %v2680, %v2872
        %v2874 = vpop.f32.mrb[0].mxu0
        %2875 = vdwg.mxu0
        %v2876 = vadd.f32 %v2798, %v2537
        %v2877 = vadd.f32 %v2803, %v2537
        %v2878 = vadd.f32 %v2808, %v2537
        %v2879 = vadd.f32 %v2813, %v2537
        %v2880 = vadd.f32 %v2818, %v2537
        %v2881 = vadd.f32 %v2823, %v2537
        %v2882 = vadd.f32 %v2828, %v2537
        %v2883 = vadd.f32 %v2833, %v2537
        %v2884 = vadd.f32 %v2838, %v2537
        %v2885 = vadd.f32 %v2843, %v2537
        %v2886 = vadd.f32 %v2848, %v2537
        %v2887 = vadd.f32 %v2853, %v2537
        %v2888 = vadd.f32 %v2858, %v2537
        %v2889 = vadd.f32 %v2863, %v2537
        %v2890 = vadd.f32 %v2868, %v2537
        %v2891 = vadd.f32 %v2873, %v2537
        %2892 = vst [vmem:[%s181] sm:$0xff] %v2876
        %2893 = vst [vmem:[%s181 + $0x8] sm:$0xff] %v2877
        %2894 = vst [vmem:[%s181 + $0x10] sm:$0xff] %v2878
        %2895 = vst [vmem:[%s181 + $0x18] sm:$0xff] %v2879
        %2896 = vst [vmem:[%s181 + $0x20] sm:$0xff] %v2880
        %2897 = vst [vmem:[%s181 + $0x28] sm:$0xff] %v2881
        %2898 = vst [vmem:[%s181 + $0x30] sm:$0xff] %v2882
        %2899 = vst [vmem:[%s181 + $0x38] sm:$0xff] %v2883
        %2900 = vst [vmem:[%s181 + $0x40] sm:$0xff] %v2884
        %2901 = vst [vmem:[%s181 + $0x48] sm:$0xff] %v2885
        %2902 = vst [vmem:[%s181 + $0x50] sm:$0xff] %v2886
        %2903 = vst [vmem:[%s181 + $0x58] sm:$0xff] %v2887
        %2904 = vst [vmem:[%s181 + $0x60] sm:$0xff] %v2888
        %2905 = vst [vmem:[%s181 + $0x68] sm:$0xff] %v2889
        %2906 = vst [vmem:[%s181 + $0x70] sm:$0xff] %v2890
        %2907 = vst [vmem:[%s181 + $0x78] sm:$0xff] %v2891
        %s2908 = sand.u32 %s94, 1
        %s2909 = scalar_lea.sflag [#allocation4], %s2908
        %s2910 = sand.u32 %s94, 1
        %s2911 = smul.addr %s2910, 128
        %s2912 = scalar_lea.vmem [#allocation5], %s2911
        // Predicated region
        $region37: #{tpu_custom_call.1} parent=31 // pred_check
          %p2913 = pneg %p104
        $region38: #{tpu_custom_call.1} parent=31 // pred_check_branch
          %2915 = sbr.rel (%p2913) target = $region40
        $region39: #{tpu_custom_call.1} parent=31 // pred_region
          %s2916 = smul.u32 16, %s18
          %s2918 = ssub.s32 2048, 2048
          %2919 = vsyncadd %s2909, %s2918
          %s2920 = smul.addr %s2916, 128
          %s2921 = scalar_lea.hbm %s3, %s2920
          %s2922 = sshll.u32 %s2912, 4
          %s2923 = int_to_ptr.vmem [resolvable:$true] %s2922
          %2928 = dma.vmem_to_hbm [thread:$0]  %s2923, 2048, %s2921, %s2909, 128, 128, 8
        $region40: #{tpu_custom_call.1} parent=31 // pred_fallthru
          _
      $region32: #{tpu_custom_call.1} parent=5 // pred_fallthru
        _
      %p2929 = scmp.le.s32.totalorder 2, %s13
      // Predicated region
      $region41: #{tpu_custom_call.1} parent=5 // pred_check
        %p2930 = pneg %p2929
      $region42: #{tpu_custom_call.1} parent=5 // pred_check_branch
        %2932 = sbr.rel (%p2930) target = $region44
      $region43: #{tpu_custom_call.1} parent=5 // pred_region
        %s2933 = ssub.s32 %s13, 2
        // Predicated region
        $region45: #{tpu_custom_call.1} parent=43 // pred_check
          %p2934 = pneg %p110
        $region46: #{tpu_custom_call.1} parent=43 // pred_check_branch
          %2936 = sbr.rel (%p2934) target = $region48
        $region47: #{tpu_custom_call.1} parent=43 // pred_region
          %s2937 = sand.u32 %s95, 1
          %s2938 = scalar_lea.sflag [#allocation4], %s2937
          %s2939 = sand.u32 %s95, 1
          %s2940 = smul.addr %s2939, 128
          %s2941 = scalar_lea.vmem [#allocation5], %s2940
          %2942 = dma.done %s2938, 2048
        $region48: #{tpu_custom_call.1} parent=43 // pred_fallthru
          _
      $region44: #{tpu_custom_call.1} parent=5 // pred_fallthru
        _
    $region6: #{tpu_custom_call.1} parent=1 // loop_footer
      %s17 = sadd.s32 1, %s13
    $region7: #{tpu_custom_call.1} parent=1 // loop_footer_branch
      %12 = sbr.rel target = $region3
    $region8: #{tpu_custom_call.1} parent=1 // loop_exit
      _
    %2943 = vsyncpa [#allocation3], 1
    %s2944 = scalar_lea.sflag [#allocation3], 1
    %2945 = vsyncpa %s2944, 1
    %2946 = vsyncpa [#allocation4], 1
    %s2947 = scalar_lea.sflag [#allocation4], 1
    %2948 = vsyncpa %s2947, 1

</llo_original>
